<compile_context>
chip_gen: v7x
topology: tpu7x:2x2x1
jax: 0.10.0
libtpu: 0.0.40
codegen_flags: <defaults>
</compile_context>

<pallas_src>
import jax
import jax.numpy as jnp
from jax.experimental import pallas as pl
from jax.experimental.pallas import tpu as pltpu

# ---------------- model dimensions (small, synthetic) ----------------
B = 2              # batch
CIN = 3            # RGB
H = W = 16         # image spatial size
KH = KW = 7        # resnet stem kernel
STRIDE, PAD = 2, 3
FEAT = 2048        # resnet.fc.in_features
EMBED = 32         # embed_size
EMBED_PAD = 128    # lane-dense head weight/output; wrapper slices back to EMBED
K_RAW = KH * KW * CIN                      # 147
K_PAD = 160                                # zero-padded contraction dim (16-multiple)
OH = (H + 2 * PAD - KH) // STRIDE + 1      # 8
OW = (W + 2 * PAD - KW) // STRIDE + 1      # 8
P_ROWS = B * OH * OW                       # 128 im2col rows, batch-major
BN_EPS = 1e-5


# ---------------- fused Pallas kernel ----------------
def _encoder_kernel(p_ref, wc_ref, bc_ref, wl_ref, bl_ref, g_ref, bt_ref, o_ref):
    # ---- stem conv as matmul: bf16 operands, f32 MXU accumulate, + bias, ReLU ----
    conv = jnp.dot(p_ref[...], wc_ref[...], preferred_element_type=jnp.float32)
    conv = jnp.maximum(conv + bc_ref[...], 0.0)               # (P_ROWS, FEAT) f32
    # ---- global average pool over the spatial axis ----
    # Relies on im2col producing batch-major rows (b*oh*ow) and on this single
    # grid step seeing ALL P_ROWS rows; do not add a grid axis over P.
    p, c = conv.shape
    pooled = jnp.mean(conv.reshape(B, p // B, c), axis=1)     # (B, FEAT) f32
    # ---- Linear head: bf16 operands, f32 accumulate ----
    z = jnp.dot(pooled.astype(jnp.bfloat16), wl_ref[...],
                preferred_element_type=jnp.float32) + bl_ref[...]
    # ---- BatchNorm1d (training-mode batch stats, biased variance), all f32 ----
    mean = jnp.mean(z, axis=0, keepdims=True)
    var = jnp.mean(jnp.square(z - mean), axis=0, keepdims=True)
    o_ref[...] = g_ref[...] * (z - mean) * jax.lax.rsqrt(var + BN_EPS) + bt_ref[...]


# ---------------- Pallas wrapper ----------------
def encoder_fused(patches_bf16, pp):
    # Single launch, single grid step; every block is the full array, so peak
    # VMEM is ~3.5 MiB (well under the scoped default on all generations).
    return pl.pallas_call(
        _encoder_kernel,
        out_shape=jax.ShapeDtypeStruct((B, EMBED_PAD), jnp.float32),
        grid_spec=pltpu.PrefetchScalarGridSpec(
            num_scalar_prefetch=0,
            grid=(1,),
            in_specs=[
                pl.BlockSpec((P_ROWS, K_PAD), lambda i: (0, 0)),      # patches bf16
                pl.BlockSpec((K_PAD, FEAT), lambda i: (0, 0)),        # conv weight bf16
                pl.BlockSpec((1, FEAT), lambda i: (0, 0)),            # conv bias f32
                pl.BlockSpec((FEAT, EMBED_PAD), lambda i: (0, 0)),    # head weight bf16
                pl.BlockSpec((1, EMBED_PAD), lambda i: (0, 0)),       # head bias f32
                pl.BlockSpec((1, EMBED_PAD), lambda i: (0, 0)),       # gamma f32
                pl.BlockSpec((1, EMBED_PAD), lambda i: (0, 0)),       # beta f32
            ],
            out_specs=pl.BlockSpec((B, EMBED_PAD), lambda i: (0, 0)),
        ),
        compiler_params=pltpu.CompilerParams(
            dimension_semantics=("arbitrary",),
        ),
    )(patches_bf16, pp["w_conv"], pp["b_conv"], pp["w_lin"],
      pp["b_lin"], pp["gamma"], pp["beta"])


# ---------------- one-time parameter preprocessing (hoisted out of forward) ----------------
def prepare_params(params):
    pad_e = ((0, 0), (0, EMBED_PAD - EMBED))
    return {
        # conv weight: zero-pad K 147 -> 160, cast to bf16 for the MXU stream
        "w_conv": jnp.pad(params["w_conv"], ((0, K_PAD - K_RAW), (0, 0))).astype(jnp.bfloat16),
        "b_conv": params["b_conv"],
        # head weight: zero-pad EMBED 32 -> 128 lanes, cast to bf16
        "w_lin": jnp.pad(params["w_lin"], pad_e).astype(jnp.bfloat16),
        "b_lin": jnp.pad(params["b_lin"], pad_e),
        # zero-pad gamma/beta — padded lanes MUST stay zero (see header invariant)
        "gamma": jnp.pad(params["gamma"], pad_e),
        "beta": jnp.pad(params["beta"], pad_e),
    }


# ---------------- glue (plain JAX) ----------------
def im2col(x_nhwc, kh, kw, stride, pad):
    b, h, w, c = x_nhwc.shape
    xp = jnp.pad(x_nhwc, ((0, 0), (pad, pad), (pad, pad), (0, 0)))
    oh = (h + 2 * pad - kh) // stride + 1
    ow = (w + 2 * pad - kw) // stride + 1
    cols = []
    for i in range(kh):
        for j in range(kw):
            cols.append(xp[:, i:i + stride * oh:stride, j:j + stride * ow:stride, :])
    p = jnp.concatenate(cols, axis=-1)          # (B, OH, OW, KH*KW*Cin), batch-major
    return p.reshape(b * oh * ow, kh * kw * c), oh, ow


def encoder_cnn_forward(images_nchw, prepped_params):
    x = jnp.transpose(images_nchw, (0, 2, 3, 1))               # NCHW -> NHWC
    patches, _, _ = im2col(x, KH, KW, STRIDE, PAD)             # (B*OH*OW, 147)
    assert patches.shape == (P_ROWS, K_RAW)
    # activation path: zero-pad K and cast to bf16 (per-call, depends on images)
    patches_b = jnp.pad(patches, ((0, 0), (0, K_PAD - K_RAW))).astype(jnp.bfloat16)
    out = encoder_fused(patches_b, prepped_params)             # (B, EMBED_PAD) f32
    return out[:, :EMBED]                                      # (B, EMBED)


def reference_forward(images_nchw, params):
    # Pure-JAX reference with the SAME mixed-precision policy as the kernel
    # (bf16 matmul operands, f32 accumulation; everything else f32).
    x = jnp.transpose(images_nchw, (0, 2, 3, 1))
    patches, oh, ow = im2col(x, KH, KW, STRIDE, PAD)
    conv = jnp.dot(patches.astype(jnp.bfloat16),
                   params["w_conv"].astype(jnp.bfloat16),
                   preferred_element_type=jnp.float32)
    conv = jnp.maximum(conv + params["b_conv"], 0.0)
    pooled = jnp.mean(conv.reshape(B, oh * ow, FEAT), axis=1)
    z = jnp.dot(pooled.astype(jnp.bfloat16),
                params["w_lin"].astype(jnp.bfloat16),
                preferred_element_type=jnp.float32) + params["b_lin"]
    mean = jnp.mean(z, axis=0, keepdims=True)
    var = jnp.mean(jnp.square(z - mean), axis=0, keepdims=True)
    return params["gamma"] * (z - mean) * jax.lax.rsqrt(var + BN_EPS) + params["beta"]


if __name__ == "__main__":
    key = jax.random.PRNGKey(0)
    k_img, k_wc, k_bc, k_wl, k_bl, k_g, k_b = jax.random.split(key, 7)

    images = jax.random.normal(k_img, (B, CIN, H, W), dtype=jnp.float32)

    params = {
        "w_conv": jax.random.normal(k_wc, (K_RAW, FEAT), jnp.float32) * 0.05,
        "b_conv": jax.random.normal(k_bc, (1, FEAT), jnp.float32) * 0.05,
        "w_lin": jax.random.normal(k_wl, (FEAT, EMBED), jnp.float32) * 0.02,
        "b_lin": jax.random.normal(k_bl, (1, EMBED), jnp.float32) * 0.02,
        "gamma": 1.0 + 0.1 * jax.random.normal(k_g, (1, EMBED), jnp.float32),
        "beta": 0.1 * jax.random.normal(k_b, (1, EMBED), jnp.float32),
    }

    # one-time frozen-weight preprocessing (would live in the module __init__)
    prepped = jax.tree.map(jax.block_until_ready, prepare_params(params))

    out = jax.block_until_ready(encoder_cnn_forward(images, prepped))
    ref = reference_forward(images, params)

    assert out.shape == (B, EMBED)
    assert jnp.allclose(out, ref, atol=1e-2, rtol=1e-2), "mismatch vs JAX reference"

    print("KERNEL_OK")
</pallas_src>

<mosaic_0001>
module attributes {stable_mosaic.version = 11 : i64} {
  func.func @_encoder_kernel(%arg0: i32, %arg1: memref<128x160xbf16, #tpu.memory_space<vmem>>, %arg2: memref<160x2048xbf16, #tpu.memory_space<vmem>>, %arg3: memref<1x2048xf32, #tpu.memory_space<vmem>>, %arg4: memref<2048x128xbf16, #tpu.memory_space<vmem>>, %arg5: memref<1x128xf32, #tpu.memory_space<vmem>>, %arg6: memref<1x128xf32, #tpu.memory_space<vmem>>, %arg7: memref<1x128xf32, #tpu.memory_space<vmem>>, %arg8: memref<2x128xf32, #tpu.memory_space<vmem>>) attributes {dimension_semantics = [#tpu.dimension_semantics<arbitrary>], iteration_bounds = array<i64: 1>, scalar_prefetch = 0 : i64, scratch_operands = 0 : i64, tpu.core_type = #tpu.core_type<tc>, window_params = [{pipeline_mode = #tpu.pipeline_mode<synchronous>, transform_indices = @transform_0, window_bounds = array<i64: 128, 160>}, {pipeline_mode = #tpu.pipeline_mode<synchronous>, transform_indices = @transform_1, window_bounds = array<i64: 160, 2048>}, {pipeline_mode = #tpu.pipeline_mode<synchronous>, transform_indices = @transform_2, window_bounds = array<i64: 1, 2048>}, {pipeline_mode = #tpu.pipeline_mode<synchronous>, transform_indices = @transform_3, window_bounds = array<i64: 2048, 128>}, {pipeline_mode = #tpu.pipeline_mode<synchronous>, transform_indices = @transform_4, window_bounds = array<i64: 1, 128>}, {pipeline_mode = #tpu.pipeline_mode<synchronous>, transform_indices = @transform_5, window_bounds = array<i64: 1, 128>}, {pipeline_mode = #tpu.pipeline_mode<synchronous>, transform_indices = @transform_6, window_bounds = array<i64: 1, 128>}, {pipeline_mode = #tpu.pipeline_mode<synchronous>, transform_indices = @transform_7, window_bounds = array<i64: 2, 128>}]} {
    %c0 = arith.constant 0 : index
    %c0_0 = arith.constant 0 : index
    %0 = vector.load %arg1[%c0, %c0_0] : memref<128x160xbf16, #tpu.memory_space<vmem>>, vector<128x160xbf16>
    %c0_1 = arith.constant 0 : index
    %c0_2 = arith.constant 0 : index
    %1 = vector.load %arg2[%c0_1, %c0_2] : memref<160x2048xbf16, #tpu.memory_space<vmem>>, vector<160x2048xbf16>
    %cst = arith.constant dense<0.000000e+00> : vector<128x2048xf32>
    %2 = tpu.matmul %0, %1, %cst {dimension_numbers = #tpu.dot_dimension_numbers<[1], [0], [0], [1], [0, 0, 1, 1], [], []>} : vector<128x160xbf16>, vector<160x2048xbf16>, vector<128x2048xf32> -> vector<128x2048xf32>
    %c0_3 = arith.constant 0 : index
    %c0_4 = arith.constant 0 : index
    %3 = vector.load %arg3[%c0_3, %c0_4] : memref<1x2048xf32, #tpu.memory_space<vmem>>, vector<1x2048xf32>
    %4 = vector.broadcast %3 : vector<1x2048xf32> to vector<128x2048xf32>
    %5 = arith.addf %2, %4 : vector<128x2048xf32>
    %cst_5 = arith.constant 0.000000e+00 : f32
    %6 = vector.broadcast %cst_5 : f32 to vector<128x2048xf32>
    %7 = arith.maximumf %5, %6 : vector<128x2048xf32>
    %8 = vector.shape_cast %7 : vector<128x2048xf32> to vector<2x64x2048xf32>
    %cst_6 = arith.constant dense<0.000000e+00> : vector<2x2048xf32>
    %9 = vector.multi_reduction <add>, %8, %cst_6 [1] : vector<2x64x2048xf32> to vector<2x2048xf32>
    %cst_7 = arith.constant 6.400000e+01 : f32
    %10 = vector.broadcast %cst_7 : f32 to vector<2x2048xf32>
    %11 = arith.divf %9, %10 : vector<2x2048xf32>
    %12 = arith.truncf %11 : vector<2x2048xf32> to vector<2x2048xbf16>
    %c0_8 = arith.constant 0 : index
    %c0_9 = arith.constant 0 : index
    %13 = vector.load %arg4[%c0_8, %c0_9] : memref<2048x128xbf16, #tpu.memory_space<vmem>>, vector<2048x128xbf16>
    %cst_10 = arith.constant dense<0.000000e+00> : vector<2x128xf32>
    %14 = tpu.matmul %12, %13, %cst_10 {dimension_numbers = #tpu.dot_dimension_numbers<[1], [0], [0], [1], [0, 0, 1, 1], [], []>} : vector<2x2048xbf16>, vector<2048x128xbf16>, vector<2x128xf32> -> vector<2x128xf32>
    %c0_11 = arith.constant 0 : index
    %c0_12 = arith.constant 0 : index
    %15 = vector.load %arg5[%c0_11, %c0_12] : memref<1x128xf32, #tpu.memory_space<vmem>>, vector<1x128xf32>
    %16 = vector.broadcast %15 : vector<1x128xf32> to vector<2x128xf32>
    %17 = arith.addf %14, %16 : vector<2x128xf32>
    %cst_13 = arith.constant dense<0.000000e+00> : vector<128xf32>
    %18 = vector.multi_reduction <add>, %17, %cst_13 [0] : vector<2x128xf32> to vector<128xf32>
    %19 = vector.shape_cast %18 : vector<128xf32> to vector<1x128xf32>
    %cst_14 = arith.constant 2.000000e+00 : f32
    %20 = vector.broadcast %cst_14 : f32 to vector<1x128xf32>
    %21 = arith.divf %19, %20 : vector<1x128xf32>
    %22 = vector.broadcast %21 : vector<1x128xf32> to vector<2x128xf32>
    %23 = arith.subf %17, %22 : vector<2x128xf32>
    %24 = arith.mulf %23, %23 : vector<2x128xf32>
    %cst_15 = arith.constant dense<0.000000e+00> : vector<128xf32>
    %25 = vector.multi_reduction <add>, %24, %cst_15 [0] : vector<2x128xf32> to vector<128xf32>
    %26 = vector.shape_cast %25 : vector<128xf32> to vector<1x128xf32>
    %cst_16 = arith.constant 2.000000e+00 : f32
    %27 = vector.broadcast %cst_16 : f32 to vector<1x128xf32>
    %28 = arith.divf %26, %27 : vector<1x128xf32>
    %c0_17 = arith.constant 0 : index
    %c0_18 = arith.constant 0 : index
    %29 = vector.load %arg6[%c0_17, %c0_18] : memref<1x128xf32, #tpu.memory_space<vmem>>, vector<1x128xf32>
    %30 = vector.broadcast %21 : vector<1x128xf32> to vector<2x128xf32>
    %31 = arith.subf %17, %30 : vector<2x128xf32>
    %32 = vector.broadcast %29 : vector<1x128xf32> to vector<2x128xf32>
    %33 = arith.mulf %32, %31 : vector<2x128xf32>
    %cst_19 = arith.constant 9.99999974E-6 : f32
    %34 = vector.broadcast %cst_19 : f32 to vector<1x128xf32>
    %35 = arith.addf %28, %34 : vector<1x128xf32>
    %36 = math.rsqrt %35 : vector<1x128xf32>
    %37 = vector.broadcast %36 : vector<1x128xf32> to vector<2x128xf32>
    %38 = arith.mulf %33, %37 : vector<2x128xf32>
    %c0_20 = arith.constant 0 : index
    %c0_21 = arith.constant 0 : index
    %39 = vector.load %arg7[%c0_20, %c0_21] : memref<1x128xf32, #tpu.memory_space<vmem>>, vector<1x128xf32>
    %40 = vector.broadcast %39 : vector<1x128xf32> to vector<2x128xf32>
    %41 = arith.addf %38, %40 : vector<2x128xf32>
    %c0_22 = arith.constant 0 : index
    %c0_23 = arith.constant 0 : index
    %42 = vector.load %arg8[%c0_22, %c0_23] : memref<2x128xf32, #tpu.memory_space<vmem>>, vector<2x128xf32>
    tpu.vector_store %arg8[%c0_22, %c0_23], %41 {strides = array<i32>} : memref<2x128xf32, #tpu.memory_space<vmem>>, vector<2x128xf32>,
    return
  }
  func.func @transform_0(%arg0: i32) -> (i32, i32) {
    %c0_i32 = arith.constant 0 : i32
    %c0_i32_0 = arith.constant 0 : i32
    %c0_i32_1 = arith.constant 0 : i32
    return %c0_i32, %c0_i32_0 : i32, i32
  }
  func.func @transform_1(%arg0: i32) -> (i32, i32) {
    %c0_i32 = arith.constant 0 : i32
    %c0_i32_0 = arith.constant 0 : i32
    %c0_i32_1 = arith.constant 0 : i32
    return %c0_i32, %c0_i32_0 : i32, i32
  }
  func.func @transform_2(%arg0: i32) -> (i32, i32) {
    %c0_i32 = arith.constant 0 : i32
    %c0_i32_0 = arith.constant 0 : i32
    %c0_i32_1 = arith.constant 0 : i32
    return %c0_i32, %c0_i32_0 : i32, i32
  }
  func.func @transform_3(%arg0: i32) -> (i32, i32) {
    %c0_i32 = arith.constant 0 : i32
    %c0_i32_0 = arith.constant 0 : i32
    %c0_i32_1 = arith.constant 0 : i32
    return %c0_i32, %c0_i32_0 : i32, i32
  }
  func.func @transform_4(%arg0: i32) -> (i32, i32) {
    %c0_i32 = arith.constant 0 : i32
    %c0_i32_0 = arith.constant 0 : i32
    %c0_i32_1 = arith.constant 0 : i32
    return %c0_i32, %c0_i32_0 : i32, i32
  }
  func.func @transform_5(%arg0: i32) -> (i32, i32) {
    %c0_i32 = arith.constant 0 : i32
    %c0_i32_0 = arith.constant 0 : i32
    %c0_i32_1 = arith.constant 0 : i32
    return %c0_i32, %c0_i32_0 : i32, i32
  }
  func.func @transform_6(%arg0: i32) -> (i32, i32) {
    %c0_i32 = arith.constant 0 : i32
    %c0_i32_0 = arith.constant 0 : i32
    %c0_i32_1 = arith.constant 0 : i32
    return %c0_i32, %c0_i32_0 : i32, i32
  }
  func.func @transform_7(%arg0: i32) -> (i32, i32) {
    %c0_i32 = arith.constant 0 : i32
    %c0_i32_0 = arith.constant 0 : i32
    %c0_i32_1 = arith.constant 0 : i32
    return %c0_i32, %c0_i32_0 : i32, i32
  }
}

</mosaic_0001>

<llo_original>
// kernel: tpu_custom_call.1
$region0: #{tpu_custom_call.1}
  #allocation0 [shape = 'u32[]', space=smem, size = 0x4, offset = 0x4, fixed_abs, tag = 'smem constant byte address 0x4 - core index']
  #allocation1 [shape = 'u32[144,128]{1,0:T(1,128)}', space=vmem, size = 0x12000, scoped, tag = 'internal scratch']
  %s0 = inlined_call_operand.vmem [shape: bf16[128,160], index: 0, kind: input, shape index: {}]
  %s1 = inlined_call_operand.hbm [shape: bf16[160,2048], index: 1, kind: input, shape index: {}]
  %s2 = inlined_call_operand.vmem [shape: f32[1,2048], index: 2, kind: input, shape index: {}]
  %s3 = inlined_call_operand.hbm [shape: bf16[2048,128], index: 3, kind: input, shape index: {}]
  %s4 = inlined_call_operand.vmem [shape: f32[1,128], index: 4, kind: input, shape index: {}]
  %s5 = inlined_call_operand.vmem [shape: f32[1,128], index: 5, kind: input, shape index: {}]
  %s6 = inlined_call_operand.vmem [shape: f32[1,128], index: 6, kind: input, shape index: {}]
  %s7 = inlined_call_operand.hbm [shape: f32[2,128], index: 7, kind: output, shape index: {}]
  %s8 = sld [smem:[#allocation0]]
  $region46: #{tpu_custom_call.1} parent=0
    _
  %s10 = ssub.s32 1, %s8
  %s11 = scalar_select 0, %s10, %s8
  $region1: #{tpu_custom_call.1} parent=0
    #allocation2 [shape = 'u8[655360]{0}', space=vmem, size = 0xa0000, scoped, tag = 'input window, operand 1, single buffered']
    #allocation3 [shape = 's32[1]{0}', space=sflag, size = 0x4, scoped, tag = 'scoped memory for tpu_custom_call.1']
    #allocation4 [shape = 's32[1]{0}', space=sflag, size = 0x4, scoped, tag = 'scoped memory for tpu_custom_call.1']
    #allocation5 [shape = 'u8[524288]{0}', space=vmem, size = 0x80000, scoped, tag = 'input window, operand 3, single buffered']
    #allocation6 [shape = 's32[1]{0}', space=sflag, size = 0x4, scoped, tag = 'scoped memory for tpu_custom_call.1']
    #allocation7 [shape = 'u8[1024]{0}', space=vmem, size = 0x400, scoped, tag = 'output window, operand 0, single buffered']
    %12 = vsyncpa [#allocation3], 0
    %13 = vsyncpa [#allocation6], 0
    %14 = vsyncpa [#allocation4], 0
    // Predicated region
    $region2: #{tpu_custom_call.1} parent=1 // pred_check
      _
    $region3: #{tpu_custom_call.1} parent=1 // pred_check_branch
      %16 = sbr.rel (0) target = $region5
    $region4: #{tpu_custom_call.1} parent=1 // pred_region
      _
    $region5: #{tpu_custom_call.1} parent=1 // pred_fallthru
      _
    // Predicated region
    $region6: #{tpu_custom_call.1} parent=1 // pred_check
      _
    $region7: #{tpu_custom_call.1} parent=1 // pred_check_branch
      %18 = sbr.rel (0) target = $region9
    $region8: #{tpu_custom_call.1} parent=1 // pred_region
      %s20 = ssub.s32 20480, 20480
      %21 = vsyncadd [#allocation3], %s20
      %s22 = sshll.u32 [#allocation2], 4
      %s23 = int_to_ptr.vmem [resolvable:$true] %s22
      %28 = dma.hbm_to_vmem [thread:$0]  %s1, 20480, %s23, [#allocation3], 1024, 1024, 64
    $region9: #{tpu_custom_call.1} parent=1 // pred_fallthru
      _
    // Predicated region
    $region10: #{tpu_custom_call.1} parent=1 // pred_check
      _
    $region11: #{tpu_custom_call.1} parent=1 // pred_check_branch
      %30 = sbr.rel (0) target = $region13
    $region12: #{tpu_custom_call.1} parent=1 // pred_region
      _
    $region13: #{tpu_custom_call.1} parent=1 // pred_fallthru
      _
    // Predicated region
    $region14: #{tpu_custom_call.1} parent=1 // pred_check
      _
    $region15: #{tpu_custom_call.1} parent=1 // pred_check_branch
      %32 = sbr.rel (0) target = $region17
    $region16: #{tpu_custom_call.1} parent=1 // pred_region
      %s34 = ssub.s32 16384, 16384
      %35 = vsyncadd [#allocation6], %s34
      %s36 = sshll.u32 [#allocation5], 4
      %s37 = int_to_ptr.vmem [resolvable:$true] %s36
      %42 = dma.hbm_to_vmem [thread:$0]  %s3, 16384, %s37, [#allocation6], 64, 64, 4
    $region17: #{tpu_custom_call.1} parent=1 // pred_fallthru
      _
    // Predicated region
    $region18: #{tpu_custom_call.1} parent=1 // pred_check
      _
    $region19: #{tpu_custom_call.1} parent=1 // pred_check_branch
      %44 = sbr.rel (0) target = $region21
    $region20: #{tpu_custom_call.1} parent=1 // pred_region
      _
    $region21: #{tpu_custom_call.1} parent=1 // pred_fallthru
      _
    // Predicated region
    $region22: #{tpu_custom_call.1} parent=1 // pred_check
      _
    $region23: #{tpu_custom_call.1} parent=1 // pred_check_branch
      %46 = sbr.rel (0) target = $region25
    $region24: #{tpu_custom_call.1} parent=1 // pred_region
      _
    $region25: #{tpu_custom_call.1} parent=1 // pred_fallthru
      _
    // Predicated region
    $region26: #{tpu_custom_call.1} parent=1 // pred_check
      _
    $region27: #{tpu_custom_call.1} parent=1 // pred_check_branch
      %48 = sbr.rel (0) target = $region29
    $region28: #{tpu_custom_call.1} parent=1 // pred_region
      _
    $region29: #{tpu_custom_call.1} parent=1 // pred_fallthru
      _
    // Predicated region
    $region30: #{tpu_custom_call.1} parent=1 // pred_check
      _
    $region31: #{tpu_custom_call.1} parent=1 // pred_check_branch
      %50 = sbr.rel (0) target = $region33
    $region32: #{tpu_custom_call.1} parent=1 // pred_region
      %51 = dma.done [#allocation3], 20480
    $region33: #{tpu_custom_call.1} parent=1 // pred_fallthru
      _
    // Predicated region
    $region34: #{tpu_custom_call.1} parent=1 // pred_check
      _
    $region35: #{tpu_custom_call.1} parent=1 // pred_check_branch
      %53 = sbr.rel (0) target = $region37
    $region36: #{tpu_custom_call.1} parent=1 // pred_region
      %54 = dma.done [#allocation6], 16384
    $region37: #{tpu_custom_call.1} parent=1 // pred_fallthru
      _
    %v56 = vld [vmem:[%s0] sm:$0xff]
    %v57 = vld [vmem:[%s0 + $0x8] sm:$0xff]
    %v58 = vld [vmem:[%s0 + $0x10] sm:$0xff]
    %v59 = vld [vmem:[%s0 + $0x18] sm:$0xff]
    %v60 = vld [vmem:[%s0 + $0x20] sm:$0xff]
    %v61 = vld [vmem:[%s0 + $0x28] sm:$0xff]
    %v62 = vld [vmem:[%s0 + $0x30] sm:$0xff]
    %v63 = vld [vmem:[%s0 + $0x38] sm:$0xff]
    %v64 = vld [vmem:[%s0 + $0x40] sm:$0xff]
    %v65 = vld [vmem:[%s0 + $0x48] sm:$0xff]
    %v66 = vld [vmem:[%s0 + $0x50] sm:$0xff]
    %v67 = vld [vmem:[%s0 + $0x58] sm:$0xff]
    %v68 = vld [vmem:[%s0 + $0x60] sm:$0xff]
    %v69 = vld [vmem:[%s0 + $0x68] sm:$0xff]
    %v70 = vld [vmem:[%s0 + $0x70] sm:$0xff]
    %v71 = vld [vmem:[%s0 + $0x78] sm:$0xff]
    %v72 = vld [vmem:[#allocation2] sm:$0xff]
    %v73 = vld [vmem:[#allocation2 + $0x8] sm:$0xff]
    %v74 = vld [vmem:[#allocation2 + $0x10] sm:$0xff]
    %v75 = vld [vmem:[#allocation2 + $0x18] sm:$0xff]
    %v76 = vld [vmem:[#allocation2 + $0x20] sm:$0xff]
    %v77 = vld [vmem:[#allocation2 + $0x28] sm:$0xff]
    %v78 = vld [vmem:[#allocation2 + $0x30] sm:$0xff]
    %v79 = vld [vmem:[#allocation2 + $0x38] sm:$0xff]
    %v80 = vld [vmem:[#allocation2 + $0x40] sm:$0xff]
    %v81 = vld [vmem:[#allocation2 + $0x48] sm:$0xff]
    %v82 = vld [vmem:[#allocation2 + $0x50] sm:$0xff]
    %v83 = vld [vmem:[#allocation2 + $0x58] sm:$0xff]
    %v84 = vld [vmem:[#allocation2 + $0x60] sm:$0xff]
    %v85 = vld [vmem:[#allocation2 + $0x68] sm:$0xff]
    %v86 = vld [vmem:[#allocation2 + $0x70] sm:$0xff]
    %v87 = vld [vmem:[#allocation2 + $0x78] sm:$0xff]
    %v88 = vld [vmem:[#allocation2 + $0x80] sm:$0xff]
    %v89 = vld [vmem:[#allocation2 + $0x88] sm:$0xff]
    %v90 = vld [vmem:[#allocation2 + $0x90] sm:$0xff]
    %v91 = vld [vmem:[#allocation2 + $0x98] sm:$0xff]
    %v92 = vld [vmem:[#allocation2 + $0xa0] sm:$0xff]
    %v93 = vld [vmem:[#allocation2 + $0xa8] sm:$0xff]
    %v94 = vld [vmem:[#allocation2 + $0xb0] sm:$0xff]
    %v95 = vld [vmem:[#allocation2 + $0xb8] sm:$0xff]
    %v96 = vld [vmem:[#allocation2 + $0xc0] sm:$0xff]
    %v97 = vld [vmem:[#allocation2 + $0xc8] sm:$0xff]
    %v98 = vld [vmem:[#allocation2 + $0xd0] sm:$0xff]
    %v99 = vld [vmem:[#allocation2 + $0xd8] sm:$0xff]
    %v100 = vld [vmem:[#allocation2 + $0xe0] sm:$0xff]
    %v101 = vld [vmem:[#allocation2 + $0xe8] sm:$0xff]
    %v102 = vld [vmem:[#allocation2 + $0xf0] sm:$0xff]
    %v103 = vld [vmem:[#allocation2 + $0xf8] sm:$0xff]
    %v104 = vld [vmem:[#allocation2 + $0x100] sm:$0xff]
    %v105 = vld [vmem:[#allocation2 + $0x108] sm:$0xff]
    %v106 = vld [vmem:[#allocation2 + $0x110] sm:$0xff]
    %v107 = vld [vmem:[#allocation2 + $0x118] sm:$0xff]
    %v108 = vld [vmem:[#allocation2 + $0x120] sm:$0xff]
    %v109 = vld [vmem:[#allocation2 + $0x128] sm:$0xff]
    %v110 = vld [vmem:[#allocation2 + $0x130] sm:$0xff]
    %v111 = vld [vmem:[#allocation2 + $0x138] sm:$0xff]
    %v112 = vld [vmem:[#allocation2 + $0x140] sm:$0xff]
    %v113 = vld [vmem:[#allocation2 + $0x148] sm:$0xff]
    %v114 = vld [vmem:[#allocation2 + $0x150] sm:$0xff]
    %v115 = vld [vmem:[#allocation2 + $0x158] sm:$0xff]
    %v116 = vld [vmem:[#allocation2 + $0x160] sm:$0xff]
    %v117 = vld [vmem:[#allocation2 + $0x168] sm:$0xff]
    %v118 = vld [vmem:[#allocation2 + $0x170] sm:$0xff]
    %v119 = vld [vmem:[#allocation2 + $0x178] sm:$0xff]
    %v120 = vld [vmem:[#allocation2 + $0x180] sm:$0xff]
    %v121 = vld [vmem:[#allocation2 + $0x188] sm:$0xff]
    %v122 = vld [vmem:[#allocation2 + $0x190] sm:$0xff]
    %v123 = vld [vmem:[#allocation2 + $0x198] sm:$0xff]
    %v124 = vld [vmem:[#allocation2 + $0x1a0] sm:$0xff]
    %v125 = vld [vmem:[#allocation2 + $0x1a8] sm:$0xff]
    %v126 = vld [vmem:[#allocation2 + $0x1b0] sm:$0xff]
    %v127 = vld [vmem:[#allocation2 + $0x1b8] sm:$0xff]
    %v128 = vld [vmem:[#allocation2 + $0x1c0] sm:$0xff]
    %v129 = vld [vmem:[#allocation2 + $0x1c8] sm:$0xff]
    %v130 = vld [vmem:[#allocation2 + $0x1d0] sm:$0xff]
    %v131 = vld [vmem:[#allocation2 + $0x1d8] sm:$0xff]
    %v132 = vld [vmem:[#allocation2 + $0x1e0] sm:$0xff]
    %v133 = vld [vmem:[#allocation2 + $0x1e8] sm:$0xff]
    %v134 = vld [vmem:[#allocation2 + $0x1f0] sm:$0xff]
    %v135 = vld [vmem:[#allocation2 + $0x1f8] sm:$0xff]
    %v136 = vld [vmem:[#allocation2 + $0x200] sm:$0xff]
    %v137 = vld [vmem:[#allocation2 + $0x208] sm:$0xff]
    %v138 = vld [vmem:[#allocation2 + $0x210] sm:$0xff]
    %v139 = vld [vmem:[#allocation2 + $0x218] sm:$0xff]
    %v140 = vld [vmem:[#allocation2 + $0x220] sm:$0xff]
    %v141 = vld [vmem:[#allocation2 + $0x228] sm:$0xff]
    %v142 = vld [vmem:[#allocation2 + $0x230] sm:$0xff]
    %v143 = vld [vmem:[#allocation2 + $0x238] sm:$0xff]
    %v144 = vld [vmem:[#allocation2 + $0x240] sm:$0xff]
    %v145 = vld [vmem:[#allocation2 + $0x248] sm:$0xff]
    %v146 = vld [vmem:[#allocation2 + $0x250] sm:$0xff]
    %v147 = vld [vmem:[#allocation2 + $0x258] sm:$0xff]
    %v148 = vld [vmem:[#allocation2 + $0x260] sm:$0xff]
    %v149 = vld [vmem:[#allocation2 + $0x268] sm:$0xff]
    %v150 = vld [vmem:[#allocation2 + $0x270] sm:$0xff]
    %v151 = vld [vmem:[#allocation2 + $0x278] sm:$0xff]
    %v152 = vld [vmem:[#allocation2 + $0x280] sm:$0xff]
    %v153 = vld [vmem:[#allocation2 + $0x288] sm:$0xff]
    %v154 = vld [vmem:[#allocation2 + $0x290] sm:$0xff]
    %v155 = vld [vmem:[#allocation2 + $0x298] sm:$0xff]
    %v156 = vld [vmem:[#allocation2 + $0x2a0] sm:$0xff]
    %v157 = vld [vmem:[#allocation2 + $0x2a8] sm:$0xff]
    %v158 = vld [vmem:[#allocation2 + $0x2b0] sm:$0xff]
    %v159 = vld [vmem:[#allocation2 + $0x2b8] sm:$0xff]
    %v160 = vld [vmem:[#allocation2 + $0x2c0] sm:$0xff]
    %v161 = vld [vmem:[#allocation2 + $0x2c8] sm:$0xff]
    %v162 = vld [vmem:[#allocation2 + $0x2d0] sm:$0xff]
    %v163 = vld [vmem:[#allocation2 + $0x2d8] sm:$0xff]
    %v164 = vld [vmem:[#allocation2 + $0x2e0] sm:$0xff]
    %v165 = vld [vmem:[#allocation2 + $0x2e8] sm:$0xff]
    %v166 = vld [vmem:[#allocation2 + $0x2f0] sm:$0xff]
    %v167 = vld [vmem:[#allocation2 + $0x2f8] sm:$0xff]
    %v168 = vld [vmem:[#allocation2 + $0x300] sm:$0xff]
    %v169 = vld [vmem:[#allocation2 + $0x308] sm:$0xff]
    %v170 = vld [vmem:[#allocation2 + $0x310] sm:$0xff]
    %v171 = vld [vmem:[#allocation2 + $0x318] sm:$0xff]
    %v172 = vld [vmem:[#allocation2 + $0x320] sm:$0xff]
    %v173 = vld [vmem:[#allocation2 + $0x328] sm:$0xff]
    %v174 = vld [vmem:[#allocation2 + $0x330] sm:$0xff]
    %v175 = vld [vmem:[#allocation2 + $0x338] sm:$0xff]
    %v176 = vld [vmem:[#allocation2 + $0x340] sm:$0xff]
    %v177 = vld [vmem:[#allocation2 + $0x348] sm:$0xff]
    %v178 = vld [vmem:[#allocation2 + $0x350] sm:$0xff]
    %v179 = vld [vmem:[#allocation2 + $0x358] sm:$0xff]
    %v180 = vld [vmem:[#allocation2 + $0x360] sm:$0xff]
    %v181 = vld [vmem:[#allocation2 + $0x368] sm:$0xff]
    %v182 = vld [vmem:[#allocation2 + $0x370] sm:$0xff]
    %v183 = vld [vmem:[#allocation2 + $0x378] sm:$0xff]
    %v184 = vld [vmem:[#allocation2 + $0x380] sm:$0xff]
    %v185 = vld [vmem:[#allocation2 + $0x388] sm:$0xff]
    %v186 = vld [vmem:[#allocation2 + $0x390] sm:$0xff]
    %v187 = vld [vmem:[#allocation2 + $0x398] sm:$0xff]
    %v188 = vld [vmem:[#allocation2 + $0x3a0] sm:$0xff]
    %v189 = vld [vmem:[#allocation2 + $0x3a8] sm:$0xff]
    %v190 = vld [vmem:[#allocation2 + $0x3b0] sm:$0xff]
    %v191 = vld [vmem:[#allocation2 + $0x3b8] sm:$0xff]
    %v192 = vld [vmem:[#allocation2 + $0x3c0] sm:$0xff]
    %v193 = vld [vmem:[#allocation2 + $0x3c8] sm:$0xff]
    %v194 = vld [vmem:[#allocation2 + $0x3d0] sm:$0xff]
    %v195 = vld [vmem:[#allocation2 + $0x3d8] sm:$0xff]
    %v196 = vld [vmem:[#allocation2 + $0x3e0] sm:$0xff]
    %v197 = vld [vmem:[#allocation2 + $0x3e8] sm:$0xff]
    %v198 = vld [vmem:[#allocation2 + $0x3f0] sm:$0xff]
    %v199 = vld [vmem:[#allocation2 + $0x3f8] sm:$0xff]
    %v200 = vld [vmem:[#allocation2 + $0x400] sm:$0xff]
    %v201 = vld [vmem:[#allocation2 + $0x408] sm:$0xff]
    %v202 = vld [vmem:[#allocation2 + $0x410] sm:$0xff]
    %v203 = vld [vmem:[#allocation2 + $0x418] sm:$0xff]
    %v204 = vld [vmem:[#allocation2 + $0x420] sm:$0xff]
    %v205 = vld [vmem:[#allocation2 + $0x428] sm:$0xff]
    %v206 = vld [vmem:[#allocation2 + $0x430] sm:$0xff]
    %v207 = vld [vmem:[#allocation2 + $0x438] sm:$0xff]
    %v208 = vld [vmem:[#allocation2 + $0x440] sm:$0xff]
    %v209 = vld [vmem:[#allocation2 + $0x448] sm:$0xff]
    %v210 = vld [vmem:[#allocation2 + $0x450] sm:$0xff]
    %v211 = vld [vmem:[#allocation2 + $0x458] sm:$0xff]
    %v212 = vld [vmem:[#allocation2 + $0x460] sm:$0xff]
    %v213 = vld [vmem:[#allocation2 + $0x468] sm:$0xff]
    %v214 = vld [vmem:[#allocation2 + $0x470] sm:$0xff]
    %v215 = vld [vmem:[#allocation2 + $0x478] sm:$0xff]
    %v216 = vld [vmem:[#allocation2 + $0x480] sm:$0xff]
    %v217 = vld [vmem:[#allocation2 + $0x488] sm:$0xff]
    %v218 = vld [vmem:[#allocation2 + $0x490] sm:$0xff]
    %v219 = vld [vmem:[#allocation2 + $0x498] sm:$0xff]
    %v220 = vld [vmem:[#allocation2 + $0x4a0] sm:$0xff]
    %v221 = vld [vmem:[#allocation2 + $0x4a8] sm:$0xff]
    %v222 = vld [vmem:[#allocation2 + $0x4b0] sm:$0xff]
    %v223 = vld [vmem:[#allocation2 + $0x4b8] sm:$0xff]
    %v224 = vld [vmem:[#allocation2 + $0x4c0] sm:$0xff]
    %v225 = vld [vmem:[#allocation2 + $0x4c8] sm:$0xff]
    %v226 = vld [vmem:[#allocation2 + $0x4d0] sm:$0xff]
    %v227 = vld [vmem:[#allocation2 + $0x4d8] sm:$0xff]
    %v228 = vld [vmem:[#allocation2 + $0x4e0] sm:$0xff]
    %v229 = vld [vmem:[#allocation2 + $0x4e8] sm:$0xff]
    %v230 = vld [vmem:[#allocation2 + $0x4f0] sm:$0xff]
    %v231 = vld [vmem:[#allocation2 + $0x4f8] sm:$0xff]
    %v232 = vld [vmem:[%s2] sm:$0xff]
    %v233 = vld [vmem:[%s2 + $0x8] sm:$0xff]
    %v236 = vlaneseq
    %v237 = vshrl.u32 %v236, 7
    %v238 = vsub.s32 0, %v237
    %v239 = vrot.slane %v232, %v238
    %v240 = vlaneseq
    %v241 = vshrl.u32 %v240, 7
    %v242 = vsub.s32 1, %v241
    %v243 = vrot.slane %v232, %v242
    %v244 = vlaneseq
    %v245 = vshrl.u32 %v244, 7
    %v246 = vsub.s32 2, %v245
    %v247 = vrot.slane %v232, %v246
    %v248 = vlaneseq
    %v249 = vshrl.u32 %v248, 7
    %v250 = vsub.s32 3, %v249
    %v251 = vrot.slane %v232, %v250
    %v252 = vlaneseq
    %v253 = vshrl.u32 %v252, 7
    %v254 = vsub.s32 4, %v253
    %v255 = vrot.slane %v232, %v254
    %v256 = vlaneseq
    %v257 = vshrl.u32 %v256, 7
    %v258 = vsub.s32 5, %v257
    %v259 = vrot.slane %v232, %v258
    %v260 = vlaneseq
    %v261 = vshrl.u32 %v260, 7
    %v262 = vsub.s32 6, %v261
    %v263 = vrot.slane %v232, %v262
    %v264 = vlaneseq
    %v265 = vshrl.u32 %v264, 7
    %v266 = vsub.s32 7, %v265
    %v267 = vrot.slane %v232, %v266
    %v268 = vlaneseq
    %v269 = vshrl.u32 %v268, 7
    %v270 = vsub.s32 0, %v269
    %v271 = vrot.slane %v233, %v270
    %v272 = vlaneseq
    %v273 = vshrl.u32 %v272, 7
    %v274 = vsub.s32 1, %v273
    %v275 = vrot.slane %v233, %v274
    %v276 = vlaneseq
    %v277 = vshrl.u32 %v276, 7
    %v278 = vsub.s32 2, %v277
    %v279 = vrot.slane %v233, %v278
    %v280 = vlaneseq
    %v281 = vshrl.u32 %v280, 7
    %v282 = vsub.s32 3, %v281
    %v283 = vrot.slane %v233, %v282
    %v284 = vlaneseq
    %v285 = vshrl.u32 %v284, 7
    %v286 = vsub.s32 4, %v285
    %v287 = vrot.slane %v233, %v286
    %v288 = vlaneseq
    %v289 = vshrl.u32 %v288, 7
    %v290 = vsub.s32 5, %v289
    %v291 = vrot.slane %v233, %v290
    %v292 = vlaneseq
    %v293 = vshrl.u32 %v292, 7
    %v294 = vsub.s32 6, %v293
    %v295 = vrot.slane %v233, %v294
    %v296 = vlaneseq
    %v297 = vshrl.u32 %v296, 7
    %v298 = vsub.s32 7, %v297
    %v299 = vrot.slane %v233, %v298
    %v332 = vunpack.c.l.b16 %v56
    %v333 = vunpack.c.h.b16 %v56
    %v334 = vunpack.c.l.b16 %v57
    %v335 = vunpack.c.h.b16 %v57
    %v336 = vunpack.c.l.b16 %v58
    %v337 = vunpack.c.h.b16 %v58
    %v338 = vunpack.c.l.b16 %v59
    %v339 = vunpack.c.h.b16 %v59
    %v340 = vunpack.c.l.b16 %v60
    %v341 = vunpack.c.h.b16 %v60
    %v342 = vunpack.c.l.b16 %v61
    %v343 = vunpack.c.h.b16 %v61
    %v344 = vunpack.c.l.b16 %v62
    %v345 = vunpack.c.h.b16 %v62
    %v346 = vunpack.c.l.b16 %v63
    %v347 = vunpack.c.h.b16 %v63
    %v348 = vunpack.c.l.b16 %v64
    %v349 = vunpack.c.h.b16 %v64
    %v350 = vunpack.c.l.b16 %v65
    %v351 = vunpack.c.h.b16 %v65
    %v352 = vunpack.c.l.b16 %v66
    %v353 = vunpack.c.h.b16 %v66
    %v354 = vunpack.c.l.b16 %v67
    %v355 = vunpack.c.h.b16 %v67
    %v356 = vunpack.c.l.b16 %v68
    %v357 = vunpack.c.h.b16 %v68
    %v358 = vunpack.c.l.b16 %v69
    %v359 = vunpack.c.h.b16 %v69
    %v360 = vunpack.c.l.b16 %v70
    %v361 = vunpack.c.h.b16 %v70
    %v362 = vunpack.c.l.b16 %v71
    %v363 = vunpack.c.h.b16 %v71
    %v364 = vpack.c.b16 %v334, %v332
    %v365 = vpack.c.b16 %v335, %v333
    %v366 = vpack.c.b16 %v338, %v336
    %v367 = vpack.c.b16 %v339, %v337
    %v368 = vpack.c.b16 %v342, %v340
    %v369 = vpack.c.b16 %v343, %v341
    %v370 = vpack.c.b16 %v346, %v344
    %v371 = vpack.c.b16 %v347, %v345
    %v372 = vpack.c.b16 %v350, %v348
    %v373 = vpack.c.b16 %v351, %v349
    %v374 = vpack.c.b16 %v354, %v352
    %v375 = vpack.c.b16 %v355, %v353
    %v376 = vpack.c.b16 %v358, %v356
    %v377 = vpack.c.b16 %v359, %v357
    %v378 = vpack.c.b16 %v362, %v360
    %v379 = vpack.c.b16 %v363, %v361
    %v548 = vunpack.c.l.b16 %v72
    %v549 = vunpack.c.h.b16 %v72
    %v550 = vunpack.c.l.b16 %v73
    %v551 = vunpack.c.h.b16 %v73
    %v552 = vunpack.c.l.b16 %v74
    %v553 = vunpack.c.h.b16 %v74
    %v554 = vunpack.c.l.b16 %v75
    %v555 = vunpack.c.h.b16 %v75
    %v556 = vunpack.c.l.b16 %v76
    %v557 = vunpack.c.h.b16 %v76
    %v558 = vunpack.c.l.b16 %v77
    %v559 = vunpack.c.h.b16 %v77
    %v560 = vunpack.c.l.b16 %v78
    %v561 = vunpack.c.h.b16 %v78
    %v562 = vunpack.c.l.b16 %v79
    %v563 = vunpack.c.h.b16 %v79
    %v564 = vunpack.c.l.b16 %v80
    %v565 = vunpack.c.h.b16 %v80
    %v566 = vunpack.c.l.b16 %v81
    %v567 = vunpack.c.h.b16 %v81
    %v568 = vunpack.c.l.b16 %v82
    %v569 = vunpack.c.h.b16 %v82
    %v570 = vunpack.c.l.b16 %v83
    %v571 = vunpack.c.h.b16 %v83
    %v572 = vunpack.c.l.b16 %v84
    %v573 = vunpack.c.h.b16 %v84
    %v574 = vunpack.c.l.b16 %v85
    %v575 = vunpack.c.h.b16 %v85
    %v576 = vunpack.c.l.b16 %v86
    %v577 = vunpack.c.h.b16 %v86
    %v578 = vunpack.c.l.b16 %v87
    %v579 = vunpack.c.h.b16 %v87
    %v580 = vunpack.c.l.b16 %v88
    %v581 = vunpack.c.h.b16 %v88
    %v582 = vunpack.c.l.b16 %v89
    %v583 = vunpack.c.h.b16 %v89
    %v584 = vunpack.c.l.b16 %v90
    %v585 = vunpack.c.h.b16 %v90
    %v586 = vunpack.c.l.b16 %v91
    %v587 = vunpack.c.h.b16 %v91
    %v588 = vunpack.c.l.b16 %v92
    %v589 = vunpack.c.h.b16 %v92
    %v590 = vunpack.c.l.b16 %v93
    %v591 = vunpack.c.h.b16 %v93
    %v592 = vunpack.c.l.b16 %v94
    %v593 = vunpack.c.h.b16 %v94
    %v594 = vunpack.c.l.b16 %v95
    %v595 = vunpack.c.h.b16 %v95
    %v596 = vunpack.c.l.b16 %v96
    %v597 = vunpack.c.h.b16 %v96
    %v598 = vunpack.c.l.b16 %v97
    %v599 = vunpack.c.h.b16 %v97
    %v600 = vunpack.c.l.b16 %v98
    %v601 = vunpack.c.h.b16 %v98
    %v602 = vunpack.c.l.b16 %v99
    %v603 = vunpack.c.h.b16 %v99
    %v604 = vunpack.c.l.b16 %v100
    %v605 = vunpack.c.h.b16 %v100
    %v606 = vunpack.c.l.b16 %v101
    %v607 = vunpack.c.h.b16 %v101
    %v608 = vunpack.c.l.b16 %v102
    %v609 = vunpack.c.h.b16 %v102
    %v610 = vunpack.c.l.b16 %v103
    %v611 = vunpack.c.h.b16 %v103
    %v612 = vunpack.c.l.b16 %v104
    %v613 = vunpack.c.h.b16 %v104
    %v614 = vunpack.c.l.b16 %v105
    %v615 = vunpack.c.h.b16 %v105
    %v616 = vunpack.c.l.b16 %v106
    %v617 = vunpack.c.h.b16 %v106
    %v618 = vunpack.c.l.b16 %v107
    %v619 = vunpack.c.h.b16 %v107
    %v620 = vunpack.c.l.b16 %v108
    %v621 = vunpack.c.h.b16 %v108
    %v622 = vunpack.c.l.b16 %v109
    %v623 = vunpack.c.h.b16 %v109
    %v624 = vunpack.c.l.b16 %v110
    %v625 = vunpack.c.h.b16 %v110
    %v626 = vunpack.c.l.b16 %v111
    %v627 = vunpack.c.h.b16 %v111
    %v628 = vunpack.c.l.b16 %v112
    %v629 = vunpack.c.h.b16 %v112
    %v630 = vunpack.c.l.b16 %v113
    %v631 = vunpack.c.h.b16 %v113
    %v632 = vunpack.c.l.b16 %v114
    %v633 = vunpack.c.h.b16 %v114
    %v634 = vunpack.c.l.b16 %v115
    %v635 = vunpack.c.h.b16 %v115
    %v636 = vunpack.c.l.b16 %v116
    %v637 = vunpack.c.h.b16 %v116
    %v638 = vunpack.c.l.b16 %v117
    %v639 = vunpack.c.h.b16 %v117
    %v640 = vunpack.c.l.b16 %v118
    %v641 = vunpack.c.h.b16 %v118
    %v642 = vunpack.c.l.b16 %v119
    %v643 = vunpack.c.h.b16 %v119
    %v644 = vunpack.c.l.b16 %v120
    %v645 = vunpack.c.h.b16 %v120
    %v646 = vunpack.c.l.b16 %v121
    %v647 = vunpack.c.h.b16 %v121
    %v648 = vunpack.c.l.b16 %v122
    %v649 = vunpack.c.h.b16 %v122
    %v650 = vunpack.c.l.b16 %v123
    %v651 = vunpack.c.h.b16 %v123
    %v652 = vunpack.c.l.b16 %v124
    %v653 = vunpack.c.h.b16 %v124
    %v654 = vunpack.c.l.b16 %v125
    %v655 = vunpack.c.h.b16 %v125
    %v656 = vunpack.c.l.b16 %v126
    %v657 = vunpack.c.h.b16 %v126
    %v658 = vunpack.c.l.b16 %v127
    %v659 = vunpack.c.h.b16 %v127
    %v660 = vunpack.c.l.b16 %v128
    %v661 = vunpack.c.h.b16 %v128
    %v662 = vunpack.c.l.b16 %v129
    %v663 = vunpack.c.h.b16 %v129
    %v664 = vunpack.c.l.b16 %v130
    %v665 = vunpack.c.h.b16 %v130
    %v666 = vunpack.c.l.b16 %v131
    %v667 = vunpack.c.h.b16 %v131
    %v668 = vunpack.c.l.b16 %v132
    %v669 = vunpack.c.h.b16 %v132
    %v670 = vunpack.c.l.b16 %v133
    %v671 = vunpack.c.h.b16 %v133
    %v672 = vunpack.c.l.b16 %v134
    %v673 = vunpack.c.h.b16 %v134
    %v674 = vunpack.c.l.b16 %v135
    %v675 = vunpack.c.h.b16 %v135
    %v676 = vunpack.c.l.b16 %v136
    %v677 = vunpack.c.h.b16 %v136
    %v678 = vunpack.c.l.b16 %v137
    %v679 = vunpack.c.h.b16 %v137
    %v680 = vunpack.c.l.b16 %v138
    %v681 = vunpack.c.h.b16 %v138
    %v682 = vunpack.c.l.b16 %v139
    %v683 = vunpack.c.h.b16 %v139
    %v684 = vunpack.c.l.b16 %v140
    %v685 = vunpack.c.h.b16 %v140
    %v686 = vunpack.c.l.b16 %v141
    %v687 = vunpack.c.h.b16 %v141
    %v688 = vunpack.c.l.b16 %v142
    %v689 = vunpack.c.h.b16 %v142
    %v690 = vunpack.c.l.b16 %v143
    %v691 = vunpack.c.h.b16 %v143
    %v692 = vunpack.c.l.b16 %v144
    %v693 = vunpack.c.h.b16 %v144
    %v694 = vunpack.c.l.b16 %v145
    %v695 = vunpack.c.h.b16 %v145
    %v696 = vunpack.c.l.b16 %v146
    %v697 = vunpack.c.h.b16 %v146
    %v698 = vunpack.c.l.b16 %v147
    %v699 = vunpack.c.h.b16 %v147
    %v700 = vunpack.c.l.b16 %v148
    %v701 = vunpack.c.h.b16 %v148
    %v702 = vunpack.c.l.b16 %v149
    %v703 = vunpack.c.h.b16 %v149
    %v704 = vunpack.c.l.b16 %v150
    %v705 = vunpack.c.h.b16 %v150
    %v706 = vunpack.c.l.b16 %v151
    %v707 = vunpack.c.h.b16 %v151
    %v708 = vunpack.c.l.b16 %v152
    %v709 = vunpack.c.h.b16 %v152
    %v710 = vunpack.c.l.b16 %v153
    %v711 = vunpack.c.h.b16 %v153
    %v712 = vunpack.c.l.b16 %v154
    %v713 = vunpack.c.h.b16 %v154
    %v714 = vunpack.c.l.b16 %v155
    %v715 = vunpack.c.h.b16 %v155
    %v716 = vunpack.c.l.b16 %v156
    %v717 = vunpack.c.h.b16 %v156
    %v718 = vunpack.c.l.b16 %v157
    %v719 = vunpack.c.h.b16 %v157
    %v720 = vunpack.c.l.b16 %v158
    %v721 = vunpack.c.h.b16 %v158
    %v722 = vunpack.c.l.b16 %v159
    %v723 = vunpack.c.h.b16 %v159
    %v724 = vunpack.c.l.b16 %v160
    %v725 = vunpack.c.h.b16 %v160
    %v726 = vunpack.c.l.b16 %v161
    %v727 = vunpack.c.h.b16 %v161
    %v728 = vunpack.c.l.b16 %v162
    %v729 = vunpack.c.h.b16 %v162
    %v730 = vunpack.c.l.b16 %v163
    %v731 = vunpack.c.h.b16 %v163
    %v732 = vunpack.c.l.b16 %v164
    %v733 = vunpack.c.h.b16 %v164
    %v734 = vunpack.c.l.b16 %v165
    %v735 = vunpack.c.h.b16 %v165
    %v736 = vunpack.c.l.b16 %v166
    %v737 = vunpack.c.h.b16 %v166
    %v738 = vunpack.c.l.b16 %v167
    %v739 = vunpack.c.h.b16 %v167
    %v740 = vunpack.c.l.b16 %v168
    %v741 = vunpack.c.h.b16 %v168
    %v742 = vunpack.c.l.b16 %v169
    %v743 = vunpack.c.h.b16 %v169
    %v744 = vunpack.c.l.b16 %v170
    %v745 = vunpack.c.h.b16 %v170
    %v746 = vunpack.c.l.b16 %v171
    %v747 = vunpack.c.h.b16 %v171
    %v748 = vunpack.c.l.b16 %v172
    %v749 = vunpack.c.h.b16 %v172
    %v750 = vunpack.c.l.b16 %v173
    %v751 = vunpack.c.h.b16 %v173
    %v752 = vunpack.c.l.b16 %v174
    %v753 = vunpack.c.h.b16 %v174
    %v754 = vunpack.c.l.b16 %v175
    %v755 = vunpack.c.h.b16 %v175
    %v756 = vunpack.c.l.b16 %v176
    %v757 = vunpack.c.h.b16 %v176
    %v758 = vunpack.c.l.b16 %v177
    %v759 = vunpack.c.h.b16 %v177
    %v760 = vunpack.c.l.b16 %v178
    %v761 = vunpack.c.h.b16 %v178
    %v762 = vunpack.c.l.b16 %v179
    %v763 = vunpack.c.h.b16 %v179
    %v764 = vunpack.c.l.b16 %v180
    %v765 = vunpack.c.h.b16 %v180
    %v766 = vunpack.c.l.b16 %v181
    %v767 = vunpack.c.h.b16 %v181
    %v768 = vunpack.c.l.b16 %v182
    %v769 = vunpack.c.h.b16 %v182
    %v770 = vunpack.c.l.b16 %v183
    %v771 = vunpack.c.h.b16 %v183
    %v772 = vunpack.c.l.b16 %v184
    %v773 = vunpack.c.h.b16 %v184
    %v774 = vunpack.c.l.b16 %v185
    %v775 = vunpack.c.h.b16 %v185
    %v776 = vunpack.c.l.b16 %v186
    %v777 = vunpack.c.h.b16 %v186
    %v778 = vunpack.c.l.b16 %v187
    %v779 = vunpack.c.h.b16 %v187
    %v780 = vunpack.c.l.b16 %v188
    %v781 = vunpack.c.h.b16 %v188
    %v782 = vunpack.c.l.b16 %v189
    %v783 = vunpack.c.h.b16 %v189
    %v784 = vunpack.c.l.b16 %v190
    %v785 = vunpack.c.h.b16 %v190
    %v786 = vunpack.c.l.b16 %v191
    %v787 = vunpack.c.h.b16 %v191
    %v788 = vunpack.c.l.b16 %v192
    %v789 = vunpack.c.h.b16 %v192
    %v790 = vunpack.c.l.b16 %v193
    %v791 = vunpack.c.h.b16 %v193
    %v792 = vunpack.c.l.b16 %v194
    %v793 = vunpack.c.h.b16 %v194
    %v794 = vunpack.c.l.b16 %v195
    %v795 = vunpack.c.h.b16 %v195
    %v796 = vunpack.c.l.b16 %v196
    %v797 = vunpack.c.h.b16 %v196
    %v798 = vunpack.c.l.b16 %v197
    %v799 = vunpack.c.h.b16 %v197
    %v800 = vunpack.c.l.b16 %v198
    %v801 = vunpack.c.h.b16 %v198
    %v802 = vunpack.c.l.b16 %v199
    %v803 = vunpack.c.h.b16 %v199
    %v804 = vunpack.c.l.b16 %v200
    %v805 = vunpack.c.h.b16 %v200
    %v806 = vunpack.c.l.b16 %v201
    %v807 = vunpack.c.h.b16 %v201
    %v808 = vunpack.c.l.b16 %v202
    %v809 = vunpack.c.h.b16 %v202
    %v810 = vunpack.c.l.b16 %v203
    %v811 = vunpack.c.h.b16 %v203
    %v812 = vunpack.c.l.b16 %v204
    %v813 = vunpack.c.h.b16 %v204
    %v814 = vunpack.c.l.b16 %v205
    %v815 = vunpack.c.h.b16 %v205
    %v816 = vunpack.c.l.b16 %v206
    %v817 = vunpack.c.h.b16 %v206
    %v818 = vunpack.c.l.b16 %v207
    %v819 = vunpack.c.h.b16 %v207
    %v820 = vunpack.c.l.b16 %v208
    %v821 = vunpack.c.h.b16 %v208
    %v822 = vunpack.c.l.b16 %v209
    %v823 = vunpack.c.h.b16 %v209
    %v824 = vunpack.c.l.b16 %v210
    %v825 = vunpack.c.h.b16 %v210
    %v826 = vunpack.c.l.b16 %v211
    %v827 = vunpack.c.h.b16 %v211
    %v828 = vunpack.c.l.b16 %v212
    %v829 = vunpack.c.h.b16 %v212
    %v830 = vunpack.c.l.b16 %v213
    %v831 = vunpack.c.h.b16 %v213
    %v832 = vunpack.c.l.b16 %v214
    %v833 = vunpack.c.h.b16 %v214
    %v834 = vunpack.c.l.b16 %v215
    %v835 = vunpack.c.h.b16 %v215
    %v836 = vunpack.c.l.b16 %v216
    %v837 = vunpack.c.h.b16 %v216
    %v838 = vunpack.c.l.b16 %v217
    %v839 = vunpack.c.h.b16 %v217
    %v840 = vunpack.c.l.b16 %v218
    %v841 = vunpack.c.h.b16 %v218
    %v842 = vunpack.c.l.b16 %v219
    %v843 = vunpack.c.h.b16 %v219
    %v844 = vunpack.c.l.b16 %v220
    %v845 = vunpack.c.h.b16 %v220
    %v846 = vunpack.c.l.b16 %v221
    %v847 = vunpack.c.h.b16 %v221
    %v848 = vunpack.c.l.b16 %v222
    %v849 = vunpack.c.h.b16 %v222
    %v850 = vunpack.c.l.b16 %v223
    %v851 = vunpack.c.h.b16 %v223
    %v852 = vunpack.c.l.b16 %v224
    %v853 = vunpack.c.h.b16 %v224
    %v854 = vunpack.c.l.b16 %v225
    %v855 = vunpack.c.h.b16 %v225
    %v856 = vunpack.c.l.b16 %v226
    %v857 = vunpack.c.h.b16 %v226
    %v858 = vunpack.c.l.b16 %v227
    %v859 = vunpack.c.h.b16 %v227
    %v860 = vunpack.c.l.b16 %v228
    %v861 = vunpack.c.h.b16 %v228
    %v862 = vunpack.c.l.b16 %v229
    %v863 = vunpack.c.h.b16 %v229
    %v864 = vunpack.c.l.b16 %v230
    %v865 = vunpack.c.h.b16 %v230
    %v866 = vunpack.c.l.b16 %v231
    %v867 = vunpack.c.h.b16 %v231
    %v868 = vpack.c.b16 %v564, %v548
    %v869 = vpack.c.b16 %v565, %v549
    %v870 = vpack.c.b16 %v566, %v550
    %v871 = vpack.c.b16 %v567, %v551
    %v872 = vpack.c.b16 %v568, %v552
    %v873 = vpack.c.b16 %v569, %v553
    %v874 = vpack.c.b16 %v570, %v554
    %v875 = vpack.c.b16 %v571, %v555
    %v876 = vpack.c.b16 %v572, %v556
    %v877 = vpack.c.b16 %v573, %v557
    %v878 = vpack.c.b16 %v574, %v558
    %v879 = vpack.c.b16 %v575, %v559
    %v880 = vpack.c.b16 %v576, %v560
    %v881 = vpack.c.b16 %v577, %v561
    %v882 = vpack.c.b16 %v578, %v562
    %v883 = vpack.c.b16 %v579, %v563
    %v884 = vpack.c.b16 %v596, %v580
    %v885 = vpack.c.b16 %v597, %v581
    %v886 = vpack.c.b16 %v598, %v582
    %v887 = vpack.c.b16 %v599, %v583
    %v888 = vpack.c.b16 %v600, %v584
    %v889 = vpack.c.b16 %v601, %v585
    %v890 = vpack.c.b16 %v602, %v586
    %v891 = vpack.c.b16 %v603, %v587
    %v892 = vpack.c.b16 %v604, %v588
    %v893 = vpack.c.b16 %v605, %v589
    %v894 = vpack.c.b16 %v606, %v590
    %v895 = vpack.c.b16 %v607, %v591
    %v896 = vpack.c.b16 %v608, %v592
    %v897 = vpack.c.b16 %v609, %v593
    %v898 = vpack.c.b16 %v610, %v594
    %v899 = vpack.c.b16 %v611, %v595
    %v900 = vpack.c.b16 %v628, %v612
    %v901 = vpack.c.b16 %v629, %v613
    %v902 = vpack.c.b16 %v630, %v614
    %v903 = vpack.c.b16 %v631, %v615
    %v904 = vpack.c.b16 %v632, %v616
    %v905 = vpack.c.b16 %v633, %v617
    %v906 = vpack.c.b16 %v634, %v618
    %v907 = vpack.c.b16 %v635, %v619
    %v908 = vpack.c.b16 %v636, %v620
    %v909 = vpack.c.b16 %v637, %v621
    %v910 = vpack.c.b16 %v638, %v622
    %v911 = vpack.c.b16 %v639, %v623
    %v912 = vpack.c.b16 %v640, %v624
    %v913 = vpack.c.b16 %v641, %v625
    %v914 = vpack.c.b16 %v642, %v626
    %v915 = vpack.c.b16 %v643, %v627
    %v916 = vpack.c.b16 %v660, %v644
    %v917 = vpack.c.b16 %v661, %v645
    %v918 = vpack.c.b16 %v662, %v646
    %v919 = vpack.c.b16 %v663, %v647
    %v920 = vpack.c.b16 %v664, %v648
    %v921 = vpack.c.b16 %v665, %v649
    %v922 = vpack.c.b16 %v666, %v650
    %v923 = vpack.c.b16 %v667, %v651
    %v924 = vpack.c.b16 %v668, %v652
    %v925 = vpack.c.b16 %v669, %v653
    %v926 = vpack.c.b16 %v670, %v654
    %v927 = vpack.c.b16 %v671, %v655
    %v928 = vpack.c.b16 %v672, %v656
    %v929 = vpack.c.b16 %v673, %v657
    %v930 = vpack.c.b16 %v674, %v658
    %v931 = vpack.c.b16 %v675, %v659
    %v932 = vpack.c.b16 %v692, %v676
    %v933 = vpack.c.b16 %v693, %v677
    %v934 = vpack.c.b16 %v694, %v678
    %v935 = vpack.c.b16 %v695, %v679
    %v936 = vpack.c.b16 %v696, %v680
    %v937 = vpack.c.b16 %v697, %v681
    %v938 = vpack.c.b16 %v698, %v682
    %v939 = vpack.c.b16 %v699, %v683
    %v940 = vpack.c.b16 %v700, %v684
    %v941 = vpack.c.b16 %v701, %v685
    %v942 = vpack.c.b16 %v702, %v686
    %v943 = vpack.c.b16 %v703, %v687
    %v944 = vpack.c.b16 %v704, %v688
    %v945 = vpack.c.b16 %v705, %v689
    %v946 = vpack.c.b16 %v706, %v690
    %v947 = vpack.c.b16 %v707, %v691
    %v948 = vpack.c.b16 %v724, %v708
    %v949 = vpack.c.b16 %v725, %v709
    %v950 = vpack.c.b16 %v726, %v710
    %v951 = vpack.c.b16 %v727, %v711
    %v952 = vpack.c.b16 %v728, %v712
    %v953 = vpack.c.b16 %v729, %v713
    %v954 = vpack.c.b16 %v730, %v714
    %v955 = vpack.c.b16 %v731, %v715
    %v956 = vpack.c.b16 %v732, %v716
    %v957 = vpack.c.b16 %v733, %v717
    %v958 = vpack.c.b16 %v734, %v718
    %v959 = vpack.c.b16 %v735, %v719
    %v960 = vpack.c.b16 %v736, %v720
    %v961 = vpack.c.b16 %v737, %v721
    %v962 = vpack.c.b16 %v738, %v722
    %v963 = vpack.c.b16 %v739, %v723
    %v964 = vpack.c.b16 %v756, %v740
    %v965 = vpack.c.b16 %v757, %v741
    %v966 = vpack.c.b16 %v758, %v742
    %v967 = vpack.c.b16 %v759, %v743
    %v968 = vpack.c.b16 %v760, %v744
    %v969 = vpack.c.b16 %v761, %v745
    %v970 = vpack.c.b16 %v762, %v746
    %v971 = vpack.c.b16 %v763, %v747
    %v972 = vpack.c.b16 %v764, %v748
    %v973 = vpack.c.b16 %v765, %v749
    %v974 = vpack.c.b16 %v766, %v750
    %v975 = vpack.c.b16 %v767, %v751
    %v976 = vpack.c.b16 %v768, %v752
    %v977 = vpack.c.b16 %v769, %v753
    %v978 = vpack.c.b16 %v770, %v754
    %v979 = vpack.c.b16 %v771, %v755
    %v980 = vpack.c.b16 %v788, %v772
    %v981 = vpack.c.b16 %v789, %v773
    %v982 = vpack.c.b16 %v790, %v774
    %v983 = vpack.c.b16 %v791, %v775
    %v984 = vpack.c.b16 %v792, %v776
    %v985 = vpack.c.b16 %v793, %v777
    %v986 = vpack.c.b16 %v794, %v778
    %v987 = vpack.c.b16 %v795, %v779
    %v988 = vpack.c.b16 %v796, %v780
    %v989 = vpack.c.b16 %v797, %v781
    %v990 = vpack.c.b16 %v798, %v782
    %v991 = vpack.c.b16 %v799, %v783
    %v992 = vpack.c.b16 %v800, %v784
    %v993 = vpack.c.b16 %v801, %v785
    %v994 = vpack.c.b16 %v802, %v786
    %v995 = vpack.c.b16 %v803, %v787
    %v996 = vpack.c.b16 %v820, %v804
    %v997 = vpack.c.b16 %v821, %v805
    %v998 = vpack.c.b16 %v822, %v806
    %v999 = vpack.c.b16 %v823, %v807
    %v1000 = vpack.c.b16 %v824, %v808
    %v1001 = vpack.c.b16 %v825, %v809
    %v1002 = vpack.c.b16 %v826, %v810
    %v1003 = vpack.c.b16 %v827, %v811
    %v1004 = vpack.c.b16 %v828, %v812
    %v1005 = vpack.c.b16 %v829, %v813
    %v1006 = vpack.c.b16 %v830, %v814
    %v1007 = vpack.c.b16 %v831, %v815
    %v1008 = vpack.c.b16 %v832, %v816
    %v1009 = vpack.c.b16 %v833, %v817
    %v1010 = vpack.c.b16 %v834, %v818
    %v1011 = vpack.c.b16 %v835, %v819
    %v1012 = vpack.c.b16 %v852, %v836
    %v1013 = vpack.c.b16 %v853, %v837
    %v1014 = vpack.c.b16 %v854, %v838
    %v1015 = vpack.c.b16 %v855, %v839
    %v1016 = vpack.c.b16 %v856, %v840
    %v1017 = vpack.c.b16 %v857, %v841
    %v1018 = vpack.c.b16 %v858, %v842
    %v1019 = vpack.c.b16 %v859, %v843
    %v1020 = vpack.c.b16 %v860, %v844
    %v1021 = vpack.c.b16 %v861, %v845
    %v1022 = vpack.c.b16 %v862, %v846
    %v1023 = vpack.c.b16 %v863, %v847
    %v1024 = vpack.c.b16 %v864, %v848
    %v1025 = vpack.c.b16 %v865, %v849
    %v1026 = vpack.c.b16 %v866, %v850
    %v1027 = vpack.c.b16 %v867, %v851
    %vm1188 = vcmask 261120
    %v1190 = vsel %vm1188, %v365, 0
    %v1193 = vsel %vm1188, %v367, 0
    %v1196 = vsel %vm1188, %v369, 0
    %v1199 = vsel %vm1188, %v371, 0
    %v1202 = vsel %vm1188, %v373, 0
    %v1205 = vsel %vm1188, %v375, 0
    %v1208 = vsel %vm1188, %v377, 0
    %v1211 = vsel %vm1188, %v379, 0
    %1213 = vmatprep.subr.bf16.mxu0 %v869
    %1214 = vmatpush1.bf16.msra.mxu0 %v868
    %1215 = vmatprep.subr.bf16.mxu0 %v885
    %1216 = vmatpush1.bf16.msra.mxu0 %v884
    %1217 = vmatprep.subr.bf16.mxu0 %v901
    %1218 = vmatpush1.bf16.msra.mxu0 %v900
    %1219 = vmatprep.subr.bf16.mxu0 %v917
    %1220 = vmatpush1.bf16.msra.mxu0 %v916
    %1221 = vmatprep.subr.bf16.mxu0 %v933
    %1222 = vmatpush1.bf16.msra.mxu0 %v932
    %1223 = vmatprep.subr.bf16.mxu0 %v949
    %1224 = vmatpush1.bf16.msra.mxu0 %v948
    %1225 = vmatprep.subr.bf16.mxu0 %v965
    %1226 = vmatpush1.bf16.msra.mxu0 %v964
    %1227 = vmatprep.subr.bf16.mxu0 %v981
    %1228 = vmatpush1.bf16.msra.mxu0 %v980
    %1229 = vmatprep.subr.bf16.mxu0 %v997
    %1230 = vmatpush1.bf16.msra.mxu0 %v996
    %1231 = vmatprep.subr.bf16.mxu0 %v1013
    %1232 = vmatpush1.bf16.msra.mxu0 %v1012
    %1233 = vmatprep.subr.bf16.mxu0 0
    %1234 = vmatpush1.bf16.msra.mxu0 0
    %1235 = vmatprep.subr.bf16.mxu0 0
    %1236 = vmatpush1.bf16.msra.mxu0 0
    %1237 = vmatprep.subr.bf16.mxu0 0
    %1238 = vmatpush1.bf16.msra.mxu0 0
    %1239 = vmatprep.subr.bf16.mxu0 0
    %1240 = vmatpush1.bf16.msra.mxu0 0
    %1241 = vmatprep.subr.bf16.mxu0 0
    %1242 = vmatpush1.bf16.msra.mxu0 0
    %1243 = vmatprep.subr.bf16.mxu0 0
    %1244 = vmatpush1.bf16.msra.mxu0 0
    %1245 = vmatprep.mubr.bf16.mxu0 %v1190
    %1246 = vmatmul.mubr.bf16.gmra.mrb[0].mxu0 %v364
    %v1247 = vpop.f32.mrb[0].mxu0
    %v1248 = vadd.f32 %v239, %v1247
    %v1249 = vpop.f32.mrb[0].mxu0
    %v1250 = vadd.f32 %v243, %v1249
    %v1251 = vpop.f32.mrb[0].mxu0
    %v1252 = vadd.f32 %v239, %v1251
    %v1253 = vpop.f32.mrb[0].mxu0
    %v1254 = vadd.f32 %v243, %v1253
    %1255 = vmatprep.mubr.bf16.mxu0 %v1193
    %1256 = vmatmul.mubr.bf16.gmra.mrb[0].mxu0 %v366
    %v1257 = vpop.f32.mrb[0].mxu0
    %v1258 = vadd.f32 %v239, %v1257
    %v1259 = vpop.f32.mrb[0].mxu0
    %v1260 = vadd.f32 %v243, %v1259
    %v1261 = vpop.f32.mrb[0].mxu0
    %v1262 = vadd.f32 %v239, %v1261
    %v1263 = vpop.f32.mrb[0].mxu0
    %v1264 = vadd.f32 %v243, %v1263
    %1265 = vmatprep.mubr.bf16.mxu0 %v1196
    %1266 = vmatmul.mubr.bf16.gmra.mrb[0].mxu0 %v368
    %v1267 = vpop.f32.mrb[0].mxu0
    %v1268 = vadd.f32 %v239, %v1267
    %v1269 = vpop.f32.mrb[0].mxu0
    %v1270 = vadd.f32 %v243, %v1269
    %v1271 = vpop.f32.mrb[0].mxu0
    %v1272 = vadd.f32 %v239, %v1271
    %v1273 = vpop.f32.mrb[0].mxu0
    %v1274 = vadd.f32 %v243, %v1273
    %1275 = vmatprep.mubr.bf16.mxu0 %v1199
    %1276 = vmatmul.mubr.bf16.gmra.mrb[0].mxu0 %v370
    %v1277 = vpop.f32.mrb[0].mxu0
    %v1278 = vadd.f32 %v239, %v1277
    %v1279 = vpop.f32.mrb[0].mxu0
    %v1280 = vadd.f32 %v243, %v1279
    %v1281 = vpop.f32.mrb[0].mxu0
    %v1282 = vadd.f32 %v239, %v1281
    %v1283 = vpop.f32.mrb[0].mxu0
    %v1284 = vadd.f32 %v243, %v1283
    %1285 = vmatprep.mubr.bf16.mxu0 %v1202
    %1286 = vmatmul.mubr.bf16.gmra.mrb[0].mxu0 %v372
    %v1287 = vpop.f32.mrb[0].mxu0
    %v1288 = vadd.f32 %v239, %v1287
    %v1289 = vpop.f32.mrb[0].mxu0
    %v1290 = vadd.f32 %v243, %v1289
    %v1291 = vpop.f32.mrb[0].mxu0
    %v1292 = vadd.f32 %v239, %v1291
    %v1293 = vpop.f32.mrb[0].mxu0
    %v1294 = vadd.f32 %v243, %v1293
    %1295 = vmatprep.mubr.bf16.mxu0 %v1205
    %1296 = vmatmul.mubr.bf16.gmra.mrb[0].mxu0 %v374
    %v1297 = vpop.f32.mrb[0].mxu0
    %v1298 = vadd.f32 %v239, %v1297
    %v1299 = vpop.f32.mrb[0].mxu0
    %v1300 = vadd.f32 %v243, %v1299
    %v1301 = vpop.f32.mrb[0].mxu0
    %v1302 = vadd.f32 %v239, %v1301
    %v1303 = vpop.f32.mrb[0].mxu0
    %v1304 = vadd.f32 %v243, %v1303
    %1305 = vmatprep.mubr.bf16.mxu0 %v1208
    %1306 = vmatmul.mubr.bf16.gmra.mrb[0].mxu0 %v376
    %v1307 = vpop.f32.mrb[0].mxu0
    %v1308 = vadd.f32 %v239, %v1307
    %v1309 = vpop.f32.mrb[0].mxu0
    %v1310 = vadd.f32 %v243, %v1309
    %v1311 = vpop.f32.mrb[0].mxu0
    %v1312 = vadd.f32 %v239, %v1311
    %v1313 = vpop.f32.mrb[0].mxu0
    %v1314 = vadd.f32 %v243, %v1313
    %1315 = vmatprep.mubr.bf16.mxu0 %v1211
    %1316 = vmatmul.mubr.bf16.gmra.mrb[0].mxu0 %v378
    %v1317 = vpop.f32.mrb[0].mxu0
    %v1318 = vadd.f32 %v239, %v1317
    %v1319 = vpop.f32.mrb[0].mxu0
    %v1320 = vadd.f32 %v243, %v1319
    %v1321 = vpop.f32.mrb[0].mxu0
    %v1322 = vadd.f32 %v239, %v1321
    %v1323 = vpop.f32.mrb[0].mxu0
    %v1324 = vadd.f32 %v243, %v1323
    %1325 = vdwg.mxu0
    %1326 = vmatprep.subr.bf16.mxu0 %v871
    %1327 = vmatpush1.bf16.msra.mxu0 %v870
    %1328 = vmatprep.subr.bf16.mxu0 %v887
    %1329 = vmatpush1.bf16.msra.mxu0 %v886
    %1330 = vmatprep.subr.bf16.mxu0 %v903
    %1331 = vmatpush1.bf16.msra.mxu0 %v902
    %1332 = vmatprep.subr.bf16.mxu0 %v919
    %1333 = vmatpush1.bf16.msra.mxu0 %v918
    %1334 = vmatprep.subr.bf16.mxu0 %v935
    %1335 = vmatpush1.bf16.msra.mxu0 %v934
    %1336 = vmatprep.subr.bf16.mxu0 %v951
    %1337 = vmatpush1.bf16.msra.mxu0 %v950
    %1338 = vmatprep.subr.bf16.mxu0 %v967
    %1339 = vmatpush1.bf16.msra.mxu0 %v966
    %1340 = vmatprep.subr.bf16.mxu0 %v983
    %1341 = vmatpush1.bf16.msra.mxu0 %v982
    %1342 = vmatprep.subr.bf16.mxu0 %v999
    %1343 = vmatpush1.bf16.msra.mxu0 %v998
    %1344 = vmatprep.subr.bf16.mxu0 %v1015
    %1345 = vmatpush1.bf16.msra.mxu0 %v1014
    %1346 = vmatprep.subr.bf16.mxu0 0
    %1347 = vmatpush1.bf16.msra.mxu0 0
    %1348 = vmatprep.subr.bf16.mxu0 0
    %1349 = vmatpush1.bf16.msra.mxu0 0
    %1350 = vmatprep.subr.bf16.mxu0 0
    %1351 = vmatpush1.bf16.msra.mxu0 0
    %1352 = vmatprep.subr.bf16.mxu0 0
    %1353 = vmatpush1.bf16.msra.mxu0 0
    %1354 = vmatprep.subr.bf16.mxu0 0
    %1355 = vmatpush1.bf16.msra.mxu0 0
    %1356 = vmatprep.subr.bf16.mxu0 0
    %1357 = vmatpush1.bf16.msra.mxu0 0
    %1358 = vmatprep.mubr.bf16.mxu0 %v1190
    %1359 = vmatmul.mubr.bf16.gmra.mrb[0].mxu0 %v364
    %v1360 = vpop.f32.mrb[0].mxu0
    %v1361 = vadd.f32 %v247, %v1360
    %v1362 = vpop.f32.mrb[0].mxu0
    %v1363 = vadd.f32 %v251, %v1362
    %v1364 = vpop.f32.mrb[0].mxu0
    %v1365 = vadd.f32 %v247, %v1364
    %v1366 = vpop.f32.mrb[0].mxu0
    %v1367 = vadd.f32 %v251, %v1366
    %1368 = vmatprep.mubr.bf16.mxu0 %v1193
    %1369 = vmatmul.mubr.bf16.gmra.mrb[0].mxu0 %v366
    %v1370 = vpop.f32.mrb[0].mxu0
    %v1371 = vadd.f32 %v247, %v1370
    %v1372 = vpop.f32.mrb[0].mxu0
    %v1373 = vadd.f32 %v251, %v1372
    %v1374 = vpop.f32.mrb[0].mxu0
    %v1375 = vadd.f32 %v247, %v1374
    %v1376 = vpop.f32.mrb[0].mxu0
    %v1377 = vadd.f32 %v251, %v1376
    %1378 = vmatprep.mubr.bf16.mxu0 %v1196
    %1379 = vmatmul.mubr.bf16.gmra.mrb[0].mxu0 %v368
    %v1380 = vpop.f32.mrb[0].mxu0
    %v1381 = vadd.f32 %v247, %v1380
    %v1382 = vpop.f32.mrb[0].mxu0
    %v1383 = vadd.f32 %v251, %v1382
    %v1384 = vpop.f32.mrb[0].mxu0
    %v1385 = vadd.f32 %v247, %v1384
    %v1386 = vpop.f32.mrb[0].mxu0
    %v1387 = vadd.f32 %v251, %v1386
    %1388 = vmatprep.mubr.bf16.mxu0 %v1199
    %1389 = vmatmul.mubr.bf16.gmra.mrb[0].mxu0 %v370
    %v1390 = vpop.f32.mrb[0].mxu0
    %v1391 = vadd.f32 %v247, %v1390
    %v1392 = vpop.f32.mrb[0].mxu0
    %v1393 = vadd.f32 %v251, %v1392
    %v1394 = vpop.f32.mrb[0].mxu0
    %v1395 = vadd.f32 %v247, %v1394
    %v1396 = vpop.f32.mrb[0].mxu0
    %v1397 = vadd.f32 %v251, %v1396
    %1398 = vmatprep.mubr.bf16.mxu0 %v1202
    %1399 = vmatmul.mubr.bf16.gmra.mrb[0].mxu0 %v372
    %v1400 = vpop.f32.mrb[0].mxu0
    %v1401 = vadd.f32 %v247, %v1400
    %v1402 = vpop.f32.mrb[0].mxu0
    %v1403 = vadd.f32 %v251, %v1402
    %v1404 = vpop.f32.mrb[0].mxu0
    %v1405 = vadd.f32 %v247, %v1404
    %v1406 = vpop.f32.mrb[0].mxu0
    %v1407 = vadd.f32 %v251, %v1406
    %1408 = vmatprep.mubr.bf16.mxu0 %v1205
    %1409 = vmatmul.mubr.bf16.gmra.mrb[0].mxu0 %v374
    %v1410 = vpop.f32.mrb[0].mxu0
    %v1411 = vadd.f32 %v247, %v1410
    %v1412 = vpop.f32.mrb[0].mxu0
    %v1413 = vadd.f32 %v251, %v1412
    %v1414 = vpop.f32.mrb[0].mxu0
    %v1415 = vadd.f32 %v247, %v1414
    %v1416 = vpop.f32.mrb[0].mxu0
    %v1417 = vadd.f32 %v251, %v1416
    %1418 = vmatprep.mubr.bf16.mxu0 %v1208
    %1419 = vmatmul.mubr.bf16.gmra.mrb[0].mxu0 %v376
    %v1420 = vpop.f32.mrb[0].mxu0
    %v1421 = vadd.f32 %v247, %v1420
    %v1422 = vpop.f32.mrb[0].mxu0
    %v1423 = vadd.f32 %v251, %v1422
    %v1424 = vpop.f32.mrb[0].mxu0
    %v1425 = vadd.f32 %v247, %v1424
    %v1426 = vpop.f32.mrb[0].mxu0
    %v1427 = vadd.f32 %v251, %v1426
    %1428 = vmatprep.mubr.bf16.mxu0 %v1211
    %1429 = vmatmul.mubr.bf16.gmra.mrb[0].mxu0 %v378
    %v1430 = vpop.f32.mrb[0].mxu0
    %v1431 = vadd.f32 %v247, %v1430
    %v1432 = vpop.f32.mrb[0].mxu0
    %v1433 = vadd.f32 %v251, %v1432
    %v1434 = vpop.f32.mrb[0].mxu0
    %v1435 = vadd.f32 %v247, %v1434
    %v1436 = vpop.f32.mrb[0].mxu0
    %v1437 = vadd.f32 %v251, %v1436
    %1438 = vdwg.mxu0
    %1439 = vmatprep.subr.bf16.mxu0 %v873
    %1440 = vmatpush1.bf16.msra.mxu0 %v872
    %1441 = vmatprep.subr.bf16.mxu0 %v889
    %1442 = vmatpush1.bf16.msra.mxu0 %v888
    %1443 = vmatprep.subr.bf16.mxu0 %v905
    %1444 = vmatpush1.bf16.msra.mxu0 %v904
    %1445 = vmatprep.subr.bf16.mxu0 %v921
    %1446 = vmatpush1.bf16.msra.mxu0 %v920
    %1447 = vmatprep.subr.bf16.mxu0 %v937
    %1448 = vmatpush1.bf16.msra.mxu0 %v936
    %1449 = vmatprep.subr.bf16.mxu0 %v953
    %1450 = vmatpush1.bf16.msra.mxu0 %v952
    %1451 = vmatprep.subr.bf16.mxu0 %v969
    %1452 = vmatpush1.bf16.msra.mxu0 %v968
    %1453 = vmatprep.subr.bf16.mxu0 %v985
    %1454 = vmatpush1.bf16.msra.mxu0 %v984
    %1455 = vmatprep.subr.bf16.mxu0 %v1001
    %1456 = vmatpush1.bf16.msra.mxu0 %v1000
    %1457 = vmatprep.subr.bf16.mxu0 %v1017
    %1458 = vmatpush1.bf16.msra.mxu0 %v1016
    %1459 = vmatprep.subr.bf16.mxu0 0
    %1460 = vmatpush1.bf16.msra.mxu0 0
    %1461 = vmatprep.subr.bf16.mxu0 0
    %1462 = vmatpush1.bf16.msra.mxu0 0
    %1463 = vmatprep.subr.bf16.mxu0 0
    %1464 = vmatpush1.bf16.msra.mxu0 0
    %1465 = vmatprep.subr.bf16.mxu0 0
    %1466 = vmatpush1.bf16.msra.mxu0 0
    %1467 = vmatprep.subr.bf16.mxu0 0
    %1468 = vmatpush1.bf16.msra.mxu0 0
    %1469 = vmatprep.subr.bf16.mxu0 0
    %1470 = vmatpush1.bf16.msra.mxu0 0
    %1471 = vmatprep.mubr.bf16.mxu0 %v1190
    %1472 = vmatmul.mubr.bf16.gmra.mrb[0].mxu0 %v364
    %v1473 = vpop.f32.mrb[0].mxu0
    %v1474 = vadd.f32 %v255, %v1473
    %v1475 = vpop.f32.mrb[0].mxu0
    %v1476 = vadd.f32 %v259, %v1475
    %v1477 = vpop.f32.mrb[0].mxu0
    %v1478 = vadd.f32 %v255, %v1477
    %v1479 = vpop.f32.mrb[0].mxu0
    %v1480 = vadd.f32 %v259, %v1479
    %1481 = vmatprep.mubr.bf16.mxu0 %v1193
    %1482 = vmatmul.mubr.bf16.gmra.mrb[0].mxu0 %v366
    %v1483 = vpop.f32.mrb[0].mxu0
    %v1484 = vadd.f32 %v255, %v1483
    %v1485 = vpop.f32.mrb[0].mxu0
    %v1486 = vadd.f32 %v259, %v1485
    %v1487 = vpop.f32.mrb[0].mxu0
    %v1488 = vadd.f32 %v255, %v1487
    %v1489 = vpop.f32.mrb[0].mxu0
    %v1490 = vadd.f32 %v259, %v1489
    %1491 = vmatprep.mubr.bf16.mxu0 %v1196
    %1492 = vmatmul.mubr.bf16.gmra.mrb[0].mxu0 %v368
    %v1493 = vpop.f32.mrb[0].mxu0
    %v1494 = vadd.f32 %v255, %v1493
    %v1495 = vpop.f32.mrb[0].mxu0
    %v1496 = vadd.f32 %v259, %v1495
    %v1497 = vpop.f32.mrb[0].mxu0
    %v1498 = vadd.f32 %v255, %v1497
    %v1499 = vpop.f32.mrb[0].mxu0
    %v1500 = vadd.f32 %v259, %v1499
    %1501 = vmatprep.mubr.bf16.mxu0 %v1199
    %1502 = vmatmul.mubr.bf16.gmra.mrb[0].mxu0 %v370
    %v1503 = vpop.f32.mrb[0].mxu0
    %v1504 = vadd.f32 %v255, %v1503
    %v1505 = vpop.f32.mrb[0].mxu0
    %v1506 = vadd.f32 %v259, %v1505
    %v1507 = vpop.f32.mrb[0].mxu0
    %v1508 = vadd.f32 %v255, %v1507
    %v1509 = vpop.f32.mrb[0].mxu0
    %v1510 = vadd.f32 %v259, %v1509
    %1511 = vmatprep.mubr.bf16.mxu0 %v1202
    %1512 = vmatmul.mubr.bf16.gmra.mrb[0].mxu0 %v372
    %v1513 = vpop.f32.mrb[0].mxu0
    %v1514 = vadd.f32 %v255, %v1513
    %v1515 = vpop.f32.mrb[0].mxu0
    %v1516 = vadd.f32 %v259, %v1515
    %v1517 = vpop.f32.mrb[0].mxu0
    %v1518 = vadd.f32 %v255, %v1517
    %v1519 = vpop.f32.mrb[0].mxu0
    %v1520 = vadd.f32 %v259, %v1519
    %1521 = vmatprep.mubr.bf16.mxu0 %v1205
    %1522 = vmatmul.mubr.bf16.gmra.mrb[0].mxu0 %v374
    %v1523 = vpop.f32.mrb[0].mxu0
    %v1524 = vadd.f32 %v255, %v1523
    %v1525 = vpop.f32.mrb[0].mxu0
    %v1526 = vadd.f32 %v259, %v1525
    %v1527 = vpop.f32.mrb[0].mxu0
    %v1528 = vadd.f32 %v255, %v1527
    %v1529 = vpop.f32.mrb[0].mxu0
    %v1530 = vadd.f32 %v259, %v1529
    %1531 = vmatprep.mubr.bf16.mxu0 %v1208
    %1532 = vmatmul.mubr.bf16.gmra.mrb[0].mxu0 %v376
    %v1533 = vpop.f32.mrb[0].mxu0
    %v1534 = vadd.f32 %v255, %v1533
    %v1535 = vpop.f32.mrb[0].mxu0
    %v1536 = vadd.f32 %v259, %v1535
    %v1537 = vpop.f32.mrb[0].mxu0
    %v1538 = vadd.f32 %v255, %v1537
    %v1539 = vpop.f32.mrb[0].mxu0
    %v1540 = vadd.f32 %v259, %v1539
    %1541 = vmatprep.mubr.bf16.mxu0 %v1211
    %1542 = vmatmul.mubr.bf16.gmra.mrb[0].mxu0 %v378
    %v1543 = vpop.f32.mrb[0].mxu0
    %v1544 = vadd.f32 %v255, %v1543
    %v1545 = vpop.f32.mrb[0].mxu0
    %v1546 = vadd.f32 %v259, %v1545
    %v1547 = vpop.f32.mrb[0].mxu0
    %v1548 = vadd.f32 %v255, %v1547
    %v1549 = vpop.f32.mrb[0].mxu0
    %v1550 = vadd.f32 %v259, %v1549
    %1551 = vdwg.mxu0
    %1552 = vmatprep.subr.bf16.mxu0 %v875
    %1553 = vmatpush1.bf16.msra.mxu0 %v874
    %1554 = vmatprep.subr.bf16.mxu0 %v891
    %1555 = vmatpush1.bf16.msra.mxu0 %v890
    %1556 = vmatprep.subr.bf16.mxu0 %v907
    %1557 = vmatpush1.bf16.msra.mxu0 %v906
    %1558 = vmatprep.subr.bf16.mxu0 %v923
    %1559 = vmatpush1.bf16.msra.mxu0 %v922
    %1560 = vmatprep.subr.bf16.mxu0 %v939
    %1561 = vmatpush1.bf16.msra.mxu0 %v938
    %1562 = vmatprep.subr.bf16.mxu0 %v955
    %1563 = vmatpush1.bf16.msra.mxu0 %v954
    %1564 = vmatprep.subr.bf16.mxu0 %v971
    %1565 = vmatpush1.bf16.msra.mxu0 %v970
    %1566 = vmatprep.subr.bf16.mxu0 %v987
    %1567 = vmatpush1.bf16.msra.mxu0 %v986
    %1568 = vmatprep.subr.bf16.mxu0 %v1003
    %1569 = vmatpush1.bf16.msra.mxu0 %v1002
    %1570 = vmatprep.subr.bf16.mxu0 %v1019
    %1571 = vmatpush1.bf16.msra.mxu0 %v1018
    %1572 = vmatprep.subr.bf16.mxu0 0
    %1573 = vmatpush1.bf16.msra.mxu0 0
    %1574 = vmatprep.subr.bf16.mxu0 0
    %1575 = vmatpush1.bf16.msra.mxu0 0
    %1576 = vmatprep.subr.bf16.mxu0 0
    %1577 = vmatpush1.bf16.msra.mxu0 0
    %1578 = vmatprep.subr.bf16.mxu0 0
    %1579 = vmatpush1.bf16.msra.mxu0 0
    %1580 = vmatprep.subr.bf16.mxu0 0
    %1581 = vmatpush1.bf16.msra.mxu0 0
    %1582 = vmatprep.subr.bf16.mxu0 0
    %1583 = vmatpush1.bf16.msra.mxu0 0
    %1584 = vmatprep.mubr.bf16.mxu0 %v1190
    %1585 = vmatmul.mubr.bf16.gmra.mrb[0].mxu0 %v364
    %v1586 = vpop.f32.mrb[0].mxu0
    %v1587 = vadd.f32 %v263, %v1586
    %v1588 = vpop.f32.mrb[0].mxu0
    %v1589 = vadd.f32 %v267, %v1588
    %v1590 = vpop.f32.mrb[0].mxu0
    %v1591 = vadd.f32 %v263, %v1590
    %v1592 = vpop.f32.mrb[0].mxu0
    %v1593 = vadd.f32 %v267, %v1592
    %1594 = vmatprep.mubr.bf16.mxu0 %v1193
    %1595 = vmatmul.mubr.bf16.gmra.mrb[0].mxu0 %v366
    %v1596 = vpop.f32.mrb[0].mxu0
    %v1597 = vadd.f32 %v263, %v1596
    %v1598 = vpop.f32.mrb[0].mxu0
    %v1599 = vadd.f32 %v267, %v1598
    %v1600 = vpop.f32.mrb[0].mxu0
    %v1601 = vadd.f32 %v263, %v1600
    %v1602 = vpop.f32.mrb[0].mxu0
    %v1603 = vadd.f32 %v267, %v1602
    %1604 = vmatprep.mubr.bf16.mxu0 %v1196
    %1605 = vmatmul.mubr.bf16.gmra.mrb[0].mxu0 %v368
    %v1606 = vpop.f32.mrb[0].mxu0
    %v1607 = vadd.f32 %v263, %v1606
    %v1608 = vpop.f32.mrb[0].mxu0
    %v1609 = vadd.f32 %v267, %v1608
    %v1610 = vpop.f32.mrb[0].mxu0
    %v1611 = vadd.f32 %v263, %v1610
    %v1612 = vpop.f32.mrb[0].mxu0
    %v1613 = vadd.f32 %v267, %v1612
    %1614 = vmatprep.mubr.bf16.mxu0 %v1199
    %1615 = vmatmul.mubr.bf16.gmra.mrb[0].mxu0 %v370
    %v1616 = vpop.f32.mrb[0].mxu0
    %v1617 = vadd.f32 %v263, %v1616
    %v1618 = vpop.f32.mrb[0].mxu0
    %v1619 = vadd.f32 %v267, %v1618
    %v1620 = vpop.f32.mrb[0].mxu0
    %v1621 = vadd.f32 %v263, %v1620
    %v1622 = vpop.f32.mrb[0].mxu0
    %v1623 = vadd.f32 %v267, %v1622
    %1624 = vmatprep.mubr.bf16.mxu0 %v1202
    %1625 = vmatmul.mubr.bf16.gmra.mrb[0].mxu0 %v372
    %v1626 = vpop.f32.mrb[0].mxu0
    %v1627 = vadd.f32 %v263, %v1626
    %v1628 = vpop.f32.mrb[0].mxu0
    %v1629 = vadd.f32 %v267, %v1628
    %v1630 = vpop.f32.mrb[0].mxu0
    %v1631 = vadd.f32 %v263, %v1630
    %v1632 = vpop.f32.mrb[0].mxu0
    %v1633 = vadd.f32 %v267, %v1632
    %1634 = vmatprep.mubr.bf16.mxu0 %v1205
    %1635 = vmatmul.mubr.bf16.gmra.mrb[0].mxu0 %v374
    %v1636 = vpop.f32.mrb[0].mxu0
    %v1637 = vadd.f32 %v263, %v1636
    %v1638 = vpop.f32.mrb[0].mxu0
    %v1639 = vadd.f32 %v267, %v1638
    %v1640 = vpop.f32.mrb[0].mxu0
    %v1641 = vadd.f32 %v263, %v1640
    %v1642 = vpop.f32.mrb[0].mxu0
    %v1643 = vadd.f32 %v267, %v1642
    %1644 = vmatprep.mubr.bf16.mxu0 %v1208
    %1645 = vmatmul.mubr.bf16.gmra.mrb[0].mxu0 %v376
    %v1646 = vpop.f32.mrb[0].mxu0
    %v1647 = vadd.f32 %v263, %v1646
    %v1648 = vpop.f32.mrb[0].mxu0
    %v1649 = vadd.f32 %v267, %v1648
    %v1650 = vpop.f32.mrb[0].mxu0
    %v1651 = vadd.f32 %v263, %v1650
    %v1652 = vpop.f32.mrb[0].mxu0
    %v1653 = vadd.f32 %v267, %v1652
    %1654 = vmatprep.mubr.bf16.mxu0 %v1211
    %1655 = vmatmul.mubr.bf16.gmra.mrb[0].mxu0 %v378
    %v1656 = vpop.f32.mrb[0].mxu0
    %v1657 = vadd.f32 %v263, %v1656
    %v1658 = vpop.f32.mrb[0].mxu0
    %v1659 = vadd.f32 %v267, %v1658
    %v1660 = vpop.f32.mrb[0].mxu0
    %v1661 = vadd.f32 %v263, %v1660
    %v1662 = vpop.f32.mrb[0].mxu0
    %v1663 = vadd.f32 %v267, %v1662
    %1664 = vdwg.mxu0
    %1665 = vmatprep.subr.bf16.mxu0 %v877
    %1666 = vmatpush1.bf16.msra.mxu0 %v876
    %1667 = vmatprep.subr.bf16.mxu0 %v893
    %1668 = vmatpush1.bf16.msra.mxu0 %v892
    %1669 = vmatprep.subr.bf16.mxu0 %v909
    %1670 = vmatpush1.bf16.msra.mxu0 %v908
    %1671 = vmatprep.subr.bf16.mxu0 %v925
    %1672 = vmatpush1.bf16.msra.mxu0 %v924
    %1673 = vmatprep.subr.bf16.mxu0 %v941
    %1674 = vmatpush1.bf16.msra.mxu0 %v940
    %1675 = vmatprep.subr.bf16.mxu0 %v957
    %1676 = vmatpush1.bf16.msra.mxu0 %v956
    %1677 = vmatprep.subr.bf16.mxu0 %v973
    %1678 = vmatpush1.bf16.msra.mxu0 %v972
    %1679 = vmatprep.subr.bf16.mxu0 %v989
    %1680 = vmatpush1.bf16.msra.mxu0 %v988
    %1681 = vmatprep.subr.bf16.mxu0 %v1005
    %1682 = vmatpush1.bf16.msra.mxu0 %v1004
    %1683 = vmatprep.subr.bf16.mxu0 %v1021
    %1684 = vmatpush1.bf16.msra.mxu0 %v1020
    %1685 = vmatprep.subr.bf16.mxu0 0
    %1686 = vmatpush1.bf16.msra.mxu0 0
    %1687 = vmatprep.subr.bf16.mxu0 0
    %1688 = vmatpush1.bf16.msra.mxu0 0
    %1689 = vmatprep.subr.bf16.mxu0 0
    %1690 = vmatpush1.bf16.msra.mxu0 0
    %1691 = vmatprep.subr.bf16.mxu0 0
    %1692 = vmatpush1.bf16.msra.mxu0 0
    %1693 = vmatprep.subr.bf16.mxu0 0
    %1694 = vmatpush1.bf16.msra.mxu0 0
    %1695 = vmatprep.subr.bf16.mxu0 0
    %1696 = vmatpush1.bf16.msra.mxu0 0
    %1697 = vmatprep.mubr.bf16.mxu0 %v1190
    %1698 = vmatmul.mubr.bf16.gmra.mrb[0].mxu0 %v364
    %v1699 = vpop.f32.mrb[0].mxu0
    %v1700 = vadd.f32 %v271, %v1699
    %v1701 = vpop.f32.mrb[0].mxu0
    %v1702 = vadd.f32 %v275, %v1701
    %v1703 = vpop.f32.mrb[0].mxu0
    %v1704 = vadd.f32 %v271, %v1703
    %v1705 = vpop.f32.mrb[0].mxu0
    %v1706 = vadd.f32 %v275, %v1705
    %1707 = vmatprep.mubr.bf16.mxu0 %v1193
    %1708 = vmatmul.mubr.bf16.gmra.mrb[0].mxu0 %v366
    %v1709 = vpop.f32.mrb[0].mxu0
    %v1710 = vadd.f32 %v271, %v1709
    %v1711 = vpop.f32.mrb[0].mxu0
    %v1712 = vadd.f32 %v275, %v1711
    %v1713 = vpop.f32.mrb[0].mxu0
    %v1714 = vadd.f32 %v271, %v1713
    %v1715 = vpop.f32.mrb[0].mxu0
    %v1716 = vadd.f32 %v275, %v1715
    %1717 = vmatprep.mubr.bf16.mxu0 %v1196
    %1718 = vmatmul.mubr.bf16.gmra.mrb[0].mxu0 %v368
    %v1719 = vpop.f32.mrb[0].mxu0
    %v1720 = vadd.f32 %v271, %v1719
    %v1721 = vpop.f32.mrb[0].mxu0
    %v1722 = vadd.f32 %v275, %v1721
    %v1723 = vpop.f32.mrb[0].mxu0
    %v1724 = vadd.f32 %v271, %v1723
    %v1725 = vpop.f32.mrb[0].mxu0
    %v1726 = vadd.f32 %v275, %v1725
    %1727 = vmatprep.mubr.bf16.mxu0 %v1199
    %1728 = vmatmul.mubr.bf16.gmra.mrb[0].mxu0 %v370
    %v1729 = vpop.f32.mrb[0].mxu0
    %v1730 = vadd.f32 %v271, %v1729
    %v1731 = vpop.f32.mrb[0].mxu0
    %v1732 = vadd.f32 %v275, %v1731
    %v1733 = vpop.f32.mrb[0].mxu0
    %v1734 = vadd.f32 %v271, %v1733
    %v1735 = vpop.f32.mrb[0].mxu0
    %v1736 = vadd.f32 %v275, %v1735
    %1737 = vmatprep.mubr.bf16.mxu0 %v1202
    %1738 = vmatmul.mubr.bf16.gmra.mrb[0].mxu0 %v372
    %v1739 = vpop.f32.mrb[0].mxu0
    %v1740 = vadd.f32 %v271, %v1739
    %v1741 = vpop.f32.mrb[0].mxu0
    %v1742 = vadd.f32 %v275, %v1741
    %v1743 = vpop.f32.mrb[0].mxu0
    %v1744 = vadd.f32 %v271, %v1743
    %v1745 = vpop.f32.mrb[0].mxu0
    %v1746 = vadd.f32 %v275, %v1745
    %1747 = vmatprep.mubr.bf16.mxu0 %v1205
    %1748 = vmatmul.mubr.bf16.gmra.mrb[0].mxu0 %v374
    %v1749 = vpop.f32.mrb[0].mxu0
    %v1750 = vadd.f32 %v271, %v1749
    %v1751 = vpop.f32.mrb[0].mxu0
    %v1752 = vadd.f32 %v275, %v1751
    %v1753 = vpop.f32.mrb[0].mxu0
    %v1754 = vadd.f32 %v271, %v1753
    %v1755 = vpop.f32.mrb[0].mxu0
    %v1756 = vadd.f32 %v275, %v1755
    %1757 = vmatprep.mubr.bf16.mxu0 %v1208
    %1758 = vmatmul.mubr.bf16.gmra.mrb[0].mxu0 %v376
    %v1759 = vpop.f32.mrb[0].mxu0
    %v1760 = vadd.f32 %v271, %v1759
    %v1761 = vpop.f32.mrb[0].mxu0
    %v1762 = vadd.f32 %v275, %v1761
    %v1763 = vpop.f32.mrb[0].mxu0
    %v1764 = vadd.f32 %v271, %v1763
    %v1765 = vpop.f32.mrb[0].mxu0
    %v1766 = vadd.f32 %v275, %v1765
    %1767 = vmatprep.mubr.bf16.mxu0 %v1211
    %1768 = vmatmul.mubr.bf16.gmra.mrb[0].mxu0 %v378
    %v1769 = vpop.f32.mrb[0].mxu0
    %v1770 = vadd.f32 %v271, %v1769
    %v1771 = vpop.f32.mrb[0].mxu0
    %v1772 = vadd.f32 %v275, %v1771
    %v1773 = vpop.f32.mrb[0].mxu0
    %v1774 = vadd.f32 %v271, %v1773
    %v1775 = vpop.f32.mrb[0].mxu0
    %v1776 = vadd.f32 %v275, %v1775
    %1777 = vdwg.mxu0
    %1778 = vmatprep.subr.bf16.mxu0 %v879
    %1779 = vmatpush1.bf16.msra.mxu0 %v878
    %1780 = vmatprep.subr.bf16.mxu0 %v895
    %1781 = vmatpush1.bf16.msra.mxu0 %v894
    %1782 = vmatprep.subr.bf16.mxu0 %v911
    %1783 = vmatpush1.bf16.msra.mxu0 %v910
    %1784 = vmatprep.subr.bf16.mxu0 %v927
    %1785 = vmatpush1.bf16.msra.mxu0 %v926
    %1786 = vmatprep.subr.bf16.mxu0 %v943
    %1787 = vmatpush1.bf16.msra.mxu0 %v942
    %1788 = vmatprep.subr.bf16.mxu0 %v959
    %1789 = vmatpush1.bf16.msra.mxu0 %v958
    %1790 = vmatprep.subr.bf16.mxu0 %v975
    %1791 = vmatpush1.bf16.msra.mxu0 %v974
    %1792 = vmatprep.subr.bf16.mxu0 %v991
    %1793 = vmatpush1.bf16.msra.mxu0 %v990
    %1794 = vmatprep.subr.bf16.mxu0 %v1007
    %1795 = vmatpush1.bf16.msra.mxu0 %v1006
    %1796 = vmatprep.subr.bf16.mxu0 %v1023
    %1797 = vmatpush1.bf16.msra.mxu0 %v1022
    %1798 = vmatprep.subr.bf16.mxu0 0
    %1799 = vmatpush1.bf16.msra.mxu0 0
    %1800 = vmatprep.subr.bf16.mxu0 0
    %1801 = vmatpush1.bf16.msra.mxu0 0
    %1802 = vmatprep.subr.bf16.mxu0 0
    %1803 = vmatpush1.bf16.msra.mxu0 0
    %1804 = vmatprep.subr.bf16.mxu0 0
    %1805 = vmatpush1.bf16.msra.mxu0 0
    %1806 = vmatprep.subr.bf16.mxu0 0
    %1807 = vmatpush1.bf16.msra.mxu0 0
    %1808 = vmatprep.subr.bf16.mxu0 0
    %1809 = vmatpush1.bf16.msra.mxu0 0
    %1810 = vmatprep.mubr.bf16.mxu0 %v1190
    %1811 = vmatmul.mubr.bf16.gmra.mrb[0].mxu0 %v364
    %v1812 = vpop.f32.mrb[0].mxu0
    %v1813 = vadd.f32 %v279, %v1812
    %v1814 = vpop.f32.mrb[0].mxu0
    %v1815 = vadd.f32 %v283, %v1814
    %v1816 = vpop.f32.mrb[0].mxu0
    %v1817 = vadd.f32 %v279, %v1816
    %v1818 = vpop.f32.mrb[0].mxu0
    %v1819 = vadd.f32 %v283, %v1818
    %1820 = vmatprep.mubr.bf16.mxu0 %v1193
    %1821 = vmatmul.mubr.bf16.gmra.mrb[0].mxu0 %v366
    %v1822 = vpop.f32.mrb[0].mxu0
    %v1823 = vadd.f32 %v279, %v1822
    %v1824 = vpop.f32.mrb[0].mxu0
    %v1825 = vadd.f32 %v283, %v1824
    %v1826 = vpop.f32.mrb[0].mxu0
    %v1827 = vadd.f32 %v279, %v1826
    %v1828 = vpop.f32.mrb[0].mxu0
    %v1829 = vadd.f32 %v283, %v1828
    %1830 = vmatprep.mubr.bf16.mxu0 %v1196
    %1831 = vmatmul.mubr.bf16.gmra.mrb[0].mxu0 %v368
    %v1832 = vpop.f32.mrb[0].mxu0
    %v1833 = vadd.f32 %v279, %v1832
    %v1834 = vpop.f32.mrb[0].mxu0
    %v1835 = vadd.f32 %v283, %v1834
    %v1836 = vpop.f32.mrb[0].mxu0
    %v1837 = vadd.f32 %v279, %v1836
    %v1838 = vpop.f32.mrb[0].mxu0
    %v1839 = vadd.f32 %v283, %v1838
    %1840 = vmatprep.mubr.bf16.mxu0 %v1199
    %1841 = vmatmul.mubr.bf16.gmra.mrb[0].mxu0 %v370
    %v1842 = vpop.f32.mrb[0].mxu0
    %v1843 = vadd.f32 %v279, %v1842
    %v1844 = vpop.f32.mrb[0].mxu0
    %v1845 = vadd.f32 %v283, %v1844
    %v1846 = vpop.f32.mrb[0].mxu0
    %v1847 = vadd.f32 %v279, %v1846
    %v1848 = vpop.f32.mrb[0].mxu0
    %v1849 = vadd.f32 %v283, %v1848
    %1850 = vmatprep.mubr.bf16.mxu0 %v1202
    %1851 = vmatmul.mubr.bf16.gmra.mrb[0].mxu0 %v372
    %v1852 = vpop.f32.mrb[0].mxu0
    %v1853 = vadd.f32 %v279, %v1852
    %v1854 = vpop.f32.mrb[0].mxu0
    %v1855 = vadd.f32 %v283, %v1854
    %v1856 = vpop.f32.mrb[0].mxu0
    %v1857 = vadd.f32 %v279, %v1856
    %v1858 = vpop.f32.mrb[0].mxu0
    %v1859 = vadd.f32 %v283, %v1858
    %1860 = vmatprep.mubr.bf16.mxu0 %v1205
    %1861 = vmatmul.mubr.bf16.gmra.mrb[0].mxu0 %v374
    %v1862 = vpop.f32.mrb[0].mxu0
    %v1863 = vadd.f32 %v279, %v1862
    %v1864 = vpop.f32.mrb[0].mxu0
    %v1865 = vadd.f32 %v283, %v1864
    %v1866 = vpop.f32.mrb[0].mxu0
    %v1867 = vadd.f32 %v279, %v1866
    %v1868 = vpop.f32.mrb[0].mxu0
    %v1869 = vadd.f32 %v283, %v1868
    %1870 = vmatprep.mubr.bf16.mxu0 %v1208
    %1871 = vmatmul.mubr.bf16.gmra.mrb[0].mxu0 %v376
    %v1872 = vpop.f32.mrb[0].mxu0
    %v1873 = vadd.f32 %v279, %v1872
    %v1874 = vpop.f32.mrb[0].mxu0
    %v1875 = vadd.f32 %v283, %v1874
    %v1876 = vpop.f32.mrb[0].mxu0
    %v1877 = vadd.f32 %v279, %v1876
    %v1878 = vpop.f32.mrb[0].mxu0
    %v1879 = vadd.f32 %v283, %v1878
    %1880 = vmatprep.mubr.bf16.mxu0 %v1211
    %1881 = vmatmul.mubr.bf16.gmra.mrb[0].mxu0 %v378
    %v1882 = vpop.f32.mrb[0].mxu0
    %v1883 = vadd.f32 %v279, %v1882
    %v1884 = vpop.f32.mrb[0].mxu0
    %v1885 = vadd.f32 %v283, %v1884
    %v1886 = vpop.f32.mrb[0].mxu0
    %v1887 = vadd.f32 %v279, %v1886
    %v1888 = vpop.f32.mrb[0].mxu0
    %v1889 = vadd.f32 %v283, %v1888
    %1890 = vdwg.mxu0
    %1891 = vmatprep.subr.bf16.mxu0 %v881
    %1892 = vmatpush1.bf16.msra.mxu0 %v880
    %1893 = vmatprep.subr.bf16.mxu0 %v897
    %1894 = vmatpush1.bf16.msra.mxu0 %v896
    %1895 = vmatprep.subr.bf16.mxu0 %v913
    %1896 = vmatpush1.bf16.msra.mxu0 %v912
    %1897 = vmatprep.subr.bf16.mxu0 %v929
    %1898 = vmatpush1.bf16.msra.mxu0 %v928
    %1899 = vmatprep.subr.bf16.mxu0 %v945
    %1900 = vmatpush1.bf16.msra.mxu0 %v944
    %1901 = vmatprep.subr.bf16.mxu0 %v961
    %1902 = vmatpush1.bf16.msra.mxu0 %v960
    %1903 = vmatprep.subr.bf16.mxu0 %v977
    %1904 = vmatpush1.bf16.msra.mxu0 %v976
    %1905 = vmatprep.subr.bf16.mxu0 %v993
    %1906 = vmatpush1.bf16.msra.mxu0 %v992
    %1907 = vmatprep.subr.bf16.mxu0 %v1009
    %1908 = vmatpush1.bf16.msra.mxu0 %v1008
    %1909 = vmatprep.subr.bf16.mxu0 %v1025
    %1910 = vmatpush1.bf16.msra.mxu0 %v1024
    %1911 = vmatprep.subr.bf16.mxu0 0
    %1912 = vmatpush1.bf16.msra.mxu0 0
    %1913 = vmatprep.subr.bf16.mxu0 0
    %1914 = vmatpush1.bf16.msra.mxu0 0
    %1915 = vmatprep.subr.bf16.mxu0 0
    %1916 = vmatpush1.bf16.msra.mxu0 0
    %1917 = vmatprep.subr.bf16.mxu0 0
    %1918 = vmatpush1.bf16.msra.mxu0 0
    %1919 = vmatprep.subr.bf16.mxu0 0
    %1920 = vmatpush1.bf16.msra.mxu0 0
    %1921 = vmatprep.subr.bf16.mxu0 0
    %1922 = vmatpush1.bf16.msra.mxu0 0
    %1923 = vmatprep.mubr.bf16.mxu0 %v1190
    %1924 = vmatmul.mubr.bf16.gmra.mrb[0].mxu0 %v364
    %v1925 = vpop.f32.mrb[0].mxu0
    %v1926 = vadd.f32 %v287, %v1925
    %v1927 = vpop.f32.mrb[0].mxu0
    %v1928 = vadd.f32 %v291, %v1927
    %v1929 = vpop.f32.mrb[0].mxu0
    %v1930 = vadd.f32 %v287, %v1929
    %v1931 = vpop.f32.mrb[0].mxu0
    %v1932 = vadd.f32 %v291, %v1931
    %1933 = vmatprep.mubr.bf16.mxu0 %v1193
    %1934 = vmatmul.mubr.bf16.gmra.mrb[0].mxu0 %v366
    %v1935 = vpop.f32.mrb[0].mxu0
    %v1936 = vadd.f32 %v287, %v1935
    %v1937 = vpop.f32.mrb[0].mxu0
    %v1938 = vadd.f32 %v291, %v1937
    %v1939 = vpop.f32.mrb[0].mxu0
    %v1940 = vadd.f32 %v287, %v1939
    %v1941 = vpop.f32.mrb[0].mxu0
    %v1942 = vadd.f32 %v291, %v1941
    %1943 = vmatprep.mubr.bf16.mxu0 %v1196
    %1944 = vmatmul.mubr.bf16.gmra.mrb[0].mxu0 %v368
    %v1945 = vpop.f32.mrb[0].mxu0
    %v1946 = vadd.f32 %v287, %v1945
    %v1947 = vpop.f32.mrb[0].mxu0
    %v1948 = vadd.f32 %v291, %v1947
    %v1949 = vpop.f32.mrb[0].mxu0
    %v1950 = vadd.f32 %v287, %v1949
    %v1951 = vpop.f32.mrb[0].mxu0
    %v1952 = vadd.f32 %v291, %v1951
    %1953 = vmatprep.mubr.bf16.mxu0 %v1199
    %1954 = vmatmul.mubr.bf16.gmra.mrb[0].mxu0 %v370
    %v1955 = vpop.f32.mrb[0].mxu0
    %v1956 = vadd.f32 %v287, %v1955
    %v1957 = vpop.f32.mrb[0].mxu0
    %v1958 = vadd.f32 %v291, %v1957
    %v1959 = vpop.f32.mrb[0].mxu0
    %v1960 = vadd.f32 %v287, %v1959
    %v1961 = vpop.f32.mrb[0].mxu0
    %v1962 = vadd.f32 %v291, %v1961
    %1963 = vmatprep.mubr.bf16.mxu0 %v1202
    %1964 = vmatmul.mubr.bf16.gmra.mrb[0].mxu0 %v372
    %v1965 = vpop.f32.mrb[0].mxu0
    %v1966 = vadd.f32 %v287, %v1965
    %v1967 = vpop.f32.mrb[0].mxu0
    %v1968 = vadd.f32 %v291, %v1967
    %v1969 = vpop.f32.mrb[0].mxu0
    %v1970 = vadd.f32 %v287, %v1969
    %v1971 = vpop.f32.mrb[0].mxu0
    %v1972 = vadd.f32 %v291, %v1971
    %1973 = vmatprep.mubr.bf16.mxu0 %v1205
    %1974 = vmatmul.mubr.bf16.gmra.mrb[0].mxu0 %v374
    %v1975 = vpop.f32.mrb[0].mxu0
    %v1976 = vadd.f32 %v287, %v1975
    %v1977 = vpop.f32.mrb[0].mxu0
    %v1978 = vadd.f32 %v291, %v1977
    %v1979 = vpop.f32.mrb[0].mxu0
    %v1980 = vadd.f32 %v287, %v1979
    %v1981 = vpop.f32.mrb[0].mxu0
    %v1982 = vadd.f32 %v291, %v1981
    %1983 = vmatprep.mubr.bf16.mxu0 %v1208
    %1984 = vmatmul.mubr.bf16.gmra.mrb[0].mxu0 %v376
    %v1985 = vpop.f32.mrb[0].mxu0
    %v1986 = vadd.f32 %v287, %v1985
    %v1987 = vpop.f32.mrb[0].mxu0
    %v1988 = vadd.f32 %v291, %v1987
    %v1989 = vpop.f32.mrb[0].mxu0
    %v1990 = vadd.f32 %v287, %v1989
    %v1991 = vpop.f32.mrb[0].mxu0
    %v1992 = vadd.f32 %v291, %v1991
    %1993 = vmatprep.mubr.bf16.mxu0 %v1211
    %1994 = vmatmul.mubr.bf16.gmra.mrb[0].mxu0 %v378
    %v1995 = vpop.f32.mrb[0].mxu0
    %v1996 = vadd.f32 %v287, %v1995
    %v1997 = vpop.f32.mrb[0].mxu0
    %v1998 = vadd.f32 %v291, %v1997
    %v1999 = vpop.f32.mrb[0].mxu0
    %v2000 = vadd.f32 %v287, %v1999
    %v2001 = vpop.f32.mrb[0].mxu0
    %v2002 = vadd.f32 %v291, %v2001
    %2003 = vdwg.mxu0
    %2004 = vmatprep.subr.bf16.mxu0 %v883
    %2005 = vmatpush1.bf16.msra.mxu0 %v882
    %2006 = vmatprep.subr.bf16.mxu0 %v899
    %2007 = vmatpush1.bf16.msra.mxu0 %v898
    %2008 = vmatprep.subr.bf16.mxu0 %v915
    %2009 = vmatpush1.bf16.msra.mxu0 %v914
    %2010 = vmatprep.subr.bf16.mxu0 %v931
    %2011 = vmatpush1.bf16.msra.mxu0 %v930
    %2012 = vmatprep.subr.bf16.mxu0 %v947
    %2013 = vmatpush1.bf16.msra.mxu0 %v946
    %2014 = vmatprep.subr.bf16.mxu0 %v963
    %2015 = vmatpush1.bf16.msra.mxu0 %v962
    %2016 = vmatprep.subr.bf16.mxu0 %v979
    %2017 = vmatpush1.bf16.msra.mxu0 %v978
    %2018 = vmatprep.subr.bf16.mxu0 %v995
    %2019 = vmatpush1.bf16.msra.mxu0 %v994
    %2020 = vmatprep.subr.bf16.mxu0 %v1011
    %2021 = vmatpush1.bf16.msra.mxu0 %v1010
    %2022 = vmatprep.subr.bf16.mxu0 %v1027
    %2023 = vmatpush1.bf16.msra.mxu0 %v1026
    %2024 = vmatprep.subr.bf16.mxu0 0
    %2025 = vmatpush1.bf16.msra.mxu0 0
    %2026 = vmatprep.subr.bf16.mxu0 0
    %2027 = vmatpush1.bf16.msra.mxu0 0
    %2028 = vmatprep.subr.bf16.mxu0 0
    %2029 = vmatpush1.bf16.msra.mxu0 0
    %2030 = vmatprep.subr.bf16.mxu0 0
    %2031 = vmatpush1.bf16.msra.mxu0 0
    %2032 = vmatprep.subr.bf16.mxu0 0
    %2033 = vmatpush1.bf16.msra.mxu0 0
    %2034 = vmatprep.subr.bf16.mxu0 0
    %2035 = vmatpush1.bf16.msra.mxu0 0
    %2036 = vmatprep.mubr.bf16.mxu0 %v1190
    %2037 = vmatmul.mubr.bf16.gmra.mrb[0].mxu0 %v364
    %v2038 = vpop.f32.mrb[0].mxu0
    %v2039 = vadd.f32 %v295, %v2038
    %v2040 = vpop.f32.mrb[0].mxu0
    %v2041 = vadd.f32 %v299, %v2040
    %v2042 = vpop.f32.mrb[0].mxu0
    %v2043 = vadd.f32 %v295, %v2042
    %v2044 = vpop.f32.mrb[0].mxu0
    %v2045 = vadd.f32 %v299, %v2044
    %2046 = vmatprep.mubr.bf16.mxu0 %v1193
    %2047 = vmatmul.mubr.bf16.gmra.mrb[0].mxu0 %v366
    %v2048 = vpop.f32.mrb[0].mxu0
    %v2049 = vadd.f32 %v295, %v2048
    %v2050 = vpop.f32.mrb[0].mxu0
    %v2051 = vadd.f32 %v299, %v2050
    %v2052 = vpop.f32.mrb[0].mxu0
    %v2053 = vadd.f32 %v295, %v2052
    %v2054 = vpop.f32.mrb[0].mxu0
    %v2055 = vadd.f32 %v299, %v2054
    %2056 = vmatprep.mubr.bf16.mxu0 %v1196
    %2057 = vmatmul.mubr.bf16.gmra.mrb[0].mxu0 %v368
    %v2058 = vpop.f32.mrb[0].mxu0
    %v2059 = vadd.f32 %v295, %v2058
    %v2060 = vpop.f32.mrb[0].mxu0
    %v2061 = vadd.f32 %v299, %v2060
    %v2062 = vpop.f32.mrb[0].mxu0
    %v2063 = vadd.f32 %v295, %v2062
    %v2064 = vpop.f32.mrb[0].mxu0
    %v2065 = vadd.f32 %v299, %v2064
    %2066 = vmatprep.mubr.bf16.mxu0 %v1199
    %2067 = vmatmul.mubr.bf16.gmra.mrb[0].mxu0 %v370
    %v2068 = vpop.f32.mrb[0].mxu0
    %v2069 = vadd.f32 %v295, %v2068
    %v2070 = vpop.f32.mrb[0].mxu0
    %v2071 = vadd.f32 %v299, %v2070
    %v2072 = vpop.f32.mrb[0].mxu0
    %v2073 = vadd.f32 %v295, %v2072
    %v2074 = vpop.f32.mrb[0].mxu0
    %v2075 = vadd.f32 %v299, %v2074
    %2076 = vmatprep.mubr.bf16.mxu0 %v1202
    %2077 = vmatmul.mubr.bf16.gmra.mrb[0].mxu0 %v372
    %v2078 = vpop.f32.mrb[0].mxu0
    %v2079 = vadd.f32 %v295, %v2078
    %v2080 = vpop.f32.mrb[0].mxu0
    %v2081 = vadd.f32 %v299, %v2080
    %v2082 = vpop.f32.mrb[0].mxu0
    %v2083 = vadd.f32 %v295, %v2082
    %v2084 = vpop.f32.mrb[0].mxu0
    %v2085 = vadd.f32 %v299, %v2084
    %2086 = vmatprep.mubr.bf16.mxu0 %v1205
    %2087 = vmatmul.mubr.bf16.gmra.mrb[0].mxu0 %v374
    %v2088 = vpop.f32.mrb[0].mxu0
    %v2089 = vadd.f32 %v295, %v2088
    %v2090 = vpop.f32.mrb[0].mxu0
    %v2091 = vadd.f32 %v299, %v2090
    %v2092 = vpop.f32.mrb[0].mxu0
    %v2093 = vadd.f32 %v295, %v2092
    %v2094 = vpop.f32.mrb[0].mxu0
    %v2095 = vadd.f32 %v299, %v2094
    %2096 = vmatprep.mubr.bf16.mxu0 %v1208
    %2097 = vmatmul.mubr.bf16.gmra.mrb[0].mxu0 %v376
    %v2098 = vpop.f32.mrb[0].mxu0
    %v2099 = vadd.f32 %v295, %v2098
    %v2100 = vpop.f32.mrb[0].mxu0
    %v2101 = vadd.f32 %v299, %v2100
    %v2102 = vpop.f32.mrb[0].mxu0
    %v2103 = vadd.f32 %v295, %v2102
    %v2104 = vpop.f32.mrb[0].mxu0
    %v2105 = vadd.f32 %v299, %v2104
    %2106 = vmatprep.mubr.bf16.mxu0 %v1211
    %2107 = vmatmul.mubr.bf16.gmra.mrb[0].mxu0 %v378
    %v2108 = vpop.f32.mrb[0].mxu0
    %v2109 = vadd.f32 %v295, %v2108
    %v2110 = vpop.f32.mrb[0].mxu0
    %v2111 = vadd.f32 %v299, %v2110
    %v2112 = vpop.f32.mrb[0].mxu0
    %v2113 = vadd.f32 %v295, %v2112
    %v2114 = vpop.f32.mrb[0].mxu0
    %v2115 = vadd.f32 %v299, %v2114
    %2116 = vdwg.mxu0
    %v2117 = vmax.f32 %v1248, 0.0
    %v2118 = vmax.f32 %v1250, 0.0
    %v2119 = vmax.f32 %v1361, 0.0
    %v2120 = vmax.f32 %v1363, 0.0
    %v2121 = vmax.f32 %v1474, 0.0
    %v2122 = vmax.f32 %v1476, 0.0
    %v2123 = vmax.f32 %v1587, 0.0
    %v2124 = vmax.f32 %v1589, 0.0
    %v2125 = vmax.f32 %v1700, 0.0
    %v2126 = vmax.f32 %v1702, 0.0
    %v2127 = vmax.f32 %v1813, 0.0
    %v2128 = vmax.f32 %v1815, 0.0
    %v2129 = vmax.f32 %v1926, 0.0
    %v2130 = vmax.f32 %v1928, 0.0
    %v2131 = vmax.f32 %v2039, 0.0
    %v2132 = vmax.f32 %v2041, 0.0
    %v2133 = vmax.f32 %v1252, 0.0
    %v2134 = vmax.f32 %v1254, 0.0
    %v2135 = vmax.f32 %v1365, 0.0
    %v2136 = vmax.f32 %v1367, 0.0
    %v2137 = vmax.f32 %v1478, 0.0
    %v2138 = vmax.f32 %v1480, 0.0
    %v2139 = vmax.f32 %v1591, 0.0
    %v2140 = vmax.f32 %v1593, 0.0
    %v2141 = vmax.f32 %v1704, 0.0
    %v2142 = vmax.f32 %v1706, 0.0
    %v2143 = vmax.f32 %v1817, 0.0
    %v2144 = vmax.f32 %v1819, 0.0
    %v2145 = vmax.f32 %v1930, 0.0
    %v2146 = vmax.f32 %v1932, 0.0
    %v2147 = vmax.f32 %v2043, 0.0
    %v2148 = vmax.f32 %v2045, 0.0
    %v2149 = vmax.f32 %v1258, 0.0
    %v2150 = vmax.f32 %v1260, 0.0
    %v2151 = vmax.f32 %v1371, 0.0
    %v2152 = vmax.f32 %v1373, 0.0
    %v2153 = vmax.f32 %v1484, 0.0
    %v2154 = vmax.f32 %v1486, 0.0
    %v2155 = vmax.f32 %v1597, 0.0
    %v2156 = vmax.f32 %v1599, 0.0
    %v2157 = vmax.f32 %v1710, 0.0
    %v2158 = vmax.f32 %v1712, 0.0
    %v2159 = vmax.f32 %v1823, 0.0
    %v2160 = vmax.f32 %v1825, 0.0
    %v2161 = vmax.f32 %v1936, 0.0
    %v2162 = vmax.f32 %v1938, 0.0
    %v2163 = vmax.f32 %v2049, 0.0
    %v2164 = vmax.f32 %v2051, 0.0
    %v2165 = vmax.f32 %v1262, 0.0
    %v2166 = vmax.f32 %v1264, 0.0
    %v2167 = vmax.f32 %v1375, 0.0
    %v2168 = vmax.f32 %v1377, 0.0
    %v2169 = vmax.f32 %v1488, 0.0
    %v2170 = vmax.f32 %v1490, 0.0
    %v2171 = vmax.f32 %v1601, 0.0
    %v2172 = vmax.f32 %v1603, 0.0
    %v2173 = vmax.f32 %v1714, 0.0
    %v2174 = vmax.f32 %v1716, 0.0
    %v2175 = vmax.f32 %v1827, 0.0
    %v2176 = vmax.f32 %v1829, 0.0
    %v2177 = vmax.f32 %v1940, 0.0
    %v2178 = vmax.f32 %v1942, 0.0
    %v2179 = vmax.f32 %v2053, 0.0
    %v2180 = vmax.f32 %v2055, 0.0
    %v2181 = vmax.f32 %v1268, 0.0
    %v2182 = vmax.f32 %v1270, 0.0
    %v2183 = vmax.f32 %v1381, 0.0
    %v2184 = vmax.f32 %v1383, 0.0
    %v2185 = vmax.f32 %v1494, 0.0
    %v2186 = vmax.f32 %v1496, 0.0
    %v2187 = vmax.f32 %v1607, 0.0
    %v2188 = vmax.f32 %v1609, 0.0
    %v2189 = vmax.f32 %v1720, 0.0
    %v2190 = vmax.f32 %v1722, 0.0
    %v2191 = vmax.f32 %v1833, 0.0
    %v2192 = vmax.f32 %v1835, 0.0
    %v2193 = vmax.f32 %v1946, 0.0
    %v2194 = vmax.f32 %v1948, 0.0
    %v2195 = vmax.f32 %v2059, 0.0
    %v2196 = vmax.f32 %v2061, 0.0
    %v2197 = vmax.f32 %v1272, 0.0
    %v2198 = vmax.f32 %v1274, 0.0
    %v2199 = vmax.f32 %v1385, 0.0
    %v2200 = vmax.f32 %v1387, 0.0
    %v2201 = vmax.f32 %v1498, 0.0
    %v2202 = vmax.f32 %v1500, 0.0
    %v2203 = vmax.f32 %v1611, 0.0
    %v2204 = vmax.f32 %v1613, 0.0
    %v2205 = vmax.f32 %v1724, 0.0
    %v2206 = vmax.f32 %v1726, 0.0
    %v2207 = vmax.f32 %v1837, 0.0
    %v2208 = vmax.f32 %v1839, 0.0
    %v2209 = vmax.f32 %v1950, 0.0
    %v2210 = vmax.f32 %v1952, 0.0
    %v2211 = vmax.f32 %v2063, 0.0
    %v2212 = vmax.f32 %v2065, 0.0
    %v2213 = vmax.f32 %v1278, 0.0
    %v2214 = vmax.f32 %v1280, 0.0
    %v2215 = vmax.f32 %v1391, 0.0
    %v2216 = vmax.f32 %v1393, 0.0
    %v2217 = vmax.f32 %v1504, 0.0
    %v2218 = vmax.f32 %v1506, 0.0
    %v2219 = vmax.f32 %v1617, 0.0
    %v2220 = vmax.f32 %v1619, 0.0
    %v2221 = vmax.f32 %v1730, 0.0
    %v2222 = vmax.f32 %v1732, 0.0
    %v2223 = vmax.f32 %v1843, 0.0
    %v2224 = vmax.f32 %v1845, 0.0
    %v2225 = vmax.f32 %v1956, 0.0
    %v2226 = vmax.f32 %v1958, 0.0
    %v2227 = vmax.f32 %v2069, 0.0
    %v2228 = vmax.f32 %v2071, 0.0
    %v2229 = vmax.f32 %v1282, 0.0
    %v2230 = vmax.f32 %v1284, 0.0
    %v2231 = vmax.f32 %v1395, 0.0
    %v2232 = vmax.f32 %v1397, 0.0
    %v2233 = vmax.f32 %v1508, 0.0
    %v2234 = vmax.f32 %v1510, 0.0
    %v2235 = vmax.f32 %v1621, 0.0
    %v2236 = vmax.f32 %v1623, 0.0
    %v2237 = vmax.f32 %v1734, 0.0
    %v2238 = vmax.f32 %v1736, 0.0
    %v2239 = vmax.f32 %v1847, 0.0
    %v2240 = vmax.f32 %v1849, 0.0
    %v2241 = vmax.f32 %v1960, 0.0
    %v2242 = vmax.f32 %v1962, 0.0
    %v2243 = vmax.f32 %v2073, 0.0
    %v2244 = vmax.f32 %v2075, 0.0
    %v2245 = vmax.f32 %v1288, 0.0
    %v2246 = vmax.f32 %v1290, 0.0
    %v2247 = vmax.f32 %v1401, 0.0
    %v2248 = vmax.f32 %v1403, 0.0
    %v2249 = vmax.f32 %v1514, 0.0
    %v2250 = vmax.f32 %v1516, 0.0
    %v2251 = vmax.f32 %v1627, 0.0
    %v2252 = vmax.f32 %v1629, 0.0
    %v2253 = vmax.f32 %v1740, 0.0
    %v2254 = vmax.f32 %v1742, 0.0
    %v2255 = vmax.f32 %v1853, 0.0
    %v2256 = vmax.f32 %v1855, 0.0
    %v2257 = vmax.f32 %v1966, 0.0
    %v2258 = vmax.f32 %v1968, 0.0
    %v2259 = vmax.f32 %v2079, 0.0
    %v2260 = vmax.f32 %v2081, 0.0
    %v2261 = vmax.f32 %v1292, 0.0
    %v2262 = vmax.f32 %v1294, 0.0
    %v2263 = vmax.f32 %v1405, 0.0
    %v2264 = vmax.f32 %v1407, 0.0
    %v2265 = vmax.f32 %v1518, 0.0
    %v2266 = vmax.f32 %v1520, 0.0
    %v2267 = vmax.f32 %v1631, 0.0
    %v2268 = vmax.f32 %v1633, 0.0
    %v2269 = vmax.f32 %v1744, 0.0
    %v2270 = vmax.f32 %v1746, 0.0
    %v2271 = vmax.f32 %v1857, 0.0
    %v2272 = vmax.f32 %v1859, 0.0
    %v2273 = vmax.f32 %v1970, 0.0
    %v2274 = vmax.f32 %v1972, 0.0
    %v2275 = vmax.f32 %v2083, 0.0
    %v2276 = vmax.f32 %v2085, 0.0
    %v2277 = vmax.f32 %v1298, 0.0
    %v2278 = vmax.f32 %v1300, 0.0
    %v2279 = vmax.f32 %v1411, 0.0
    %v2280 = vmax.f32 %v1413, 0.0
    %v2281 = vmax.f32 %v1524, 0.0
    %v2282 = vmax.f32 %v1526, 0.0
    %v2283 = vmax.f32 %v1637, 0.0
    %v2284 = vmax.f32 %v1639, 0.0
    %v2285 = vmax.f32 %v1750, 0.0
    %v2286 = vmax.f32 %v1752, 0.0
    %v2287 = vmax.f32 %v1863, 0.0
    %v2288 = vmax.f32 %v1865, 0.0
    %v2289 = vmax.f32 %v1976, 0.0
    %v2290 = vmax.f32 %v1978, 0.0
    %v2291 = vmax.f32 %v2089, 0.0
    %v2292 = vmax.f32 %v2091, 0.0
    %v2293 = vmax.f32 %v1302, 0.0
    %v2294 = vmax.f32 %v1304, 0.0
    %v2295 = vmax.f32 %v1415, 0.0
    %v2296 = vmax.f32 %v1417, 0.0
    %v2297 = vmax.f32 %v1528, 0.0
    %v2298 = vmax.f32 %v1530, 0.0
    %v2299 = vmax.f32 %v1641, 0.0
    %v2300 = vmax.f32 %v1643, 0.0
    %v2301 = vmax.f32 %v1754, 0.0
    %v2302 = vmax.f32 %v1756, 0.0
    %v2303 = vmax.f32 %v1867, 0.0
    %v2304 = vmax.f32 %v1869, 0.0
    %v2305 = vmax.f32 %v1980, 0.0
    %v2306 = vmax.f32 %v1982, 0.0
    %v2307 = vmax.f32 %v2093, 0.0
    %v2308 = vmax.f32 %v2095, 0.0
    %v2309 = vmax.f32 %v1308, 0.0
    %v2310 = vmax.f32 %v1310, 0.0
    %v2311 = vmax.f32 %v1421, 0.0
    %v2312 = vmax.f32 %v1423, 0.0
    %v2313 = vmax.f32 %v1534, 0.0
    %v2314 = vmax.f32 %v1536, 0.0
    %v2315 = vmax.f32 %v1647, 0.0
    %v2316 = vmax.f32 %v1649, 0.0
    %v2317 = vmax.f32 %v1760, 0.0
    %v2318 = vmax.f32 %v1762, 0.0
    %v2319 = vmax.f32 %v1873, 0.0
    %v2320 = vmax.f32 %v1875, 0.0
    %v2321 = vmax.f32 %v1986, 0.0
    %v2322 = vmax.f32 %v1988, 0.0
    %v2323 = vmax.f32 %v2099, 0.0
    %v2324 = vmax.f32 %v2101, 0.0
    %v2325 = vmax.f32 %v1312, 0.0
    %v2326 = vmax.f32 %v1314, 0.0
    %v2327 = vmax.f32 %v1425, 0.0
    %v2328 = vmax.f32 %v1427, 0.0
    %v2329 = vmax.f32 %v1538, 0.0
    %v2330 = vmax.f32 %v1540, 0.0
    %v2331 = vmax.f32 %v1651, 0.0
    %v2332 = vmax.f32 %v1653, 0.0
    %v2333 = vmax.f32 %v1764, 0.0
    %v2334 = vmax.f32 %v1766, 0.0
    %v2335 = vmax.f32 %v1877, 0.0
    %v2336 = vmax.f32 %v1879, 0.0
    %v2337 = vmax.f32 %v1990, 0.0
    %v2338 = vmax.f32 %v1992, 0.0
    %v2339 = vmax.f32 %v2103, 0.0
    %v2340 = vmax.f32 %v2105, 0.0
    %v2341 = vmax.f32 %v1318, 0.0
    %v2342 = vmax.f32 %v1320, 0.0
    %v2343 = vmax.f32 %v1431, 0.0
    %v2344 = vmax.f32 %v1433, 0.0
    %v2345 = vmax.f32 %v1544, 0.0
    %v2346 = vmax.f32 %v1546, 0.0
    %v2347 = vmax.f32 %v1657, 0.0
    %v2348 = vmax.f32 %v1659, 0.0
    %v2349 = vmax.f32 %v1770, 0.0
    %v2350 = vmax.f32 %v1772, 0.0
    %v2351 = vmax.f32 %v1883, 0.0
    %v2352 = vmax.f32 %v1885, 0.0
    %v2353 = vmax.f32 %v1996, 0.0
    %v2354 = vmax.f32 %v1998, 0.0
    %v2355 = vmax.f32 %v2109, 0.0
    %v2356 = vmax.f32 %v2111, 0.0
    %v2357 = vmax.f32 %v1322, 0.0
    %v2358 = vmax.f32 %v1324, 0.0
    %v2359 = vmax.f32 %v1435, 0.0
    %v2360 = vmax.f32 %v1437, 0.0
    %v2361 = vmax.f32 %v1548, 0.0
    %v2362 = vmax.f32 %v1550, 0.0
    %v2363 = vmax.f32 %v1661, 0.0
    %v2364 = vmax.f32 %v1663, 0.0
    %v2365 = vmax.f32 %v1774, 0.0
    %v2366 = vmax.f32 %v1776, 0.0
    %v2367 = vmax.f32 %v1887, 0.0
    %v2368 = vmax.f32 %v1889, 0.0
    %v2369 = vmax.f32 %v2000, 0.0
    %v2370 = vmax.f32 %v2002, 0.0
    %v2371 = vmax.f32 %v2113, 0.0
    %v2372 = vmax.f32 %v2115, 0.0
    %v2373 = vadd.f32 %v2117, %v2133
    %v2374 = vadd.f32 %v2373, %v2149
    %v2375 = vadd.f32 %v2374, %v2165
    %v2376 = vadd.f32 %v2375, %v2181
    %v2377 = vadd.f32 %v2376, %v2197
    %v2378 = vadd.f32 %v2377, %v2213
    %v2379 = vadd.f32 %v2378, %v2229
    %v2380 = vrot.slane %v2379, 4
    %v2381 = vadd.f32 %v2379, %v2380
    %v2382 = vrot.slane %v2381, 2
    %v2383 = vadd.f32 %v2381, %v2382
    %v2384 = vrot.slane %v2383, 1
    %v2385 = vadd.f32 %v2383, %v2384
    %v2386 = vadd.f32 %v2118, %v2134
    %v2387 = vadd.f32 %v2386, %v2150
    %v2388 = vadd.f32 %v2387, %v2166
    %v2389 = vadd.f32 %v2388, %v2182
    %v2390 = vadd.f32 %v2389, %v2198
    %v2391 = vadd.f32 %v2390, %v2214
    %v2392 = vadd.f32 %v2391, %v2230
    %v2393 = vrot.slane %v2392, 4
    %v2394 = vadd.f32 %v2392, %v2393
    %v2395 = vrot.slane %v2394, 2
    %v2396 = vadd.f32 %v2394, %v2395
    %v2397 = vrot.slane %v2396, 1
    %v2398 = vadd.f32 %v2396, %v2397
    %v2399 = vadd.f32 %v2119, %v2135
    %v2400 = vadd.f32 %v2399, %v2151
    %v2401 = vadd.f32 %v2400, %v2167
    %v2402 = vadd.f32 %v2401, %v2183
    %v2403 = vadd.f32 %v2402, %v2199
    %v2404 = vadd.f32 %v2403, %v2215
    %v2405 = vadd.f32 %v2404, %v2231
    %v2406 = vrot.slane %v2405, 4
    %v2407 = vadd.f32 %v2405, %v2406
    %v2408 = vrot.slane %v2407, 2
    %v2409 = vadd.f32 %v2407, %v2408
    %v2410 = vrot.slane %v2409, 1
    %v2411 = vadd.f32 %v2409, %v2410
    %v2412 = vadd.f32 %v2120, %v2136
    %v2413 = vadd.f32 %v2412, %v2152
    %v2414 = vadd.f32 %v2413, %v2168
    %v2415 = vadd.f32 %v2414, %v2184
    %v2416 = vadd.f32 %v2415, %v2200
    %v2417 = vadd.f32 %v2416, %v2216
    %v2418 = vadd.f32 %v2417, %v2232
    %v2419 = vrot.slane %v2418, 4
    %v2420 = vadd.f32 %v2418, %v2419
    %v2421 = vrot.slane %v2420, 2
    %v2422 = vadd.f32 %v2420, %v2421
    %v2423 = vrot.slane %v2422, 1
    %v2424 = vadd.f32 %v2422, %v2423
    %v2425 = vadd.f32 %v2121, %v2137
    %v2426 = vadd.f32 %v2425, %v2153
    %v2427 = vadd.f32 %v2426, %v2169
    %v2428 = vadd.f32 %v2427, %v2185
    %v2429 = vadd.f32 %v2428, %v2201
    %v2430 = vadd.f32 %v2429, %v2217
    %v2431 = vadd.f32 %v2430, %v2233
    %v2432 = vrot.slane %v2431, 4
    %v2433 = vadd.f32 %v2431, %v2432
    %v2434 = vrot.slane %v2433, 2
    %v2435 = vadd.f32 %v2433, %v2434
    %v2436 = vrot.slane %v2435, 1
    %v2437 = vadd.f32 %v2435, %v2436
    %v2438 = vadd.f32 %v2122, %v2138
    %v2439 = vadd.f32 %v2438, %v2154
    %v2440 = vadd.f32 %v2439, %v2170
    %v2441 = vadd.f32 %v2440, %v2186
    %v2442 = vadd.f32 %v2441, %v2202
    %v2443 = vadd.f32 %v2442, %v2218
    %v2444 = vadd.f32 %v2443, %v2234
    %v2445 = vrot.slane %v2444, 4
    %v2446 = vadd.f32 %v2444, %v2445
    %v2447 = vrot.slane %v2446, 2
    %v2448 = vadd.f32 %v2446, %v2447
    %v2449 = vrot.slane %v2448, 1
    %v2450 = vadd.f32 %v2448, %v2449
    %v2451 = vadd.f32 %v2123, %v2139
    %v2452 = vadd.f32 %v2451, %v2155
    %v2453 = vadd.f32 %v2452, %v2171
    %v2454 = vadd.f32 %v2453, %v2187
    %v2455 = vadd.f32 %v2454, %v2203
    %v2456 = vadd.f32 %v2455, %v2219
    %v2457 = vadd.f32 %v2456, %v2235
    %v2458 = vrot.slane %v2457, 4
    %v2459 = vadd.f32 %v2457, %v2458
    %v2460 = vrot.slane %v2459, 2
    %v2461 = vadd.f32 %v2459, %v2460
    %v2462 = vrot.slane %v2461, 1
    %v2463 = vadd.f32 %v2461, %v2462
    %v2464 = vadd.f32 %v2124, %v2140
    %v2465 = vadd.f32 %v2464, %v2156
    %v2466 = vadd.f32 %v2465, %v2172
    %v2467 = vadd.f32 %v2466, %v2188
    %v2468 = vadd.f32 %v2467, %v2204
    %v2469 = vadd.f32 %v2468, %v2220
    %v2470 = vadd.f32 %v2469, %v2236
    %v2471 = vrot.slane %v2470, 4
    %v2472 = vadd.f32 %v2470, %v2471
    %v2473 = vrot.slane %v2472, 2
    %v2474 = vadd.f32 %v2472, %v2473
    %v2475 = vrot.slane %v2474, 1
    %v2476 = vadd.f32 %v2474, %v2475
    %v2477 = vadd.f32 %v2125, %v2141
    %v2478 = vadd.f32 %v2477, %v2157
    %v2479 = vadd.f32 %v2478, %v2173
    %v2480 = vadd.f32 %v2479, %v2189
    %v2481 = vadd.f32 %v2480, %v2205
    %v2482 = vadd.f32 %v2481, %v2221
    %v2483 = vadd.f32 %v2482, %v2237
    %v2484 = vrot.slane %v2483, 4
    %v2485 = vadd.f32 %v2483, %v2484
    %v2486 = vrot.slane %v2485, 2
    %v2487 = vadd.f32 %v2485, %v2486
    %v2488 = vrot.slane %v2487, 1
    %v2489 = vadd.f32 %v2487, %v2488
    %v2490 = vadd.f32 %v2126, %v2142
    %v2491 = vadd.f32 %v2490, %v2158
    %v2492 = vadd.f32 %v2491, %v2174
    %v2493 = vadd.f32 %v2492, %v2190
    %v2494 = vadd.f32 %v2493, %v2206
    %v2495 = vadd.f32 %v2494, %v2222
    %v2496 = vadd.f32 %v2495, %v2238
    %v2497 = vrot.slane %v2496, 4
    %v2498 = vadd.f32 %v2496, %v2497
    %v2499 = vrot.slane %v2498, 2
    %v2500 = vadd.f32 %v2498, %v2499
    %v2501 = vrot.slane %v2500, 1
    %v2502 = vadd.f32 %v2500, %v2501
    %v2503 = vadd.f32 %v2127, %v2143
    %v2504 = vadd.f32 %v2503, %v2159
    %v2505 = vadd.f32 %v2504, %v2175
    %v2506 = vadd.f32 %v2505, %v2191
    %v2507 = vadd.f32 %v2506, %v2207
    %v2508 = vadd.f32 %v2507, %v2223
    %v2509 = vadd.f32 %v2508, %v2239
    %v2510 = vrot.slane %v2509, 4
    %v2511 = vadd.f32 %v2509, %v2510
    %v2512 = vrot.slane %v2511, 2
    %v2513 = vadd.f32 %v2511, %v2512
    %v2514 = vrot.slane %v2513, 1
    %v2515 = vadd.f32 %v2513, %v2514
    %v2516 = vadd.f32 %v2128, %v2144
    %v2517 = vadd.f32 %v2516, %v2160
    %v2518 = vadd.f32 %v2517, %v2176
    %v2519 = vadd.f32 %v2518, %v2192
    %v2520 = vadd.f32 %v2519, %v2208
    %v2521 = vadd.f32 %v2520, %v2224
    %v2522 = vadd.f32 %v2521, %v2240
    %v2523 = vrot.slane %v2522, 4
    %v2524 = vadd.f32 %v2522, %v2523
    %v2525 = vrot.slane %v2524, 2
    %v2526 = vadd.f32 %v2524, %v2525
    %v2527 = vrot.slane %v2526, 1
    %v2528 = vadd.f32 %v2526, %v2527
    %v2529 = vadd.f32 %v2129, %v2145
    %v2530 = vadd.f32 %v2529, %v2161
    %v2531 = vadd.f32 %v2530, %v2177
    %v2532 = vadd.f32 %v2531, %v2193
    %v2533 = vadd.f32 %v2532, %v2209
    %v2534 = vadd.f32 %v2533, %v2225
    %v2535 = vadd.f32 %v2534, %v2241
    %v2536 = vrot.slane %v2535, 4
    %v2537 = vadd.f32 %v2535, %v2536
    %v2538 = vrot.slane %v2537, 2
    %v2539 = vadd.f32 %v2537, %v2538
    %v2540 = vrot.slane %v2539, 1
    %v2541 = vadd.f32 %v2539, %v2540
    %v2542 = vadd.f32 %v2130, %v2146
    %v2543 = vadd.f32 %v2542, %v2162
    %v2544 = vadd.f32 %v2543, %v2178
    %v2545 = vadd.f32 %v2544, %v2194
    %v2546 = vadd.f32 %v2545, %v2210
    %v2547 = vadd.f32 %v2546, %v2226
    %v2548 = vadd.f32 %v2547, %v2242
    %v2549 = vrot.slane %v2548, 4
    %v2550 = vadd.f32 %v2548, %v2549
    %v2551 = vrot.slane %v2550, 2
    %v2552 = vadd.f32 %v2550, %v2551
    %v2553 = vrot.slane %v2552, 1
    %v2554 = vadd.f32 %v2552, %v2553
    %v2555 = vadd.f32 %v2131, %v2147
    %v2556 = vadd.f32 %v2555, %v2163
    %v2557 = vadd.f32 %v2556, %v2179
    %v2558 = vadd.f32 %v2557, %v2195
    %v2559 = vadd.f32 %v2558, %v2211
    %v2560 = vadd.f32 %v2559, %v2227
    %v2561 = vadd.f32 %v2560, %v2243
    %v2562 = vrot.slane %v2561, 4
    %v2563 = vadd.f32 %v2561, %v2562
    %v2564 = vrot.slane %v2563, 2
    %v2565 = vadd.f32 %v2563, %v2564
    %v2566 = vrot.slane %v2565, 1
    %v2567 = vadd.f32 %v2565, %v2566
    %v2568 = vadd.f32 %v2132, %v2148
    %v2569 = vadd.f32 %v2568, %v2164
    %v2570 = vadd.f32 %v2569, %v2180
    %v2571 = vadd.f32 %v2570, %v2196
    %v2572 = vadd.f32 %v2571, %v2212
    %v2573 = vadd.f32 %v2572, %v2228
    %v2574 = vadd.f32 %v2573, %v2244
    %v2575 = vrot.slane %v2574, 4
    %v2576 = vadd.f32 %v2574, %v2575
    %v2577 = vrot.slane %v2576, 2
    %v2578 = vadd.f32 %v2576, %v2577
    %v2579 = vrot.slane %v2578, 1
    %v2580 = vadd.f32 %v2578, %v2579
    %v2581 = vadd.f32 %v2245, %v2261
    %v2582 = vadd.f32 %v2581, %v2277
    %v2583 = vadd.f32 %v2582, %v2293
    %v2584 = vadd.f32 %v2583, %v2309
    %v2585 = vadd.f32 %v2584, %v2325
    %v2586 = vadd.f32 %v2585, %v2341
    %v2587 = vadd.f32 %v2586, %v2357
    %v2588 = vrot.slane %v2587, 4
    %v2589 = vadd.f32 %v2587, %v2588
    %v2590 = vrot.slane %v2589, 2
    %v2591 = vadd.f32 %v2589, %v2590
    %v2592 = vrot.slane %v2591, 1
    %v2593 = vadd.f32 %v2591, %v2592
    %v2594 = vadd.f32 %v2246, %v2262
    %v2595 = vadd.f32 %v2594, %v2278
    %v2596 = vadd.f32 %v2595, %v2294
    %v2597 = vadd.f32 %v2596, %v2310
    %v2598 = vadd.f32 %v2597, %v2326
    %v2599 = vadd.f32 %v2598, %v2342
    %v2600 = vadd.f32 %v2599, %v2358
    %v2601 = vrot.slane %v2600, 4
    %v2602 = vadd.f32 %v2600, %v2601
    %v2603 = vrot.slane %v2602, 2
    %v2604 = vadd.f32 %v2602, %v2603
    %v2605 = vrot.slane %v2604, 1
    %v2606 = vadd.f32 %v2604, %v2605
    %v2607 = vadd.f32 %v2247, %v2263
    %v2608 = vadd.f32 %v2607, %v2279
    %v2609 = vadd.f32 %v2608, %v2295
    %v2610 = vadd.f32 %v2609, %v2311
    %v2611 = vadd.f32 %v2610, %v2327
    %v2612 = vadd.f32 %v2611, %v2343
    %v2613 = vadd.f32 %v2612, %v2359
    %v2614 = vrot.slane %v2613, 4
    %v2615 = vadd.f32 %v2613, %v2614
    %v2616 = vrot.slane %v2615, 2
    %v2617 = vadd.f32 %v2615, %v2616
    %v2618 = vrot.slane %v2617, 1
    %v2619 = vadd.f32 %v2617, %v2618
    %v2620 = vadd.f32 %v2248, %v2264
    %v2621 = vadd.f32 %v2620, %v2280
    %v2622 = vadd.f32 %v2621, %v2296
    %v2623 = vadd.f32 %v2622, %v2312
    %v2624 = vadd.f32 %v2623, %v2328
    %v2625 = vadd.f32 %v2624, %v2344
    %v2626 = vadd.f32 %v2625, %v2360
    %v2627 = vrot.slane %v2626, 4
    %v2628 = vadd.f32 %v2626, %v2627
    %v2629 = vrot.slane %v2628, 2
    %v2630 = vadd.f32 %v2628, %v2629
    %v2631 = vrot.slane %v2630, 1
    %v2632 = vadd.f32 %v2630, %v2631
    %v2633 = vadd.f32 %v2249, %v2265
    %v2634 = vadd.f32 %v2633, %v2281
    %v2635 = vadd.f32 %v2634, %v2297
    %v2636 = vadd.f32 %v2635, %v2313
    %v2637 = vadd.f32 %v2636, %v2329
    %v2638 = vadd.f32 %v2637, %v2345
    %v2639 = vadd.f32 %v2638, %v2361
    %v2640 = vrot.slane %v2639, 4
    %v2641 = vadd.f32 %v2639, %v2640
    %v2642 = vrot.slane %v2641, 2
    %v2643 = vadd.f32 %v2641, %v2642
    %v2644 = vrot.slane %v2643, 1
    %v2645 = vadd.f32 %v2643, %v2644
    %v2646 = vadd.f32 %v2250, %v2266
    %v2647 = vadd.f32 %v2646, %v2282
    %v2648 = vadd.f32 %v2647, %v2298
    %v2649 = vadd.f32 %v2648, %v2314
    %v2650 = vadd.f32 %v2649, %v2330
    %v2651 = vadd.f32 %v2650, %v2346
    %v2652 = vadd.f32 %v2651, %v2362
    %v2653 = vrot.slane %v2652, 4
    %v2654 = vadd.f32 %v2652, %v2653
    %v2655 = vrot.slane %v2654, 2
    %v2656 = vadd.f32 %v2654, %v2655
    %v2657 = vrot.slane %v2656, 1
    %v2658 = vadd.f32 %v2656, %v2657
    %v2659 = vadd.f32 %v2251, %v2267
    %v2660 = vadd.f32 %v2659, %v2283
    %v2661 = vadd.f32 %v2660, %v2299
    %v2662 = vadd.f32 %v2661, %v2315
    %v2663 = vadd.f32 %v2662, %v2331
    %v2664 = vadd.f32 %v2663, %v2347
    %v2665 = vadd.f32 %v2664, %v2363
    %v2666 = vrot.slane %v2665, 4
    %v2667 = vadd.f32 %v2665, %v2666
    %v2668 = vrot.slane %v2667, 2
    %v2669 = vadd.f32 %v2667, %v2668
    %v2670 = vrot.slane %v2669, 1
    %v2671 = vadd.f32 %v2669, %v2670
    %v2672 = vadd.f32 %v2252, %v2268
    %v2673 = vadd.f32 %v2672, %v2284
    %v2674 = vadd.f32 %v2673, %v2300
    %v2675 = vadd.f32 %v2674, %v2316
    %v2676 = vadd.f32 %v2675, %v2332
    %v2677 = vadd.f32 %v2676, %v2348
    %v2678 = vadd.f32 %v2677, %v2364
    %v2679 = vrot.slane %v2678, 4
    %v2680 = vadd.f32 %v2678, %v2679
    %v2681 = vrot.slane %v2680, 2
    %v2682 = vadd.f32 %v2680, %v2681
    %v2683 = vrot.slane %v2682, 1
    %v2684 = vadd.f32 %v2682, %v2683
    %v2685 = vadd.f32 %v2253, %v2269
    %v2686 = vadd.f32 %v2685, %v2285
    %v2687 = vadd.f32 %v2686, %v2301
    %v2688 = vadd.f32 %v2687, %v2317
    %v2689 = vadd.f32 %v2688, %v2333
    %v2690 = vadd.f32 %v2689, %v2349
    %v2691 = vadd.f32 %v2690, %v2365
    %v2692 = vrot.slane %v2691, 4
    %v2693 = vadd.f32 %v2691, %v2692
    %v2694 = vrot.slane %v2693, 2
    %v2695 = vadd.f32 %v2693, %v2694
    %v2696 = vrot.slane %v2695, 1
    %v2697 = vadd.f32 %v2695, %v2696
    %v2698 = vadd.f32 %v2254, %v2270
    %v2699 = vadd.f32 %v2698, %v2286
    %v2700 = vadd.f32 %v2699, %v2302
    %v2701 = vadd.f32 %v2700, %v2318
    %v2702 = vadd.f32 %v2701, %v2334
    %v2703 = vadd.f32 %v2702, %v2350
    %v2704 = vadd.f32 %v2703, %v2366
    %v2705 = vrot.slane %v2704, 4
    %v2706 = vadd.f32 %v2704, %v2705
    %v2707 = vrot.slane %v2706, 2
    %v2708 = vadd.f32 %v2706, %v2707
    %v2709 = vrot.slane %v2708, 1
    %v2710 = vadd.f32 %v2708, %v2709
    %v2711 = vadd.f32 %v2255, %v2271
    %v2712 = vadd.f32 %v2711, %v2287
    %v2713 = vadd.f32 %v2712, %v2303
    %v2714 = vadd.f32 %v2713, %v2319
    %v2715 = vadd.f32 %v2714, %v2335
    %v2716 = vadd.f32 %v2715, %v2351
    %v2717 = vadd.f32 %v2716, %v2367
    %v2718 = vrot.slane %v2717, 4
    %v2719 = vadd.f32 %v2717, %v2718
    %v2720 = vrot.slane %v2719, 2
    %v2721 = vadd.f32 %v2719, %v2720
    %v2722 = vrot.slane %v2721, 1
    %v2723 = vadd.f32 %v2721, %v2722
    %v2724 = vadd.f32 %v2256, %v2272
    %v2725 = vadd.f32 %v2724, %v2288
    %v2726 = vadd.f32 %v2725, %v2304
    %v2727 = vadd.f32 %v2726, %v2320
    %v2728 = vadd.f32 %v2727, %v2336
    %v2729 = vadd.f32 %v2728, %v2352
    %v2730 = vadd.f32 %v2729, %v2368
    %v2731 = vrot.slane %v2730, 4
    %v2732 = vadd.f32 %v2730, %v2731
    %v2733 = vrot.slane %v2732, 2
    %v2734 = vadd.f32 %v2732, %v2733
    %v2735 = vrot.slane %v2734, 1
    %v2736 = vadd.f32 %v2734, %v2735
    %v2737 = vadd.f32 %v2257, %v2273
    %v2738 = vadd.f32 %v2737, %v2289
    %v2739 = vadd.f32 %v2738, %v2305
    %v2740 = vadd.f32 %v2739, %v2321
    %v2741 = vadd.f32 %v2740, %v2337
    %v2742 = vadd.f32 %v2741, %v2353
    %v2743 = vadd.f32 %v2742, %v2369
    %v2744 = vrot.slane %v2743, 4
    %v2745 = vadd.f32 %v2743, %v2744
    %v2746 = vrot.slane %v2745, 2
    %v2747 = vadd.f32 %v2745, %v2746
    %v2748 = vrot.slane %v2747, 1
    %v2749 = vadd.f32 %v2747, %v2748
    %v2750 = vadd.f32 %v2258, %v2274
    %v2751 = vadd.f32 %v2750, %v2290
    %v2752 = vadd.f32 %v2751, %v2306
    %v2753 = vadd.f32 %v2752, %v2322
    %v2754 = vadd.f32 %v2753, %v2338
    %v2755 = vadd.f32 %v2754, %v2354
    %v2756 = vadd.f32 %v2755, %v2370
    %v2757 = vrot.slane %v2756, 4
    %v2758 = vadd.f32 %v2756, %v2757
    %v2759 = vrot.slane %v2758, 2
    %v2760 = vadd.f32 %v2758, %v2759
    %v2761 = vrot.slane %v2760, 1
    %v2762 = vadd.f32 %v2760, %v2761
    %v2763 = vadd.f32 %v2259, %v2275
    %v2764 = vadd.f32 %v2763, %v2291
    %v2765 = vadd.f32 %v2764, %v2307
    %v2766 = vadd.f32 %v2765, %v2323
    %v2767 = vadd.f32 %v2766, %v2339
    %v2768 = vadd.f32 %v2767, %v2355
    %v2769 = vadd.f32 %v2768, %v2371
    %v2770 = vrot.slane %v2769, 4
    %v2771 = vadd.f32 %v2769, %v2770
    %v2772 = vrot.slane %v2771, 2
    %v2773 = vadd.f32 %v2771, %v2772
    %v2774 = vrot.slane %v2773, 1
    %v2775 = vadd.f32 %v2773, %v2774
    %v2776 = vadd.f32 %v2260, %v2276
    %v2777 = vadd.f32 %v2776, %v2292
    %v2778 = vadd.f32 %v2777, %v2308
    %v2779 = vadd.f32 %v2778, %v2324
    %v2780 = vadd.f32 %v2779, %v2340
    %v2781 = vadd.f32 %v2780, %v2356
    %v2782 = vadd.f32 %v2781, %v2372
    %v2783 = vrot.slane %v2782, 4
    %v2784 = vadd.f32 %v2782, %v2783
    %v2785 = vrot.slane %v2784, 2
    %v2786 = vadd.f32 %v2784, %v2785
    %v2787 = vrot.slane %v2786, 1
    %v2788 = vadd.f32 %v2786, %v2787
    %v2789 = vrcp.pop 64.0
    %v2790 = vmul.f32 %v2385, %v2789
    %v2791 = vmul.f32 %v2398, %v2789
    %v2792 = vmul.f32 %v2411, %v2789
    %v2793 = vmul.f32 %v2424, %v2789
    %v2794 = vmul.f32 %v2437, %v2789
    %v2795 = vmul.f32 %v2450, %v2789
    %v2796 = vmul.f32 %v2463, %v2789
    %v2797 = vmul.f32 %v2476, %v2789
    %v2798 = vmul.f32 %v2489, %v2789
    %v2799 = vmul.f32 %v2502, %v2789
    %v2800 = vmul.f32 %v2515, %v2789
    %v2801 = vmul.f32 %v2528, %v2789
    %v2802 = vmul.f32 %v2541, %v2789
    %v2803 = vmul.f32 %v2554, %v2789
    %v2804 = vmul.f32 %v2567, %v2789
    %v2805 = vmul.f32 %v2580, %v2789
    %v2806 = vmul.f32 %v2593, %v2789
    %v2807 = vmul.f32 %v2606, %v2789
    %v2808 = vmul.f32 %v2619, %v2789
    %v2809 = vmul.f32 %v2632, %v2789
    %v2810 = vmul.f32 %v2645, %v2789
    %v2811 = vmul.f32 %v2658, %v2789
    %v2812 = vmul.f32 %v2671, %v2789
    %v2813 = vmul.f32 %v2684, %v2789
    %v2814 = vmul.f32 %v2697, %v2789
    %v2815 = vmul.f32 %v2710, %v2789
    %v2816 = vmul.f32 %v2723, %v2789
    %v2817 = vmul.f32 %v2736, %v2789
    %v2818 = vmul.f32 %v2749, %v2789
    %v2819 = vmul.f32 %v2762, %v2789
    %v2820 = vmul.f32 %v2775, %v2789
    %v2821 = vmul.f32 %v2788, %v2789
    %v2822 = vpack.c.bf16 %v2790, %v2790
    %v2823 = vpack.c.bf16 %v2791, %v2791
    %v2824 = vpack.c.bf16 %v2792, %v2792
    %v2825 = vpack.c.bf16 %v2793, %v2793
    %v2826 = vpack.c.bf16 %v2794, %v2794
    %v2827 = vpack.c.bf16 %v2795, %v2795
    %v2828 = vpack.c.bf16 %v2796, %v2796
    %v2829 = vpack.c.bf16 %v2797, %v2797
    %v2830 = vpack.c.bf16 %v2798, %v2798
    %v2831 = vpack.c.bf16 %v2799, %v2799
    %v2832 = vpack.c.bf16 %v2800, %v2800
    %v2833 = vpack.c.bf16 %v2801, %v2801
    %v2834 = vpack.c.bf16 %v2802, %v2802
    %v2835 = vpack.c.bf16 %v2803, %v2803
    %v2836 = vpack.c.bf16 %v2804, %v2804
    %v2837 = vpack.c.bf16 %v2805, %v2805
    %v2838 = vpack.c.bf16 %v2806, %v2806
    %v2839 = vpack.c.bf16 %v2807, %v2807
    %v2840 = vpack.c.bf16 %v2808, %v2808
    %v2841 = vpack.c.bf16 %v2809, %v2809
    %v2842 = vpack.c.bf16 %v2810, %v2810
    %v2843 = vpack.c.bf16 %v2811, %v2811
    %v2844 = vpack.c.bf16 %v2812, %v2812
    %v2845 = vpack.c.bf16 %v2813, %v2813
    %v2846 = vpack.c.bf16 %v2814, %v2814
    %v2847 = vpack.c.bf16 %v2815, %v2815
    %v2848 = vpack.c.bf16 %v2816, %v2816
    %v2849 = vpack.c.bf16 %v2817, %v2817
    %v2850 = vpack.c.bf16 %v2818, %v2818
    %v2851 = vpack.c.bf16 %v2819, %v2819
    %v2852 = vpack.c.bf16 %v2820, %v2820
    %v2853 = vpack.c.bf16 %v2821, %v2821
    %v2854 = vld [vmem:[#allocation5] sm:$0xf]
    %v2855 = vld [vmem:[#allocation5 + $0x4] sm:$0xf]
    %v2856 = vld [vmem:[#allocation5 + $0x8] sm:$0xf]
    %v2857 = vld [vmem:[#allocation5 + $0xc] sm:$0xf]
    %v2858 = vld [vmem:[#allocation5 + $0x10] sm:$0xf]
    %v2859 = vld [vmem:[#allocation5 + $0x14] sm:$0xf]
    %v2860 = vld [vmem:[#allocation5 + $0x18] sm:$0xf]
    %v2861 = vld [vmem:[#allocation5 + $0x1c] sm:$0xf]
    %v2862 = vld [vmem:[#allocation5 + $0x20] sm:$0xf]
    %v2863 = vld [vmem:[#allocation5 + $0x24] sm:$0xf]
    %v2864 = vld [vmem:[#allocation5 + $0x28] sm:$0xf]
    %v2865 = vld [vmem:[#allocation5 + $0x2c] sm:$0xf]
    %v2866 = vld [vmem:[#allocation5 + $0x30] sm:$0xf]
    %v2867 = vld [vmem:[#allocation5 + $0x34] sm:$0xf]
    %v2868 = vld [vmem:[#allocation5 + $0x38] sm:$0xf]
    %v2869 = vld [vmem:[#allocation5 + $0x3c] sm:$0xf]
    %v2870 = vld [vmem:[#allocation5 + $0x40] sm:$0xf]
    %v2871 = vld [vmem:[#allocation5 + $0x44] sm:$0xf]
    %v2872 = vld [vmem:[#allocation5 + $0x48] sm:$0xf]
    %v2873 = vld [vmem:[#allocation5 + $0x4c] sm:$0xf]
    %v2874 = vld [vmem:[#allocation5 + $0x50] sm:$0xf]
    %v2875 = vld [vmem:[#allocation5 + $0x54] sm:$0xf]
    %v2876 = vld [vmem:[#allocation5 + $0x58] sm:$0xf]
    %v2877 = vld [vmem:[#allocation5 + $0x5c] sm:$0xf]
    %v2878 = vld [vmem:[#allocation5 + $0x60] sm:$0xf]
    %v2879 = vld [vmem:[#allocation5 + $0x64] sm:$0xf]
    %v2880 = vld [vmem:[#allocation5 + $0x68] sm:$0xf]
    %v2881 = vld [vmem:[#allocation5 + $0x6c] sm:$0xf]
    %v2882 = vld [vmem:[#allocation5 + $0x70] sm:$0xf]
    %v2883 = vld [vmem:[#allocation5 + $0x74] sm:$0xf]
    %v2884 = vld [vmem:[#allocation5 + $0x78] sm:$0xf]
    %v2885 = vld [vmem:[#allocation5 + $0x7c] sm:$0xf]
    %v2886 = vld [vmem:[#allocation5 + $0x80] sm:$0xf]
    %v2887 = vld [vmem:[#allocation5 + $0x84] sm:$0xf]
    %v2888 = vld [vmem:[#allocation5 + $0x88] sm:$0xf]
    %v2889 = vld [vmem:[#allocation5 + $0x8c] sm:$0xf]
    %v2890 = vld [vmem:[#allocation5 + $0x90] sm:$0xf]
    %v2891 = vld [vmem:[#allocation5 + $0x94] sm:$0xf]
    %v2892 = vld [vmem:[#allocation5 + $0x98] sm:$0xf]
    %v2893 = vld [vmem:[#allocation5 + $0x9c] sm:$0xf]
    %v2894 = vld [vmem:[#allocation5 + $0xa0] sm:$0xf]
    %v2895 = vld [vmem:[#allocation5 + $0xa4] sm:$0xf]
    %v2896 = vld [vmem:[#allocation5 + $0xa8] sm:$0xf]
    %v2897 = vld [vmem:[#allocation5 + $0xac] sm:$0xf]
    %v2898 = vld [vmem:[#allocation5 + $0xb0] sm:$0xf]
    %v2899 = vld [vmem:[#allocation5 + $0xb4] sm:$0xf]
    %v2900 = vld [vmem:[#allocation5 + $0xb8] sm:$0xf]
    %v2901 = vld [vmem:[#allocation5 + $0xbc] sm:$0xf]
    %v2902 = vld [vmem:[#allocation5 + $0xc0] sm:$0xf]
    %v2903 = vld [vmem:[#allocation5 + $0xc4] sm:$0xf]
    %v2904 = vld [vmem:[#allocation5 + $0xc8] sm:$0xf]
    %v2905 = vld [vmem:[#allocation5 + $0xcc] sm:$0xf]
    %v2906 = vld [vmem:[#allocation5 + $0xd0] sm:$0xf]
    %v2907 = vld [vmem:[#allocation5 + $0xd4] sm:$0xf]
    %v2908 = vld [vmem:[#allocation5 + $0xd8] sm:$0xf]
    %v2909 = vld [vmem:[#allocation5 + $0xdc] sm:$0xf]
    %v2910 = vld [vmem:[#allocation5 + $0xe0] sm:$0xf]
    %v2911 = vld [vmem:[#allocation5 + $0xe4] sm:$0xf]
    %v2912 = vld [vmem:[#allocation5 + $0xe8] sm:$0xf]
    %v2913 = vld [vmem:[#allocation5 + $0xec] sm:$0xf]
    %v2914 = vld [vmem:[#allocation5 + $0xf0] sm:$0xf]
    %v2915 = vld [vmem:[#allocation5 + $0xf4] sm:$0xf]
    %v2916 = vld [vmem:[#allocation5 + $0xf8] sm:$0xf]
    %v2917 = vld [vmem:[#allocation5 + $0xfc] sm:$0xf]
    %v2918 = vld [vmem:[#allocation5 + $0x100] sm:$0xf]
    %v2919 = vld [vmem:[#allocation5 + $0x104] sm:$0xf]
    %v2920 = vld [vmem:[#allocation5 + $0x108] sm:$0xf]
    %v2921 = vld [vmem:[#allocation5 + $0x10c] sm:$0xf]
    %v2922 = vld [vmem:[#allocation5 + $0x110] sm:$0xf]
    %v2923 = vld [vmem:[#allocation5 + $0x114] sm:$0xf]
    %v2924 = vld [vmem:[#allocation5 + $0x118] sm:$0xf]
    %v2925 = vld [vmem:[#allocation5 + $0x11c] sm:$0xf]
    %v2926 = vld [vmem:[#allocation5 + $0x120] sm:$0xf]
    %v2927 = vld [vmem:[#allocation5 + $0x124] sm:$0xf]
    %v2928 = vld [vmem:[#allocation5 + $0x128] sm:$0xf]
    %v2929 = vld [vmem:[#allocation5 + $0x12c] sm:$0xf]
    %v2930 = vld [vmem:[#allocation5 + $0x130] sm:$0xf]
    %v2931 = vld [vmem:[#allocation5 + $0x134] sm:$0xf]
    %v2932 = vld [vmem:[#allocation5 + $0x138] sm:$0xf]
    %v2933 = vld [vmem:[#allocation5 + $0x13c] sm:$0xf]
    %v2934 = vld [vmem:[#allocation5 + $0x140] sm:$0xf]
    %v2935 = vld [vmem:[#allocation5 + $0x144] sm:$0xf]
    %v2936 = vld [vmem:[#allocation5 + $0x148] sm:$0xf]
    %v2937 = vld [vmem:[#allocation5 + $0x14c] sm:$0xf]
    %v2938 = vld [vmem:[#allocation5 + $0x150] sm:$0xf]
    %v2939 = vld [vmem:[#allocation5 + $0x154] sm:$0xf]
    %v2940 = vld [vmem:[#allocation5 + $0x158] sm:$0xf]
    %v2941 = vld [vmem:[#allocation5 + $0x15c] sm:$0xf]
    %v2942 = vld [vmem:[#allocation5 + $0x160] sm:$0xf]
    %v2943 = vld [vmem:[#allocation5 + $0x164] sm:$0xf]
    %v2944 = vld [vmem:[#allocation5 + $0x168] sm:$0xf]
    %v2945 = vld [vmem:[#allocation5 + $0x16c] sm:$0xf]
    %v2946 = vld [vmem:[#allocation5 + $0x170] sm:$0xf]
    %v2947 = vld [vmem:[#allocation5 + $0x174] sm:$0xf]
    %v2948 = vld [vmem:[#allocation5 + $0x178] sm:$0xf]
    %v2949 = vld [vmem:[#allocation5 + $0x17c] sm:$0xf]
    %v2950 = vld [vmem:[#allocation5 + $0x180] sm:$0xf]
    %v2951 = vld [vmem:[#allocation5 + $0x184] sm:$0xf]
    %v2952 = vld [vmem:[#allocation5 + $0x188] sm:$0xf]
    %v2953 = vld [vmem:[#allocation5 + $0x18c] sm:$0xf]
    %v2954 = vld [vmem:[#allocation5 + $0x190] sm:$0xf]
    %v2955 = vld [vmem:[#allocation5 + $0x194] sm:$0xf]
    %v2956 = vld [vmem:[#allocation5 + $0x198] sm:$0xf]
    %v2957 = vld [vmem:[#allocation5 + $0x19c] sm:$0xf]
    %v2958 = vld [vmem:[#allocation5 + $0x1a0] sm:$0xf]
    %v2959 = vld [vmem:[#allocation5 + $0x1a4] sm:$0xf]
    %v2960 = vld [vmem:[#allocation5 + $0x1a8] sm:$0xf]
    %v2961 = vld [vmem:[#allocation5 + $0x1ac] sm:$0xf]
    %v2962 = vld [vmem:[#allocation5 + $0x1b0] sm:$0xf]
    %v2963 = vld [vmem:[#allocation5 + $0x1b4] sm:$0xf]
    %v2964 = vld [vmem:[#allocation5 + $0x1b8] sm:$0xf]
    %v2965 = vld [vmem:[#allocation5 + $0x1bc] sm:$0xf]
    %v2966 = vld [vmem:[#allocation5 + $0x1c0] sm:$0xf]
    %v2967 = vld [vmem:[#allocation5 + $0x1c4] sm:$0xf]
    %v2968 = vld [vmem:[#allocation5 + $0x1c8] sm:$0xf]
    %v2969 = vld [vmem:[#allocation5 + $0x1cc] sm:$0xf]
    %v2970 = vld [vmem:[#allocation5 + $0x1d0] sm:$0xf]
    %v2971 = vld [vmem:[#allocation5 + $0x1d4] sm:$0xf]
    %v2972 = vld [vmem:[#allocation5 + $0x1d8] sm:$0xf]
    %v2973 = vld [vmem:[#allocation5 + $0x1dc] sm:$0xf]
    %v2974 = vld [vmem:[#allocation5 + $0x1e0] sm:$0xf]
    %v2975 = vld [vmem:[#allocation5 + $0x1e4] sm:$0xf]
    %v2976 = vld [vmem:[#allocation5 + $0x1e8] sm:$0xf]
    %v2977 = vld [vmem:[#allocation5 + $0x1ec] sm:$0xf]
    %v2978 = vld [vmem:[#allocation5 + $0x1f0] sm:$0xf]
    %v2979 = vld [vmem:[#allocation5 + $0x1f4] sm:$0xf]
    %v2980 = vld [vmem:[#allocation5 + $0x1f8] sm:$0xf]
    %v2981 = vld [vmem:[#allocation5 + $0x1fc] sm:$0xf]
    %v2982 = vld [vmem:[#allocation5 + $0x200] sm:$0xf]
    %v2983 = vld [vmem:[#allocation5 + $0x204] sm:$0xf]
    %v2984 = vld [vmem:[#allocation5 + $0x208] sm:$0xf]
    %v2985 = vld [vmem:[#allocation5 + $0x20c] sm:$0xf]
    %v2986 = vld [vmem:[#allocation5 + $0x210] sm:$0xf]
    %v2987 = vld [vmem:[#allocation5 + $0x214] sm:$0xf]
    %v2988 = vld [vmem:[#allocation5 + $0x218] sm:$0xf]
    %v2989 = vld [vmem:[#allocation5 + $0x21c] sm:$0xf]
    %v2990 = vld [vmem:[#allocation5 + $0x220] sm:$0xf]
    %v2991 = vld [vmem:[#allocation5 + $0x224] sm:$0xf]
    %v2992 = vld [vmem:[#allocation5 + $0x228] sm:$0xf]
    %v2993 = vld [vmem:[#allocation5 + $0x22c] sm:$0xf]
    %v2994 = vld [vmem:[#allocation5 + $0x230] sm:$0xf]
    %v2995 = vld [vmem:[#allocation5 + $0x234] sm:$0xf]
    %v2996 = vld [vmem:[#allocation5 + $0x238] sm:$0xf]
    %v2997 = vld [vmem:[#allocation5 + $0x23c] sm:$0xf]
    %v2998 = vld [vmem:[#allocation5 + $0x240] sm:$0xf]
    %v2999 = vld [vmem:[#allocation5 + $0x244] sm:$0xf]
    %v3000 = vld [vmem:[#allocation5 + $0x248] sm:$0xf]
    %v3001 = vld [vmem:[#allocation5 + $0x24c] sm:$0xf]
    %v3002 = vld [vmem:[#allocation5 + $0x250] sm:$0xf]
    %v3003 = vld [vmem:[#allocation5 + $0x254] sm:$0xf]
    %v3004 = vld [vmem:[#allocation5 + $0x258] sm:$0xf]
    %v3005 = vld [vmem:[#allocation5 + $0x25c] sm:$0xf]
    %v3006 = vld [vmem:[#allocation5 + $0x260] sm:$0xf]
    %v3007 = vld [vmem:[#allocation5 + $0x264] sm:$0xf]
    %v3008 = vld [vmem:[#allocation5 + $0x268] sm:$0xf]
    %v3009 = vld [vmem:[#allocation5 + $0x26c] sm:$0xf]
    %v3010 = vld [vmem:[#allocation5 + $0x270] sm:$0xf]
    %v3011 = vld [vmem:[#allocation5 + $0x274] sm:$0xf]
    %v3012 = vld [vmem:[#allocation5 + $0x278] sm:$0xf]
    %v3013 = vld [vmem:[#allocation5 + $0x27c] sm:$0xf]
    %v3014 = vld [vmem:[#allocation5 + $0x280] sm:$0xf]
    %v3015 = vld [vmem:[#allocation5 + $0x284] sm:$0xf]
    %v3016 = vld [vmem:[#allocation5 + $0x288] sm:$0xf]
    %v3017 = vld [vmem:[#allocation5 + $0x28c] sm:$0xf]
    %v3018 = vld [vmem:[#allocation5 + $0x290] sm:$0xf]
    %v3019 = vld [vmem:[#allocation5 + $0x294] sm:$0xf]
    %v3020 = vld [vmem:[#allocation5 + $0x298] sm:$0xf]
    %v3021 = vld [vmem:[#allocation5 + $0x29c] sm:$0xf]
    %v3022 = vld [vmem:[#allocation5 + $0x2a0] sm:$0xf]
    %v3023 = vld [vmem:[#allocation5 + $0x2a4] sm:$0xf]
    %v3024 = vld [vmem:[#allocation5 + $0x2a8] sm:$0xf]
    %v3025 = vld [vmem:[#allocation5 + $0x2ac] sm:$0xf]
    %v3026 = vld [vmem:[#allocation5 + $0x2b0] sm:$0xf]
    %v3027 = vld [vmem:[#allocation5 + $0x2b4] sm:$0xf]
    %v3028 = vld [vmem:[#allocation5 + $0x2b8] sm:$0xf]
    %v3029 = vld [vmem:[#allocation5 + $0x2bc] sm:$0xf]
    %v3030 = vld [vmem:[#allocation5 + $0x2c0] sm:$0xf]
    %v3031 = vld [vmem:[#allocation5 + $0x2c4] sm:$0xf]
    %v3032 = vld [vmem:[#allocation5 + $0x2c8] sm:$0xf]
    %v3033 = vld [vmem:[#allocation5 + $0x2cc] sm:$0xf]
    %v3034 = vld [vmem:[#allocation5 + $0x2d0] sm:$0xf]
    %v3035 = vld [vmem:[#allocation5 + $0x2d4] sm:$0xf]
    %v3036 = vld [vmem:[#allocation5 + $0x2d8] sm:$0xf]
    %v3037 = vld [vmem:[#allocation5 + $0x2dc] sm:$0xf]
    %v3038 = vld [vmem:[#allocation5 + $0x2e0] sm:$0xf]
    %v3039 = vld [vmem:[#allocation5 + $0x2e4] sm:$0xf]
    %v3040 = vld [vmem:[#allocation5 + $0x2e8] sm:$0xf]
    %v3041 = vld [vmem:[#allocation5 + $0x2ec] sm:$0xf]
    %v3042 = vld [vmem:[#allocation5 + $0x2f0] sm:$0xf]
    %v3043 = vld [vmem:[#allocation5 + $0x2f4] sm:$0xf]
    %v3044 = vld [vmem:[#allocation5 + $0x2f8] sm:$0xf]
    %v3045 = vld [vmem:[#allocation5 + $0x2fc] sm:$0xf]
    %v3046 = vld [vmem:[#allocation5 + $0x300] sm:$0xf]
    %v3047 = vld [vmem:[#allocation5 + $0x304] sm:$0xf]
    %v3048 = vld [vmem:[#allocation5 + $0x308] sm:$0xf]
    %v3049 = vld [vmem:[#allocation5 + $0x30c] sm:$0xf]
    %v3050 = vld [vmem:[#allocation5 + $0x310] sm:$0xf]
    %v3051 = vld [vmem:[#allocation5 + $0x314] sm:$0xf]
    %v3052 = vld [vmem:[#allocation5 + $0x318] sm:$0xf]
    %v3053 = vld [vmem:[#allocation5 + $0x31c] sm:$0xf]
    %v3054 = vld [vmem:[#allocation5 + $0x320] sm:$0xf]
    %v3055 = vld [vmem:[#allocation5 + $0x324] sm:$0xf]
    %v3056 = vld [vmem:[#allocation5 + $0x328] sm:$0xf]
    %v3057 = vld [vmem:[#allocation5 + $0x32c] sm:$0xf]
    %v3058 = vld [vmem:[#allocation5 + $0x330] sm:$0xf]
    %v3059 = vld [vmem:[#allocation5 + $0x334] sm:$0xf]
    %v3060 = vld [vmem:[#allocation5 + $0x338] sm:$0xf]
    %v3061 = vld [vmem:[#allocation5 + $0x33c] sm:$0xf]
    %v3062 = vld [vmem:[#allocation5 + $0x340] sm:$0xf]
    %v3063 = vld [vmem:[#allocation5 + $0x344] sm:$0xf]
    %v3064 = vld [vmem:[#allocation5 + $0x348] sm:$0xf]
    %v3065 = vld [vmem:[#allocation5 + $0x34c] sm:$0xf]
    %v3066 = vld [vmem:[#allocation5 + $0x350] sm:$0xf]
    %v3067 = vld [vmem:[#allocation5 + $0x354] sm:$0xf]
    %v3068 = vld [vmem:[#allocation5 + $0x358] sm:$0xf]
    %v3069 = vld [vmem:[#allocation5 + $0x35c] sm:$0xf]
    %v3070 = vld [vmem:[#allocation5 + $0x360] sm:$0xf]
    %v3071 = vld [vmem:[#allocation5 + $0x364] sm:$0xf]
    %v3072 = vld [vmem:[#allocation5 + $0x368] sm:$0xf]
    %v3073 = vld [vmem:[#allocation5 + $0x36c] sm:$0xf]
    %v3074 = vld [vmem:[#allocation5 + $0x370] sm:$0xf]
    %v3075 = vld [vmem:[#allocation5 + $0x374] sm:$0xf]
    %v3076 = vld [vmem:[#allocation5 + $0x378] sm:$0xf]
    %v3077 = vld [vmem:[#allocation5 + $0x37c] sm:$0xf]
    %v3078 = vld [vmem:[#allocation5 + $0x380] sm:$0xf]
    %v3079 = vld [vmem:[#allocation5 + $0x384] sm:$0xf]
    %v3080 = vld [vmem:[#allocation5 + $0x388] sm:$0xf]
    %v3081 = vld [vmem:[#allocation5 + $0x38c] sm:$0xf]
    %v3082 = vld [vmem:[#allocation5 + $0x390] sm:$0xf]
    %v3083 = vld [vmem:[#allocation5 + $0x394] sm:$0xf]
    %v3084 = vld [vmem:[#allocation5 + $0x398] sm:$0xf]
    %v3085 = vld [vmem:[#allocation5 + $0x39c] sm:$0xf]
    %v3086 = vld [vmem:[#allocation5 + $0x3a0] sm:$0xf]
    %v3087 = vld [vmem:[#allocation5 + $0x3a4] sm:$0xf]
    %v3088 = vld [vmem:[#allocation5 + $0x3a8] sm:$0xf]
    %v3089 = vld [vmem:[#allocation5 + $0x3ac] sm:$0xf]
    %v3090 = vld [vmem:[#allocation5 + $0x3b0] sm:$0xf]
    %v3091 = vld [vmem:[#allocation5 + $0x3b4] sm:$0xf]
    %v3092 = vld [vmem:[#allocation5 + $0x3b8] sm:$0xf]
    %v3093 = vld [vmem:[#allocation5 + $0x3bc] sm:$0xf]
    %v3094 = vld [vmem:[#allocation5 + $0x3c0] sm:$0xf]
    %v3095 = vld [vmem:[#allocation5 + $0x3c4] sm:$0xf]
    %v3096 = vld [vmem:[#allocation5 + $0x3c8] sm:$0xf]
    %v3097 = vld [vmem:[#allocation5 + $0x3cc] sm:$0xf]
    %v3098 = vld [vmem:[#allocation5 + $0x3d0] sm:$0xf]
    %v3099 = vld [vmem:[#allocation5 + $0x3d4] sm:$0xf]
    %v3100 = vld [vmem:[#allocation5 + $0x3d8] sm:$0xf]
    %v3101 = vld [vmem:[#allocation5 + $0x3dc] sm:$0xf]
    %v3102 = vld [vmem:[#allocation5 + $0x3e0] sm:$0xf]
    %v3103 = vld [vmem:[#allocation5 + $0x3e4] sm:$0xf]
    %v3104 = vld [vmem:[#allocation5 + $0x3e8] sm:$0xf]
    %v3105 = vld [vmem:[#allocation5 + $0x3ec] sm:$0xf]
    %v3106 = vld [vmem:[#allocation5 + $0x3f0] sm:$0xf]
    %v3107 = vld [vmem:[#allocation5 + $0x3f4] sm:$0xf]
    %v3108 = vld [vmem:[#allocation5 + $0x3f8] sm:$0xf]
    %v3109 = vld [vmem:[#allocation5 + $0x3fc] sm:$0xf]
    %v3110 = vld [vmem:[%s4] sm:$0x1]
    %v3112 = vlaneseq
    %v3113 = vshrl.u32 %v3112, 7
    %v3114 = vsub.s32 0, %v3113
    %v3115 = vrot.slane %v3110, %v3114
    %v3149 = vunpack.c.l.b16 %v2822
    %v3150 = vunpack.c.l.b16 %v2823
    %v3151 = vunpack.c.l.b16 %v2824
    %v3152 = vunpack.c.l.b16 %v2825
    %v3153 = vunpack.c.l.b16 %v2826
    %v3154 = vunpack.c.l.b16 %v2827
    %v3155 = vunpack.c.l.b16 %v2828
    %v3156 = vunpack.c.l.b16 %v2829
    %v3157 = vunpack.c.l.b16 %v2830
    %v3158 = vunpack.c.l.b16 %v2831
    %v3159 = vunpack.c.l.b16 %v2832
    %v3160 = vunpack.c.l.b16 %v2833
    %v3161 = vunpack.c.l.b16 %v2834
    %v3162 = vunpack.c.l.b16 %v2835
    %v3163 = vunpack.c.l.b16 %v2836
    %v3164 = vunpack.c.l.b16 %v2837
    %v3165 = vunpack.c.l.b16 %v2838
    %v3166 = vunpack.c.l.b16 %v2839
    %v3167 = vunpack.c.l.b16 %v2840
    %v3168 = vunpack.c.l.b16 %v2841
    %v3169 = vunpack.c.l.b16 %v2842
    %v3170 = vunpack.c.l.b16 %v2843
    %v3171 = vunpack.c.l.b16 %v2844
    %v3172 = vunpack.c.l.b16 %v2845
    %v3173 = vunpack.c.l.b16 %v2846
    %v3174 = vunpack.c.l.b16 %v2847
    %v3175 = vunpack.c.l.b16 %v2848
    %v3176 = vunpack.c.l.b16 %v2849
    %v3177 = vunpack.c.l.b16 %v2850
    %v3178 = vunpack.c.l.b16 %v2851
    %v3179 = vunpack.c.l.b16 %v2852
    %v3180 = vunpack.c.l.b16 %v2853
    %vm3181 = vcmask 1041409
    %v3182 = vsel %vm3181, %v3165, %v3149
    %v3183 = vsel %vm3181, %v3166, %v3150
    %v3184 = vsel %vm3181, %v3167, %v3151
    %v3185 = vsel %vm3181, %v3168, %v3152
    %v3186 = vsel %vm3181, %v3169, %v3153
    %v3187 = vsel %vm3181, %v3170, %v3154
    %v3188 = vsel %vm3181, %v3171, %v3155
    %v3189 = vsel %vm3181, %v3172, %v3156
    %v3190 = vsel %vm3181, %v3173, %v3157
    %v3191 = vsel %vm3181, %v3174, %v3158
    %v3192 = vsel %vm3181, %v3175, %v3159
    %v3193 = vsel %vm3181, %v3176, %v3160
    %v3194 = vsel %vm3181, %v3177, %v3161
    %v3195 = vsel %vm3181, %v3178, %v3162
    %v3196 = vsel %vm3181, %v3179, %v3163
    %v3197 = vsel %vm3181, %v3180, %v3164
    %v3198 = vpack.c.b16 %v3182, %v3182
    %v3199 = vpack.c.b16 %v3183, %v3183
    %v3200 = vpack.c.b16 %v3184, %v3184
    %v3201 = vpack.c.b16 %v3185, %v3185
    %v3202 = vpack.c.b16 %v3186, %v3186
    %v3203 = vpack.c.b16 %v3187, %v3187
    %v3204 = vpack.c.b16 %v3188, %v3188
    %v3205 = vpack.c.b16 %v3189, %v3189
    %v3206 = vpack.c.b16 %v3190, %v3190
    %v3207 = vpack.c.b16 %v3191, %v3191
    %v3208 = vpack.c.b16 %v3192, %v3192
    %v3209 = vpack.c.b16 %v3193, %v3193
    %v3210 = vpack.c.b16 %v3194, %v3194
    %v3211 = vpack.c.b16 %v3195, %v3195
    %v3212 = vpack.c.b16 %v3196, %v3196
    %v3213 = vpack.c.b16 %v3197, %v3197
    %v3486 = vunpack.c.l.b16 %v2854
    %v3487 = vunpack.c.l.b16 %v2855
    %v3488 = vunpack.c.l.b16 %v2856
    %v3489 = vunpack.c.l.b16 %v2857
    %v3490 = vunpack.c.l.b16 %v2858
    %v3491 = vunpack.c.l.b16 %v2859
    %v3492 = vunpack.c.l.b16 %v2860
    %v3493 = vunpack.c.l.b16 %v2861
    %v3494 = vunpack.c.l.b16 %v2862
    %v3495 = vunpack.c.l.b16 %v2863
    %v3496 = vunpack.c.l.b16 %v2864
    %v3497 = vunpack.c.l.b16 %v2865
    %v3498 = vunpack.c.l.b16 %v2866
    %v3499 = vunpack.c.l.b16 %v2867
    %v3500 = vunpack.c.l.b16 %v2868
    %v3501 = vunpack.c.l.b16 %v2869
    %v3502 = vunpack.c.l.b16 %v2870
    %v3503 = vunpack.c.l.b16 %v2871
    %v3504 = vunpack.c.l.b16 %v2872
    %v3505 = vunpack.c.l.b16 %v2873
    %v3506 = vunpack.c.l.b16 %v2874
    %v3507 = vunpack.c.l.b16 %v2875
    %v3508 = vunpack.c.l.b16 %v2876
    %v3509 = vunpack.c.l.b16 %v2877
    %v3510 = vunpack.c.l.b16 %v2878
    %v3511 = vunpack.c.l.b16 %v2879
    %v3512 = vunpack.c.l.b16 %v2880
    %v3513 = vunpack.c.l.b16 %v2881
    %v3514 = vunpack.c.l.b16 %v2882
    %v3515 = vunpack.c.l.b16 %v2883
    %v3516 = vunpack.c.l.b16 %v2884
    %v3517 = vunpack.c.l.b16 %v2885
    %v3518 = vunpack.c.l.b16 %v2886
    %v3519 = vunpack.c.l.b16 %v2887
    %v3520 = vunpack.c.l.b16 %v2888
    %v3521 = vunpack.c.l.b16 %v2889
    %v3522 = vunpack.c.l.b16 %v2890
    %v3523 = vunpack.c.l.b16 %v2891
    %v3524 = vunpack.c.l.b16 %v2892
    %v3525 = vunpack.c.l.b16 %v2893
    %v3526 = vunpack.c.l.b16 %v2894
    %v3527 = vunpack.c.l.b16 %v2895
    %v3528 = vunpack.c.l.b16 %v2896
    %v3529 = vunpack.c.l.b16 %v2897
    %v3530 = vunpack.c.l.b16 %v2898
    %v3531 = vunpack.c.l.b16 %v2899
    %v3532 = vunpack.c.l.b16 %v2900
    %v3533 = vunpack.c.l.b16 %v2901
    %v3534 = vunpack.c.l.b16 %v2902
    %v3535 = vunpack.c.l.b16 %v2903
    %v3536 = vunpack.c.l.b16 %v2904
    %v3537 = vunpack.c.l.b16 %v2905
    %v3538 = vunpack.c.l.b16 %v2906
    %v3539 = vunpack.c.l.b16 %v2907
    %v3540 = vunpack.c.l.b16 %v2908
    %v3541 = vunpack.c.l.b16 %v2909
    %v3542 = vunpack.c.l.b16 %v2910
    %v3543 = vunpack.c.l.b16 %v2911
    %v3544 = vunpack.c.l.b16 %v2912
    %v3545 = vunpack.c.l.b16 %v2913
    %v3546 = vunpack.c.l.b16 %v2914
    %v3547 = vunpack.c.l.b16 %v2915
    %v3548 = vunpack.c.l.b16 %v2916
    %v3549 = vunpack.c.l.b16 %v2917
    %v3550 = vunpack.c.l.b16 %v2918
    %v3551 = vunpack.c.l.b16 %v2919
    %v3552 = vunpack.c.l.b16 %v2920
    %v3553 = vunpack.c.l.b16 %v2921
    %v3554 = vunpack.c.l.b16 %v2922
    %v3555 = vunpack.c.l.b16 %v2923
    %v3556 = vunpack.c.l.b16 %v2924
    %v3557 = vunpack.c.l.b16 %v2925
    %v3558 = vunpack.c.l.b16 %v2926
    %v3559 = vunpack.c.l.b16 %v2927
    %v3560 = vunpack.c.l.b16 %v2928
    %v3561 = vunpack.c.l.b16 %v2929
    %v3562 = vunpack.c.l.b16 %v2930
    %v3563 = vunpack.c.l.b16 %v2931
    %v3564 = vunpack.c.l.b16 %v2932
    %v3565 = vunpack.c.l.b16 %v2933
    %v3566 = vunpack.c.l.b16 %v2934
    %v3567 = vunpack.c.l.b16 %v2935
    %v3568 = vunpack.c.l.b16 %v2936
    %v3569 = vunpack.c.l.b16 %v2937
    %v3570 = vunpack.c.l.b16 %v2938
    %v3571 = vunpack.c.l.b16 %v2939
    %v3572 = vunpack.c.l.b16 %v2940
    %v3573 = vunpack.c.l.b16 %v2941
    %v3574 = vunpack.c.l.b16 %v2942
    %v3575 = vunpack.c.l.b16 %v2943
    %v3576 = vunpack.c.l.b16 %v2944
    %v3577 = vunpack.c.l.b16 %v2945
    %v3578 = vunpack.c.l.b16 %v2946
    %v3579 = vunpack.c.l.b16 %v2947
    %v3580 = vunpack.c.l.b16 %v2948
    %v3581 = vunpack.c.l.b16 %v2949
    %v3582 = vunpack.c.l.b16 %v2950
    %v3583 = vunpack.c.l.b16 %v2951
    %v3584 = vunpack.c.l.b16 %v2952
    %v3585 = vunpack.c.l.b16 %v2953
    %v3586 = vunpack.c.l.b16 %v2954
    %v3587 = vunpack.c.l.b16 %v2955
    %v3588 = vunpack.c.l.b16 %v2956
    %v3589 = vunpack.c.l.b16 %v2957
    %v3590 = vunpack.c.l.b16 %v2958
    %v3591 = vunpack.c.l.b16 %v2959
    %v3592 = vunpack.c.l.b16 %v2960
    %v3593 = vunpack.c.l.b16 %v2961
    %v3594 = vunpack.c.l.b16 %v2962
    %v3595 = vunpack.c.l.b16 %v2963
    %v3596 = vunpack.c.l.b16 %v2964
    %v3597 = vunpack.c.l.b16 %v2965
    %v3598 = vunpack.c.l.b16 %v2966
    %v3599 = vunpack.c.l.b16 %v2967
    %v3600 = vunpack.c.l.b16 %v2968
    %v3601 = vunpack.c.l.b16 %v2969
    %v3602 = vunpack.c.l.b16 %v2970
    %v3603 = vunpack.c.l.b16 %v2971
    %v3604 = vunpack.c.l.b16 %v2972
    %v3605 = vunpack.c.l.b16 %v2973
    %v3606 = vunpack.c.l.b16 %v2974
    %v3607 = vunpack.c.l.b16 %v2975
    %v3608 = vunpack.c.l.b16 %v2976
    %v3609 = vunpack.c.l.b16 %v2977
    %v3610 = vunpack.c.l.b16 %v2978
    %v3611 = vunpack.c.l.b16 %v2979
    %v3612 = vunpack.c.l.b16 %v2980
    %v3613 = vunpack.c.l.b16 %v2981
    %v3614 = vunpack.c.l.b16 %v2982
    %v3615 = vunpack.c.l.b16 %v2983
    %v3616 = vunpack.c.l.b16 %v2984
    %v3617 = vunpack.c.l.b16 %v2985
    %v3618 = vunpack.c.l.b16 %v2986
    %v3619 = vunpack.c.l.b16 %v2987
    %v3620 = vunpack.c.l.b16 %v2988
    %v3621 = vunpack.c.l.b16 %v2989
    %v3622 = vunpack.c.l.b16 %v2990
    %v3623 = vunpack.c.l.b16 %v2991
    %v3624 = vunpack.c.l.b16 %v2992
    %v3625 = vunpack.c.l.b16 %v2993
    %v3626 = vunpack.c.l.b16 %v2994
    %v3627 = vunpack.c.l.b16 %v2995
    %v3628 = vunpack.c.l.b16 %v2996
    %v3629 = vunpack.c.l.b16 %v2997
    %v3630 = vunpack.c.l.b16 %v2998
    %v3631 = vunpack.c.l.b16 %v2999
    %v3632 = vunpack.c.l.b16 %v3000
    %v3633 = vunpack.c.l.b16 %v3001
    %v3634 = vunpack.c.l.b16 %v3002
    %v3635 = vunpack.c.l.b16 %v3003
    %v3636 = vunpack.c.l.b16 %v3004
    %v3637 = vunpack.c.l.b16 %v3005
    %v3638 = vunpack.c.l.b16 %v3006
    %v3639 = vunpack.c.l.b16 %v3007
    %v3640 = vunpack.c.l.b16 %v3008
    %v3641 = vunpack.c.l.b16 %v3009
    %v3642 = vunpack.c.l.b16 %v3010
    %v3643 = vunpack.c.l.b16 %v3011
    %v3644 = vunpack.c.l.b16 %v3012
    %v3645 = vunpack.c.l.b16 %v3013
    %v3646 = vunpack.c.l.b16 %v3014
    %v3647 = vunpack.c.l.b16 %v3015
    %v3648 = vunpack.c.l.b16 %v3016
    %v3649 = vunpack.c.l.b16 %v3017
    %v3650 = vunpack.c.l.b16 %v3018
    %v3651 = vunpack.c.l.b16 %v3019
    %v3652 = vunpack.c.l.b16 %v3020
    %v3653 = vunpack.c.l.b16 %v3021
    %v3654 = vunpack.c.l.b16 %v3022
    %v3655 = vunpack.c.l.b16 %v3023
    %v3656 = vunpack.c.l.b16 %v3024
    %v3657 = vunpack.c.l.b16 %v3025
    %v3658 = vunpack.c.l.b16 %v3026
    %v3659 = vunpack.c.l.b16 %v3027
    %v3660 = vunpack.c.l.b16 %v3028
    %v3661 = vunpack.c.l.b16 %v3029
    %v3662 = vunpack.c.l.b16 %v3030
    %v3663 = vunpack.c.l.b16 %v3031
    %v3664 = vunpack.c.l.b16 %v3032
    %v3665 = vunpack.c.l.b16 %v3033
    %v3666 = vunpack.c.l.b16 %v3034
    %v3667 = vunpack.c.l.b16 %v3035
    %v3668 = vunpack.c.l.b16 %v3036
    %v3669 = vunpack.c.l.b16 %v3037
    %v3670 = vunpack.c.l.b16 %v3038
    %v3671 = vunpack.c.l.b16 %v3039
    %v3672 = vunpack.c.l.b16 %v3040
    %v3673 = vunpack.c.l.b16 %v3041
    %v3674 = vunpack.c.l.b16 %v3042
    %v3675 = vunpack.c.l.b16 %v3043
    %v3676 = vunpack.c.l.b16 %v3044
    %v3677 = vunpack.c.l.b16 %v3045
    %v3678 = vunpack.c.l.b16 %v3046
    %v3679 = vunpack.c.l.b16 %v3047
    %v3680 = vunpack.c.l.b16 %v3048
    %v3681 = vunpack.c.l.b16 %v3049
    %v3682 = vunpack.c.l.b16 %v3050
    %v3683 = vunpack.c.l.b16 %v3051
    %v3684 = vunpack.c.l.b16 %v3052
    %v3685 = vunpack.c.l.b16 %v3053
    %v3686 = vunpack.c.l.b16 %v3054
    %v3687 = vunpack.c.l.b16 %v3055
    %v3688 = vunpack.c.l.b16 %v3056
    %v3689 = vunpack.c.l.b16 %v3057
    %v3690 = vunpack.c.l.b16 %v3058
    %v3691 = vunpack.c.l.b16 %v3059
    %v3692 = vunpack.c.l.b16 %v3060
    %v3693 = vunpack.c.l.b16 %v3061
    %v3694 = vunpack.c.l.b16 %v3062
    %v3695 = vunpack.c.l.b16 %v3063
    %v3696 = vunpack.c.l.b16 %v3064
    %v3697 = vunpack.c.l.b16 %v3065
    %v3698 = vunpack.c.l.b16 %v3066
    %v3699 = vunpack.c.l.b16 %v3067
    %v3700 = vunpack.c.l.b16 %v3068
    %v3701 = vunpack.c.l.b16 %v3069
    %v3702 = vunpack.c.l.b16 %v3070
    %v3703 = vunpack.c.l.b16 %v3071
    %v3704 = vunpack.c.l.b16 %v3072
    %v3705 = vunpack.c.l.b16 %v3073
    %v3706 = vunpack.c.l.b16 %v3074
    %v3707 = vunpack.c.l.b16 %v3075
    %v3708 = vunpack.c.l.b16 %v3076
    %v3709 = vunpack.c.l.b16 %v3077
    %v3710 = vunpack.c.l.b16 %v3078
    %v3711 = vunpack.c.l.b16 %v3079
    %v3712 = vunpack.c.l.b16 %v3080
    %v3713 = vunpack.c.l.b16 %v3081
    %v3714 = vunpack.c.l.b16 %v3082
    %v3715 = vunpack.c.l.b16 %v3083
    %v3716 = vunpack.c.l.b16 %v3084
    %v3717 = vunpack.c.l.b16 %v3085
    %v3718 = vunpack.c.l.b16 %v3086
    %v3719 = vunpack.c.l.b16 %v3087
    %v3720 = vunpack.c.l.b16 %v3088
    %v3721 = vunpack.c.l.b16 %v3089
    %v3722 = vunpack.c.l.b16 %v3090
    %v3723 = vunpack.c.l.b16 %v3091
    %v3724 = vunpack.c.l.b16 %v3092
    %v3725 = vunpack.c.l.b16 %v3093
    %v3726 = vunpack.c.l.b16 %v3094
    %v3727 = vunpack.c.l.b16 %v3095
    %v3728 = vunpack.c.l.b16 %v3096
    %v3729 = vunpack.c.l.b16 %v3097
    %v3730 = vunpack.c.l.b16 %v3098
    %v3731 = vunpack.c.l.b16 %v3099
    %v3732 = vunpack.c.l.b16 %v3100
    %v3733 = vunpack.c.l.b16 %v3101
    %v3734 = vunpack.c.l.b16 %v3102
    %v3735 = vunpack.c.l.b16 %v3103
    %v3736 = vunpack.c.l.b16 %v3104
    %v3737 = vunpack.c.l.b16 %v3105
    %v3738 = vunpack.c.l.b16 %v3106
    %v3739 = vunpack.c.l.b16 %v3107
    %v3740 = vunpack.c.l.b16 %v3108
    %v3741 = vunpack.c.l.b16 %v3109
    %v3742 = vpack.c.b16 %v3487, %v3486
    %v3743 = vpack.c.b16 %v3489, %v3488
    %v3744 = vpack.c.b16 %v3491, %v3490
    %v3745 = vpack.c.b16 %v3493, %v3492
    %v3746 = vpack.c.b16 %v3495, %v3494
    %v3747 = vpack.c.b16 %v3497, %v3496
    %v3748 = vpack.c.b16 %v3499, %v3498
    %v3749 = vpack.c.b16 %v3501, %v3500
    %v3750 = vpack.c.b16 %v3503, %v3502
    %v3751 = vpack.c.b16 %v3505, %v3504
    %v3752 = vpack.c.b16 %v3507, %v3506
    %v3753 = vpack.c.b16 %v3509, %v3508
    %v3754 = vpack.c.b16 %v3511, %v3510
    %v3755 = vpack.c.b16 %v3513, %v3512
    %v3756 = vpack.c.b16 %v3515, %v3514
    %v3757 = vpack.c.b16 %v3517, %v3516
    %v3758 = vpack.c.b16 %v3519, %v3518
    %v3759 = vpack.c.b16 %v3521, %v3520
    %v3760 = vpack.c.b16 %v3523, %v3522
    %v3761 = vpack.c.b16 %v3525, %v3524
    %v3762 = vpack.c.b16 %v3527, %v3526
    %v3763 = vpack.c.b16 %v3529, %v3528
    %v3764 = vpack.c.b16 %v3531, %v3530
    %v3765 = vpack.c.b16 %v3533, %v3532
    %v3766 = vpack.c.b16 %v3535, %v3534
    %v3767 = vpack.c.b16 %v3537, %v3536
    %v3768 = vpack.c.b16 %v3539, %v3538
    %v3769 = vpack.c.b16 %v3541, %v3540
    %v3770 = vpack.c.b16 %v3543, %v3542
    %v3771 = vpack.c.b16 %v3545, %v3544
    %v3772 = vpack.c.b16 %v3547, %v3546
    %v3773 = vpack.c.b16 %v3549, %v3548
    %v3774 = vpack.c.b16 %v3551, %v3550
    %v3775 = vpack.c.b16 %v3553, %v3552
    %v3776 = vpack.c.b16 %v3555, %v3554
    %v3777 = vpack.c.b16 %v3557, %v3556
    %v3778 = vpack.c.b16 %v3559, %v3558
    %v3779 = vpack.c.b16 %v3561, %v3560
    %v3780 = vpack.c.b16 %v3563, %v3562
    %v3781 = vpack.c.b16 %v3565, %v3564
    %v3782 = vpack.c.b16 %v3567, %v3566
    %v3783 = vpack.c.b16 %v3569, %v3568
    %v3784 = vpack.c.b16 %v3571, %v3570
    %v3785 = vpack.c.b16 %v3573, %v3572
    %v3786 = vpack.c.b16 %v3575, %v3574
    %v3787 = vpack.c.b16 %v3577, %v3576
    %v3788 = vpack.c.b16 %v3579, %v3578
    %v3789 = vpack.c.b16 %v3581, %v3580
    %v3790 = vpack.c.b16 %v3583, %v3582
    %v3791 = vpack.c.b16 %v3585, %v3584
    %v3792 = vpack.c.b16 %v3587, %v3586
    %v3793 = vpack.c.b16 %v3589, %v3588
    %v3794 = vpack.c.b16 %v3591, %v3590
    %v3795 = vpack.c.b16 %v3593, %v3592
    %v3796 = vpack.c.b16 %v3595, %v3594
    %v3797 = vpack.c.b16 %v3597, %v3596
    %v3798 = vpack.c.b16 %v3599, %v3598
    %v3799 = vpack.c.b16 %v3601, %v3600
    %v3800 = vpack.c.b16 %v3603, %v3602
    %v3801 = vpack.c.b16 %v3605, %v3604
    %v3802 = vpack.c.b16 %v3607, %v3606
    %v3803 = vpack.c.b16 %v3609, %v3608
    %v3804 = vpack.c.b16 %v3611, %v3610
    %v3805 = vpack.c.b16 %v3613, %v3612
    %v3806 = vpack.c.b16 %v3615, %v3614
    %v3807 = vpack.c.b16 %v3617, %v3616
    %v3808 = vpack.c.b16 %v3619, %v3618
    %v3809 = vpack.c.b16 %v3621, %v3620
    %v3810 = vpack.c.b16 %v3623, %v3622
    %v3811 = vpack.c.b16 %v3625, %v3624
    %v3812 = vpack.c.b16 %v3627, %v3626
    %v3813 = vpack.c.b16 %v3629, %v3628
    %v3814 = vpack.c.b16 %v3631, %v3630
    %v3815 = vpack.c.b16 %v3633, %v3632
    %v3816 = vpack.c.b16 %v3635, %v3634
    %v3817 = vpack.c.b16 %v3637, %v3636
    %v3818 = vpack.c.b16 %v3639, %v3638
    %v3819 = vpack.c.b16 %v3641, %v3640
    %v3820 = vpack.c.b16 %v3643, %v3642
    %v3821 = vpack.c.b16 %v3645, %v3644
    %v3822 = vpack.c.b16 %v3647, %v3646
    %v3823 = vpack.c.b16 %v3649, %v3648
    %v3824 = vpack.c.b16 %v3651, %v3650
    %v3825 = vpack.c.b16 %v3653, %v3652
    %v3826 = vpack.c.b16 %v3655, %v3654
    %v3827 = vpack.c.b16 %v3657, %v3656
    %v3828 = vpack.c.b16 %v3659, %v3658
    %v3829 = vpack.c.b16 %v3661, %v3660
    %v3830 = vpack.c.b16 %v3663, %v3662
    %v3831 = vpack.c.b16 %v3665, %v3664
    %v3832 = vpack.c.b16 %v3667, %v3666
    %v3833 = vpack.c.b16 %v3669, %v3668
    %v3834 = vpack.c.b16 %v3671, %v3670
    %v3835 = vpack.c.b16 %v3673, %v3672
    %v3836 = vpack.c.b16 %v3675, %v3674
    %v3837 = vpack.c.b16 %v3677, %v3676
    %v3838 = vpack.c.b16 %v3679, %v3678
    %v3839 = vpack.c.b16 %v3681, %v3680
    %v3840 = vpack.c.b16 %v3683, %v3682
    %v3841 = vpack.c.b16 %v3685, %v3684
    %v3842 = vpack.c.b16 %v3687, %v3686
    %v3843 = vpack.c.b16 %v3689, %v3688
    %v3844 = vpack.c.b16 %v3691, %v3690
    %v3845 = vpack.c.b16 %v3693, %v3692
    %v3846 = vpack.c.b16 %v3695, %v3694
    %v3847 = vpack.c.b16 %v3697, %v3696
    %v3848 = vpack.c.b16 %v3699, %v3698
    %v3849 = vpack.c.b16 %v3701, %v3700
    %v3850 = vpack.c.b16 %v3703, %v3702
    %v3851 = vpack.c.b16 %v3705, %v3704
    %v3852 = vpack.c.b16 %v3707, %v3706
    %v3853 = vpack.c.b16 %v3709, %v3708
    %v3854 = vpack.c.b16 %v3711, %v3710
    %v3855 = vpack.c.b16 %v3713, %v3712
    %v3856 = vpack.c.b16 %v3715, %v3714
    %v3857 = vpack.c.b16 %v3717, %v3716
    %v3858 = vpack.c.b16 %v3719, %v3718
    %v3859 = vpack.c.b16 %v3721, %v3720
    %v3860 = vpack.c.b16 %v3723, %v3722
    %v3861 = vpack.c.b16 %v3725, %v3724
    %v3862 = vpack.c.b16 %v3727, %v3726
    %v3863 = vpack.c.b16 %v3729, %v3728
    %v3864 = vpack.c.b16 %v3731, %v3730
    %v3865 = vpack.c.b16 %v3733, %v3732
    %v3866 = vpack.c.b16 %v3735, %v3734
    %v3867 = vpack.c.b16 %v3737, %v3736
    %v3868 = vpack.c.b16 %v3739, %v3738
    %v3869 = vpack.c.b16 %v3741, %v3740
    %3998 = vmatprep.subr.bf16.mxu0 0
    %3999 = vmatpush1.bf16.msra.mxu0 %v3742
    %4000 = vmatprep.subr.bf16.mxu0 0
    %4001 = vmatpush1.bf16.msra.mxu0 %v3743
    %4002 = vmatprep.subr.bf16.mxu0 0
    %4003 = vmatpush1.bf16.msra.mxu0 %v3744
    %4004 = vmatprep.subr.bf16.mxu0 0
    %4005 = vmatpush1.bf16.msra.mxu0 %v3745
    %4006 = vmatprep.subr.bf16.mxu0 0
    %4007 = vmatpush1.bf16.msra.mxu0 %v3746
    %4008 = vmatprep.subr.bf16.mxu0 0
    %4009 = vmatpush1.bf16.msra.mxu0 %v3747
    %4010 = vmatprep.subr.bf16.mxu0 0
    %4011 = vmatpush1.bf16.msra.mxu0 %v3748
    %4012 = vmatprep.subr.bf16.mxu0 0
    %4013 = vmatpush1.bf16.msra.mxu0 %v3749
    %4014 = vmatprep.subr.bf16.mxu0 0
    %4015 = vmatpush1.bf16.msra.mxu0 %v3750
    %4016 = vmatprep.subr.bf16.mxu0 0
    %4017 = vmatpush1.bf16.msra.mxu0 %v3751
    %4018 = vmatprep.subr.bf16.mxu0 0
    %4019 = vmatpush1.bf16.msra.mxu0 %v3752
    %4020 = vmatprep.subr.bf16.mxu0 0
    %4021 = vmatpush1.bf16.msra.mxu0 %v3753
    %4022 = vmatprep.subr.bf16.mxu0 0
    %4023 = vmatpush1.bf16.msra.mxu0 %v3754
    %4024 = vmatprep.subr.bf16.mxu0 0
    %4025 = vmatpush1.bf16.msra.mxu0 %v3755
    %4026 = vmatprep.subr.bf16.mxu0 0
    %4027 = vmatpush1.bf16.msra.mxu0 %v3756
    %4028 = vmatprep.subr.bf16.mxu0 0
    %4029 = vmatpush1.bf16.msra.mxu0 %v3757
    %4030 = vmatprep.mubr.bf16.mxu0 %v3199
    %4031 = vmatmul.mubr.bf16.gmra.mrb[0].mxu0 %v3198
    %v4032 = vpop.f32.mrb[0].mxu0
    %v4033 = vadd.f32 %v3115, %v4032
    %v4034 = vpop.f32.mrb[0].mxu0
    %v4035 = vpop.f32.mrb[0].mxu0
    %v4036 = vpop.f32.mrb[0].mxu0
    %4037 = vdwg.mxu0
    %4038 = vmatprep.subr.bf16.mxu0 0
    %4039 = vmatpush1.bf16.msra.mxu0 %v3758
    %4040 = vmatprep.subr.bf16.mxu0 0
    %4041 = vmatpush1.bf16.msra.mxu0 %v3759
    %4042 = vmatprep.subr.bf16.mxu0 0
    %4043 = vmatpush1.bf16.msra.mxu0 %v3760
    %4044 = vmatprep.subr.bf16.mxu0 0
    %4045 = vmatpush1.bf16.msra.mxu0 %v3761
    %4046 = vmatprep.subr.bf16.mxu0 0
    %4047 = vmatpush1.bf16.msra.mxu0 %v3762
    %4048 = vmatprep.subr.bf16.mxu0 0
    %4049 = vmatpush1.bf16.msra.mxu0 %v3763
    %4050 = vmatprep.subr.bf16.mxu0 0
    %4051 = vmatpush1.bf16.msra.mxu0 %v3764
    %4052 = vmatprep.subr.bf16.mxu0 0
    %4053 = vmatpush1.bf16.msra.mxu0 %v3765
    %4054 = vmatprep.subr.bf16.mxu0 0
    %4055 = vmatpush1.bf16.msra.mxu0 %v3766
    %4056 = vmatprep.subr.bf16.mxu0 0
    %4057 = vmatpush1.bf16.msra.mxu0 %v3767
    %4058 = vmatprep.subr.bf16.mxu0 0
    %4059 = vmatpush1.bf16.msra.mxu0 %v3768
    %4060 = vmatprep.subr.bf16.mxu0 0
    %4061 = vmatpush1.bf16.msra.mxu0 %v3769
    %4062 = vmatprep.subr.bf16.mxu0 0
    %4063 = vmatpush1.bf16.msra.mxu0 %v3770
    %4064 = vmatprep.subr.bf16.mxu0 0
    %4065 = vmatpush1.bf16.msra.mxu0 %v3771
    %4066 = vmatprep.subr.bf16.mxu0 0
    %4067 = vmatpush1.bf16.msra.mxu0 %v3772
    %4068 = vmatprep.subr.bf16.mxu0 0
    %4069 = vmatpush1.bf16.msra.mxu0 %v3773
    %4070 = vmatprep.mubr.bf16.mxu0 %v3201
    %4071 = vmatmul.mubr.bf16.gmra.mrb[0].mxu0 %v3200
    %v4072 = vpop.f32.mrb[0].mxu0
    %v4073 = vadd.f32 %v4033, %v4072
    %v4074 = vpop.f32.mrb[0].mxu0
    %v4075 = vpop.f32.mrb[0].mxu0
    %v4076 = vpop.f32.mrb[0].mxu0
    %4077 = vdwg.mxu0
    %4078 = vmatprep.subr.bf16.mxu0 0
    %4079 = vmatpush1.bf16.msra.mxu0 %v3774
    %4080 = vmatprep.subr.bf16.mxu0 0
    %4081 = vmatpush1.bf16.msra.mxu0 %v3775
    %4082 = vmatprep.subr.bf16.mxu0 0
    %4083 = vmatpush1.bf16.msra.mxu0 %v3776
    %4084 = vmatprep.subr.bf16.mxu0 0
    %4085 = vmatpush1.bf16.msra.mxu0 %v3777
    %4086 = vmatprep.subr.bf16.mxu0 0
    %4087 = vmatpush1.bf16.msra.mxu0 %v3778
    %4088 = vmatprep.subr.bf16.mxu0 0
    %4089 = vmatpush1.bf16.msra.mxu0 %v3779
    %4090 = vmatprep.subr.bf16.mxu0 0
    %4091 = vmatpush1.bf16.msra.mxu0 %v3780
    %4092 = vmatprep.subr.bf16.mxu0 0
    %4093 = vmatpush1.bf16.msra.mxu0 %v3781
    %4094 = vmatprep.subr.bf16.mxu0 0
    %4095 = vmatpush1.bf16.msra.mxu0 %v3782
    %4096 = vmatprep.subr.bf16.mxu0 0
    %4097 = vmatpush1.bf16.msra.mxu0 %v3783
    %4098 = vmatprep.subr.bf16.mxu0 0
    %4099 = vmatpush1.bf16.msra.mxu0 %v3784
    %4100 = vmatprep.subr.bf16.mxu0 0
    %4101 = vmatpush1.bf16.msra.mxu0 %v3785
    %4102 = vmatprep.subr.bf16.mxu0 0
    %4103 = vmatpush1.bf16.msra.mxu0 %v3786
    %4104 = vmatprep.subr.bf16.mxu0 0
    %4105 = vmatpush1.bf16.msra.mxu0 %v3787
    %4106 = vmatprep.subr.bf16.mxu0 0
    %4107 = vmatpush1.bf16.msra.mxu0 %v3788
    %4108 = vmatprep.subr.bf16.mxu0 0
    %4109 = vmatpush1.bf16.msra.mxu0 %v3789
    %4110 = vmatprep.mubr.bf16.mxu0 %v3203
    %4111 = vmatmul.mubr.bf16.gmra.mrb[0].mxu0 %v3202
    %v4112 = vpop.f32.mrb[0].mxu0
    %v4113 = vadd.f32 %v4073, %v4112
    %v4114 = vpop.f32.mrb[0].mxu0
    %v4115 = vpop.f32.mrb[0].mxu0
    %v4116 = vpop.f32.mrb[0].mxu0
    %4117 = vdwg.mxu0
    %4118 = vmatprep.subr.bf16.mxu0 0
    %4119 = vmatpush1.bf16.msra.mxu0 %v3790
    %4120 = vmatprep.subr.bf16.mxu0 0
    %4121 = vmatpush1.bf16.msra.mxu0 %v3791
    %4122 = vmatprep.subr.bf16.mxu0 0
    %4123 = vmatpush1.bf16.msra.mxu0 %v3792
    %4124 = vmatprep.subr.bf16.mxu0 0
    %4125 = vmatpush1.bf16.msra.mxu0 %v3793
    %4126 = vmatprep.subr.bf16.mxu0 0
    %4127 = vmatpush1.bf16.msra.mxu0 %v3794
    %4128 = vmatprep.subr.bf16.mxu0 0
    %4129 = vmatpush1.bf16.msra.mxu0 %v3795
    %4130 = vmatprep.subr.bf16.mxu0 0
    %4131 = vmatpush1.bf16.msra.mxu0 %v3796
    %4132 = vmatprep.subr.bf16.mxu0 0
    %4133 = vmatpush1.bf16.msra.mxu0 %v3797
    %4134 = vmatprep.subr.bf16.mxu0 0
    %4135 = vmatpush1.bf16.msra.mxu0 %v3798
    %4136 = vmatprep.subr.bf16.mxu0 0
    %4137 = vmatpush1.bf16.msra.mxu0 %v3799
    %4138 = vmatprep.subr.bf16.mxu0 0
    %4139 = vmatpush1.bf16.msra.mxu0 %v3800
    %4140 = vmatprep.subr.bf16.mxu0 0
    %4141 = vmatpush1.bf16.msra.mxu0 %v3801
    %4142 = vmatprep.subr.bf16.mxu0 0
    %4143 = vmatpush1.bf16.msra.mxu0 %v3802
    %4144 = vmatprep.subr.bf16.mxu0 0
    %4145 = vmatpush1.bf16.msra.mxu0 %v3803
    %4146 = vmatprep.subr.bf16.mxu0 0
    %4147 = vmatpush1.bf16.msra.mxu0 %v3804
    %4148 = vmatprep.subr.bf16.mxu0 0
    %4149 = vmatpush1.bf16.msra.mxu0 %v3805
    %4150 = vmatprep.mubr.bf16.mxu0 %v3205
    %4151 = vmatmul.mubr.bf16.gmra.mrb[0].mxu0 %v3204
    %v4152 = vpop.f32.mrb[0].mxu0
    %v4153 = vadd.f32 %v4113, %v4152
    %v4154 = vpop.f32.mrb[0].mxu0
    %v4155 = vpop.f32.mrb[0].mxu0
    %v4156 = vpop.f32.mrb[0].mxu0
    %4157 = vdwg.mxu0
    %4158 = vmatprep.subr.bf16.mxu0 0
    %4159 = vmatpush1.bf16.msra.mxu0 %v3806
    %4160 = vmatprep.subr.bf16.mxu0 0
    %4161 = vmatpush1.bf16.msra.mxu0 %v3807
    %4162 = vmatprep.subr.bf16.mxu0 0
    %4163 = vmatpush1.bf16.msra.mxu0 %v3808
    %4164 = vmatprep.subr.bf16.mxu0 0
    %4165 = vmatpush1.bf16.msra.mxu0 %v3809
    %4166 = vmatprep.subr.bf16.mxu0 0
    %4167 = vmatpush1.bf16.msra.mxu0 %v3810
    %4168 = vmatprep.subr.bf16.mxu0 0
    %4169 = vmatpush1.bf16.msra.mxu0 %v3811
    %4170 = vmatprep.subr.bf16.mxu0 0
    %4171 = vmatpush1.bf16.msra.mxu0 %v3812
    %4172 = vmatprep.subr.bf16.mxu0 0
    %4173 = vmatpush1.bf16.msra.mxu0 %v3813
    %4174 = vmatprep.subr.bf16.mxu0 0
    %4175 = vmatpush1.bf16.msra.mxu0 %v3814
    %4176 = vmatprep.subr.bf16.mxu0 0
    %4177 = vmatpush1.bf16.msra.mxu0 %v3815
    %4178 = vmatprep.subr.bf16.mxu0 0
    %4179 = vmatpush1.bf16.msra.mxu0 %v3816
    %4180 = vmatprep.subr.bf16.mxu0 0
    %4181 = vmatpush1.bf16.msra.mxu0 %v3817
    %4182 = vmatprep.subr.bf16.mxu0 0
    %4183 = vmatpush1.bf16.msra.mxu0 %v3818
    %4184 = vmatprep.subr.bf16.mxu0 0
    %4185 = vmatpush1.bf16.msra.mxu0 %v3819
    %4186 = vmatprep.subr.bf16.mxu0 0
    %4187 = vmatpush1.bf16.msra.mxu0 %v3820
    %4188 = vmatprep.subr.bf16.mxu0 0
    %4189 = vmatpush1.bf16.msra.mxu0 %v3821
    %4190 = vmatprep.mubr.bf16.mxu0 %v3207
    %4191 = vmatmul.mubr.bf16.gmra.mrb[0].mxu0 %v3206
    %v4192 = vpop.f32.mrb[0].mxu0
    %v4193 = vadd.f32 %v4153, %v4192
    %v4194 = vpop.f32.mrb[0].mxu0
    %v4195 = vpop.f32.mrb[0].mxu0
    %v4196 = vpop.f32.mrb[0].mxu0
    %4197 = vdwg.mxu0
    %4198 = vmatprep.subr.bf16.mxu0 0
    %4199 = vmatpush1.bf16.msra.mxu0 %v3822
    %4200 = vmatprep.subr.bf16.mxu0 0
    %4201 = vmatpush1.bf16.msra.mxu0 %v3823
    %4202 = vmatprep.subr.bf16.mxu0 0
    %4203 = vmatpush1.bf16.msra.mxu0 %v3824
    %4204 = vmatprep.subr.bf16.mxu0 0
    %4205 = vmatpush1.bf16.msra.mxu0 %v3825
    %4206 = vmatprep.subr.bf16.mxu0 0
    %4207 = vmatpush1.bf16.msra.mxu0 %v3826
    %4208 = vmatprep.subr.bf16.mxu0 0
    %4209 = vmatpush1.bf16.msra.mxu0 %v3827
    %4210 = vmatprep.subr.bf16.mxu0 0
    %4211 = vmatpush1.bf16.msra.mxu0 %v3828
    %4212 = vmatprep.subr.bf16.mxu0 0
    %4213 = vmatpush1.bf16.msra.mxu0 %v3829
    %4214 = vmatprep.subr.bf16.mxu0 0
    %4215 = vmatpush1.bf16.msra.mxu0 %v3830
    %4216 = vmatprep.subr.bf16.mxu0 0
    %4217 = vmatpush1.bf16.msra.mxu0 %v3831
    %4218 = vmatprep.subr.bf16.mxu0 0
    %4219 = vmatpush1.bf16.msra.mxu0 %v3832
    %4220 = vmatprep.subr.bf16.mxu0 0
    %4221 = vmatpush1.bf16.msra.mxu0 %v3833
    %4222 = vmatprep.subr.bf16.mxu0 0
    %4223 = vmatpush1.bf16.msra.mxu0 %v3834
    %4224 = vmatprep.subr.bf16.mxu0 0
    %4225 = vmatpush1.bf16.msra.mxu0 %v3835
    %4226 = vmatprep.subr.bf16.mxu0 0
    %4227 = vmatpush1.bf16.msra.mxu0 %v3836
    %4228 = vmatprep.subr.bf16.mxu0 0
    %4229 = vmatpush1.bf16.msra.mxu0 %v3837
    %4230 = vmatprep.mubr.bf16.mxu0 %v3209
    %4231 = vmatmul.mubr.bf16.gmra.mrb[0].mxu0 %v3208
    %v4232 = vpop.f32.mrb[0].mxu0
    %v4233 = vadd.f32 %v4193, %v4232
    %v4234 = vpop.f32.mrb[0].mxu0
    %v4235 = vpop.f32.mrb[0].mxu0
    %v4236 = vpop.f32.mrb[0].mxu0
    %4237 = vdwg.mxu0
    %4238 = vmatprep.subr.bf16.mxu0 0
    %4239 = vmatpush1.bf16.msra.mxu0 %v3838
    %4240 = vmatprep.subr.bf16.mxu0 0
    %4241 = vmatpush1.bf16.msra.mxu0 %v3839
    %4242 = vmatprep.subr.bf16.mxu0 0
    %4243 = vmatpush1.bf16.msra.mxu0 %v3840
    %4244 = vmatprep.subr.bf16.mxu0 0
    %4245 = vmatpush1.bf16.msra.mxu0 %v3841
    %4246 = vmatprep.subr.bf16.mxu0 0
    %4247 = vmatpush1.bf16.msra.mxu0 %v3842
    %4248 = vmatprep.subr.bf16.mxu0 0
    %4249 = vmatpush1.bf16.msra.mxu0 %v3843
    %4250 = vmatprep.subr.bf16.mxu0 0
    %4251 = vmatpush1.bf16.msra.mxu0 %v3844
    %4252 = vmatprep.subr.bf16.mxu0 0
    %4253 = vmatpush1.bf16.msra.mxu0 %v3845
    %4254 = vmatprep.subr.bf16.mxu0 0
    %4255 = vmatpush1.bf16.msra.mxu0 %v3846
    %4256 = vmatprep.subr.bf16.mxu0 0
    %4257 = vmatpush1.bf16.msra.mxu0 %v3847
    %4258 = vmatprep.subr.bf16.mxu0 0
    %4259 = vmatpush1.bf16.msra.mxu0 %v3848
    %4260 = vmatprep.subr.bf16.mxu0 0
    %4261 = vmatpush1.bf16.msra.mxu0 %v3849
    %4262 = vmatprep.subr.bf16.mxu0 0
    %4263 = vmatpush1.bf16.msra.mxu0 %v3850
    %4264 = vmatprep.subr.bf16.mxu0 0
    %4265 = vmatpush1.bf16.msra.mxu0 %v3851
    %4266 = vmatprep.subr.bf16.mxu0 0
    %4267 = vmatpush1.bf16.msra.mxu0 %v3852
    %4268 = vmatprep.subr.bf16.mxu0 0
    %4269 = vmatpush1.bf16.msra.mxu0 %v3853
    %4270 = vmatprep.mubr.bf16.mxu0 %v3211
    %4271 = vmatmul.mubr.bf16.gmra.mrb[0].mxu0 %v3210
    %v4272 = vpop.f32.mrb[0].mxu0
    %v4273 = vadd.f32 %v4233, %v4272
    %v4274 = vpop.f32.mrb[0].mxu0
    %v4275 = vpop.f32.mrb[0].mxu0
    %v4276 = vpop.f32.mrb[0].mxu0
    %4277 = vdwg.mxu0
    %4278 = vmatprep.subr.bf16.mxu0 0
    %4279 = vmatpush1.bf16.msra.mxu0 %v3854
    %4280 = vmatprep.subr.bf16.mxu0 0
    %4281 = vmatpush1.bf16.msra.mxu0 %v3855
    %4282 = vmatprep.subr.bf16.mxu0 0
    %4283 = vmatpush1.bf16.msra.mxu0 %v3856
    %4284 = vmatprep.subr.bf16.mxu0 0
    %4285 = vmatpush1.bf16.msra.mxu0 %v3857
    %4286 = vmatprep.subr.bf16.mxu0 0
    %4287 = vmatpush1.bf16.msra.mxu0 %v3858
    %4288 = vmatprep.subr.bf16.mxu0 0
    %4289 = vmatpush1.bf16.msra.mxu0 %v3859
    %4290 = vmatprep.subr.bf16.mxu0 0
    %4291 = vmatpush1.bf16.msra.mxu0 %v3860
    %4292 = vmatprep.subr.bf16.mxu0 0
    %4293 = vmatpush1.bf16.msra.mxu0 %v3861
    %4294 = vmatprep.subr.bf16.mxu0 0
    %4295 = vmatpush1.bf16.msra.mxu0 %v3862
    %4296 = vmatprep.subr.bf16.mxu0 0
    %4297 = vmatpush1.bf16.msra.mxu0 %v3863
    %4298 = vmatprep.subr.bf16.mxu0 0
    %4299 = vmatpush1.bf16.msra.mxu0 %v3864
    %4300 = vmatprep.subr.bf16.mxu0 0
    %4301 = vmatpush1.bf16.msra.mxu0 %v3865
    %4302 = vmatprep.subr.bf16.mxu0 0
    %4303 = vmatpush1.bf16.msra.mxu0 %v3866
    %4304 = vmatprep.subr.bf16.mxu0 0
    %4305 = vmatpush1.bf16.msra.mxu0 %v3867
    %4306 = vmatprep.subr.bf16.mxu0 0
    %4307 = vmatpush1.bf16.msra.mxu0 %v3868
    %4308 = vmatprep.subr.bf16.mxu0 0
    %4309 = vmatpush1.bf16.msra.mxu0 %v3869
    %4310 = vmatprep.mubr.bf16.mxu0 %v3213
    %4311 = vmatmul.mubr.bf16.gmra.mrb[0].mxu0 %v3212
    %v4312 = vpop.f32.mrb[0].mxu0
    %v4313 = vadd.f32 %v4273, %v4312
    %v4314 = vpop.f32.mrb[0].mxu0
    %v4315 = vpop.f32.mrb[0].mxu0
    %v4316 = vpop.f32.mrb[0].mxu0
    %4317 = vdwg.mxu0
    %vm4318 = vcmask 1041408
    %v4319 = vsel %vm4318, %v4313, 0.0
    %v4320 = vrot.slane %v4319, 4
    %v4321 = vadd.f32 %v4319, %v4320
    %v4322 = vrot.slane %v4321, 2
    %v4323 = vadd.f32 %v4321, %v4322
    %v4324 = vrot.slane %v4323, 1
    %v4325 = vadd.f32 %v4323, %v4324
    %v4326 = vrcp.pop 2.0
    %v4327 = vmul.f32 %v4325, %v4326
    %v4328 = vsub.f32 %v4313, %v4327
    %v4329 = vmul.f32 %v4328, %v4328
    %v4330 = vsel %vm4318, %v4329, 0.0
    %v4331 = vrot.slane %v4330, 4
    %v4332 = vadd.f32 %v4330, %v4331
    %v4333 = vrot.slane %v4332, 2
    %v4334 = vadd.f32 %v4332, %v4333
    %v4335 = vrot.slane %v4334, 1
    %v4336 = vadd.f32 %v4334, %v4335
    %v4337 = vmul.f32 %v4336, %v4326
    %v4338 = vld [vmem:[%s5] sm:$0x1]
    %v4340 = vlaneseq
    %v4341 = vshrl.u32 %v4340, 7
    %v4342 = vsub.s32 0, %v4341
    %v4343 = vrot.slane %v4338, %v4342
    %v4345 = vmul.f32 %v4343, %v4328
    %v4346 = vadd.f32 %v4337, 1e-05
    %v4347 = vrsqrt.pop %v4346
    %v4348 = vmul.f32 %v4345, %v4347
    %v4349 = vld [vmem:[%s6] sm:$0x1]
    %v4351 = vlaneseq
    %v4352 = vshrl.u32 %v4351, 7
    %v4353 = vsub.s32 0, %v4352
    %v4354 = vrot.slane %v4349, %v4353
    %v4356 = vadd.f32 %v4348, %v4354
    %4357 = vst [vmem:[#allocation7] sm:$0x3] %v4356
    // Predicated region
    $region38: #{tpu_custom_call.1} parent=1 // pred_check
      _
    $region39: #{tpu_custom_call.1} parent=1 // pred_check_branch
      %4359 = sbr.rel (0) target = $region41
    $region40: #{tpu_custom_call.1} parent=1 // pred_region
      %s4361 = ssub.s32 32, 32
      %4362 = vsyncadd [#allocation4], %s4361
      %s4364 = sshll.u32 [#allocation7], 4
      %s4365 = int_to_ptr.vmem [resolvable:$true] %s4364
      %4367 = dma.vmem_to_hbm [thread:$0]  %s4365, 32, %s7, [#allocation4]
    $region41: #{tpu_custom_call.1} parent=1 // pred_fallthru
      _
    // Predicated region
    $region42: #{tpu_custom_call.1} parent=1 // pred_check
      _
    $region43: #{tpu_custom_call.1} parent=1 // pred_check_branch
      %4369 = sbr.rel (0) target = $region45
    $region44: #{tpu_custom_call.1} parent=1 // pred_region
      %4370 = dma.done [#allocation4], 32
    $region45: #{tpu_custom_call.1} parent=1 // pred_fallthru
      _
    %4371 = vsyncpa [#allocation3], 1
    %4372 = vsyncpa [#allocation6], 1
    %4373 = vsyncpa [#allocation4], 1

</llo_original>
